<compile_context>
chip_gen: v7x
topology: tpu7x:2x2x1
jax: 0.10.0
libtpu: 0.0.40
codegen_flags: <defaults>
</compile_context>

<pallas_src>
import functools
import math

import jax
import jax.numpy as jnp
from jax.experimental import pallas as pl
from jax.experimental.pallas import tpu as pltpu


def _graph_attention_kernel(x_ref, eq_ref, ek_ref, wqx_ref, wkx_ref,
                            wmx_ref, wmy_ref, bm_ref, o_ref, *, d):
    # x_ref  : (BT_TILE, N, c_in)   batch of (b, t) node slices
    # eq/ek  : (N, d)               precomputed  emb @ Wq_e + bq  (resident)
    # wqx/wkx: (c_in, d)            data half of the 1x1-conv Q/K weights
    # wmx/wmy: (c_in, c_out)        split final 1x1-conv weight (x half / y half)
    # bm     : (1, c_out)
    # o_ref  : (BT_TILE * N, c_out)
    bt, n, c_in = x_ref.shape
    x3 = x_ref[...]                                     # (bt, N, c_in)
    x2 = x3.reshape(bt * n, c_in)                       # cheap: N % 8 == 0

    # Q/K projections: only the data-dependent part runs in-kernel.
    q = jnp.dot(x2, wqx_ref[...],
                preferred_element_type=jnp.float32).reshape(bt, n, d)
    k = jnp.dot(x2, wkx_ref[...],
                preferred_element_type=jnp.float32).reshape(bt, n, d)
    q = q + eq_ref[...][None]                           # (bt, N, d)
    k = k + ek_ref[...][None]

    # Transposed scores: st[b, m, n] = <k[b,m], q[b,n]> / sqrt(d)
    st = jax.lax.dot_general(k, q, (((2,), (2,)), ((0,), (0,))),
                             preferred_element_type=jnp.float32)
    st = st * (1.0 / math.sqrt(d))
    # softmax over the original attention "m" axis == axis 1 of st
    st = st - jnp.max(st, axis=1, keepdims=True)
    e = jnp.exp(st)
    att_t = e / jnp.sum(e, axis=1, keepdims=True)       # att_t[b,m,n] = att[b,n,m]

    # torch: matmul(x.permute(0,3,1,2), attention) -> y[b,m,c] = sum_n att[b,n,m] x[b,n,c]
    y = jax.lax.dot_general(att_t, x3, (((2,), (1,)), ((0,), (0,))),
                            preferred_element_type=jnp.float32)  # (bt, N, c_in)

    # Final 1x1-conv MLP on concat([x, y]) via split weights (no concat).
    y2 = y.reshape(bt * n, c_in)
    o2 = (jnp.dot(x2, wmx_ref[...], preferred_element_type=jnp.float32)
          + jnp.dot(y2, wmy_ref[...], preferred_element_type=jnp.float32)
          + bm_ref[...])
    o_ref[...] = o2                                     # (bt*N, c_out)


def graphattention_forward(x, embedding, params, *, d, bt_tile=256):
    """x: (B, c_in, N, T) NCHW (like PyTorch).  embedding: (emb_length, N).
    Returns (h, 0) with h: (B, c_out, N, T)."""
    B, c_in, N, T = x.shape
    emb_length = embedding.shape[0]
    c_out = params["wm"].shape[0]

    # conv1x1 weights -> matmul form (in_features, out_features), then split.
    wq = params["wq"].reshape(d, c_in + emb_length).T      # (c_in+emb, d)
    wk = params["wk"].reshape(d, c_in + emb_length).T
    wm = params["wm"].reshape(c_out, 2 * c_in).T           # (2*c_in, c_out)
    wq_x, wq_e = wq[:c_in], wq[c_in:]
    wk_x, wk_e = wk[:c_in], wk[c_in:]
    wm_x, wm_y = wm[:c_in], wm[c_in:]

    emb_t = embedding.T.astype(jnp.float32)                # (N, emb_length)
    eq = emb_t @ wq_e + params["bq"][None, :]              # (N, d)  hoisted
    ek = emb_t @ wk_e + params["bk"][None, :]              # (N, d)  hoisted
    bm = params["bm"].reshape(1, c_out)

    # node-major, channel-last, (b,t) flattened into one batch axis
    x_btnc = jnp.transpose(x, (0, 3, 2, 1)).reshape(B * T, N, c_in)
    x_btnc = x_btnc.astype(jnp.float32)

    bt = B * T
    if bt <= bt_tile:
        tile = ((bt + 7) // 8) * 8                         # 8-aligned full batch
    else:
        tile = bt_tile                                     # bt_tile is 8-aligned
    bt_pad = ((bt + tile - 1) // tile) * tile
    if bt_pad != bt:
        x_btnc = jnp.pad(x_btnc, ((0, bt_pad - bt), (0, 0), (0, 0)))

    grid = (bt_pad // tile,)
    kernel = functools.partial(_graph_attention_kernel, d=d)

    out2d = pl.pallas_call(
        kernel,
        out_shape=jax.ShapeDtypeStruct((bt_pad * N, c_out), jnp.float32),
        grid_spec=pl.GridSpec(
            grid=grid,
            in_specs=[
                pl.BlockSpec((tile, N, c_in), lambda i: (i, 0, 0)),
                pl.BlockSpec((N, d), lambda i: (0, 0)),
                pl.BlockSpec((N, d), lambda i: (0, 0)),
                pl.BlockSpec((c_in, d), lambda i: (0, 0)),
                pl.BlockSpec((c_in, d), lambda i: (0, 0)),
                pl.BlockSpec((c_in, c_out), lambda i: (0, 0)),
                pl.BlockSpec((c_in, c_out), lambda i: (0, 0)),
                pl.BlockSpec((1, c_out), lambda i: (0, 0)),
            ],
            out_specs=pl.BlockSpec((tile * N, c_out), lambda i: (i, 0)),
        ),
        compiler_params=pltpu.CompilerParams(
            dimension_semantics=("parallel",),
            vmem_limit_bytes=48 * 1024 * 1024,
        ),
    )(x_btnc, eq, ek, wq_x, wk_x, wm_x, wm_y, bm)

    out = out2d.reshape(bt_pad, N, c_out)[:bt].reshape(B, T, N, c_out)
    h = jnp.transpose(out, (0, 3, 2, 1))                   # (B, c_out, N, T)
    # F.dropout: identity in eval mode.
    return h, 0


def reference_forward(x, embedding, params, *, d):
    """Pure-JAX reference mirroring the PyTorch forward (else branch)."""
    B, c_in, N, T = x.shape
    wq, bq = params["wq"].reshape(params["wq"].shape[0], -1), params["bq"]
    wk, bk = params["wk"].reshape(params["wk"].shape[0], -1), params["bk"]
    wm, bm = params["wm"].reshape(params["wm"].shape[0], -1), params["bm"]

    emb = jnp.broadcast_to(embedding, (B, T) + embedding.shape)   # repeat
    emb = jnp.transpose(emb, (0, 2, 3, 1))                        # (B, emb, N, T)
    xe = jnp.concatenate([x, emb], axis=1)                        # (B, C, N, T)

    q = jnp.einsum("bcnt,dc->bdnt", xe, wq) + bq[None, :, None, None]
    k = jnp.einsum("bcnt,dc->bdnt", xe, wk) + bk[None, :, None, None]
    q = jnp.transpose(q, (0, 3, 2, 1))                            # (B,T,N,d)
    k = jnp.transpose(k, (0, 3, 2, 1))
    att = jnp.einsum("btnd,btmd->btnm", q, k) / (d ** 0.5)
    att = jax.nn.softmax(att, axis=-1)

    xp = jnp.transpose(x, (0, 3, 1, 2))                           # (B,T,c_in,N)
    y = jnp.einsum("btcn,btnm->btcm", xp, att)
    y = jnp.transpose(y, (0, 2, 3, 1))                            # (B,c_in,N,T)

    h = jnp.concatenate([x, y], axis=1)                           # (B,2c_in,N,T)
    out = jnp.einsum("bcnt,oc->bont", h, wm) + bm[None, :, None, None]
    return out


if __name__ == "__main__":
    # Small shapes consistent with the module's forward.
    B, c_in, N, T = 2, 4, 16, 8
    emb_length, d, c_out = 8, 16, 8

    key = jax.random.PRNGKey(0)
    k0, k1, k2, k3, k4, k5, k6, k7 = jax.random.split(key, 8)

    x = jax.random.normal(k0, (B, c_in, N, T), dtype=jnp.float32)
    embedding = jax.random.normal(k1, (emb_length, N), dtype=jnp.float32)

    # Deterministic parameter init (conv1x1 weight/bias shapes from __init__).
    params = {
        "wq": 0.1 * jax.random.normal(k2, (d, c_in + emb_length, 1, 1), jnp.float32),
        "bq": 0.1 * jax.random.normal(k3, (d,), jnp.float32),
        "wk": 0.1 * jax.random.normal(k4, (d, c_in + emb_length, 1, 1), jnp.float32),
        "bk": 0.1 * jax.random.normal(k5, (d,), jnp.float32),
        "wm": 0.1 * jax.random.normal(k6, (c_out, 2 * c_in, 1, 1), jnp.float32),
        "bm": 0.1 * jax.random.normal(k7, (c_out,), jnp.float32),
    }

    h, zero = graphattention_forward(x, embedding, params, d=d)
    h = jax.block_until_ready(h)

    h_ref = reference_forward(x, embedding, params, d=d)
    assert h.shape == (B, c_out, N, T)
    assert zero == 0
    assert jnp.allclose(h, h_ref, rtol=1e-4, atol=1e-4), "mismatch vs JAX reference"

    print("KERNEL_OK")
</pallas_src>

<mosaic_0001>
module attributes {stable_mosaic.version = 11 : i64} {
  func.func @_graph_attention_kernel(%arg0: i32, %arg1: memref<16x16x4xf32, #tpu.memory_space<vmem>>, %arg2: memref<16x16xf32, #tpu.memory_space<vmem>>, %arg3: memref<16x16xf32, #tpu.memory_space<vmem>>, %arg4: memref<4x16xf32, #tpu.memory_space<vmem>>, %arg5: memref<4x16xf32, #tpu.memory_space<vmem>>, %arg6: memref<4x8xf32, #tpu.memory_space<vmem>>, %arg7: memref<4x8xf32, #tpu.memory_space<vmem>>, %arg8: memref<1x8xf32, #tpu.memory_space<vmem>>, %arg9: memref<256x8xf32, #tpu.memory_space<vmem>>) attributes {dimension_semantics = [#tpu.dimension_semantics<parallel>], iteration_bounds = array<i64: 1>, scalar_prefetch = 0 : i64, scratch_operands = 0 : i64, tpu.core_type = #tpu.core_type<tc>, window_params = [{transform_indices = @transform_0, window_bounds = array<i64: 16, 16, 4>}, {pipeline_mode = #tpu.pipeline_mode<synchronous>, transform_indices = @transform_1, window_bounds = array<i64: 16, 16>}, {pipeline_mode = #tpu.pipeline_mode<synchronous>, transform_indices = @transform_2, window_bounds = array<i64: 16, 16>}, {pipeline_mode = #tpu.pipeline_mode<synchronous>, transform_indices = @transform_3, window_bounds = array<i64: 4, 16>}, {pipeline_mode = #tpu.pipeline_mode<synchronous>, transform_indices = @transform_4, window_bounds = array<i64: 4, 16>}, {pipeline_mode = #tpu.pipeline_mode<synchronous>, transform_indices = @transform_5, window_bounds = array<i64: 4, 8>}, {pipeline_mode = #tpu.pipeline_mode<synchronous>, transform_indices = @transform_6, window_bounds = array<i64: 4, 8>}, {pipeline_mode = #tpu.pipeline_mode<synchronous>, transform_indices = @transform_7, window_bounds = array<i64: 1, 8>}, {transform_indices = @transform_8, window_bounds = array<i64: 256, 8>}]} {
    %c0 = arith.constant 0 : index
    %c0_0 = arith.constant 0 : index
    %c0_1 = arith.constant 0 : index
    %0 = vector.load %arg1[%c0, %c0_0, %c0_1] : memref<16x16x4xf32, #tpu.memory_space<vmem>>, vector<16x16x4xf32>
    %1 = vector.shape_cast %0 : vector<16x16x4xf32> to vector<256x4xf32>
    %c0_2 = arith.constant 0 : index
    %c0_3 = arith.constant 0 : index
    %2 = vector.load %arg4[%c0_2, %c0_3] : memref<4x16xf32, #tpu.memory_space<vmem>>, vector<4x16xf32>
    %cst = arith.constant dense<0.000000e+00> : vector<256x16xf32>
    %3 = tpu.matmul %1, %2, %cst {dimension_numbers = #tpu.dot_dimension_numbers<[1], [0], [0], [1], [0, 0, 1, 1], [], []>} : vector<256x4xf32>, vector<4x16xf32>, vector<256x16xf32> -> vector<256x16xf32>
    %4 = vector.shape_cast %3 : vector<256x16xf32> to vector<16x16x16xf32>
    %c0_4 = arith.constant 0 : index
    %c0_5 = arith.constant 0 : index
    %5 = vector.load %arg5[%c0_4, %c0_5] : memref<4x16xf32, #tpu.memory_space<vmem>>, vector<4x16xf32>
    %cst_6 = arith.constant dense<0.000000e+00> : vector<256x16xf32>
    %6 = tpu.matmul %1, %5, %cst_6 {dimension_numbers = #tpu.dot_dimension_numbers<[1], [0], [0], [1], [0, 0, 1, 1], [], []>} : vector<256x4xf32>, vector<4x16xf32>, vector<256x16xf32> -> vector<256x16xf32>
    %7 = vector.shape_cast %6 : vector<256x16xf32> to vector<16x16x16xf32>
    %c0_7 = arith.constant 0 : index
    %c0_8 = arith.constant 0 : index
    %8 = vector.load %arg2[%c0_7, %c0_8] : memref<16x16xf32, #tpu.memory_space<vmem>>, vector<16x16xf32>
    %9 = vector.shape_cast %8 : vector<16x16xf32> to vector<1x16x16xf32>
    %10 = vector.broadcast %9 : vector<1x16x16xf32> to vector<16x16x16xf32>
    %11 = arith.addf %4, %10 : vector<16x16x16xf32>
    %c0_9 = arith.constant 0 : index
    %c0_10 = arith.constant 0 : index
    %12 = vector.load %arg3[%c0_9, %c0_10] : memref<16x16xf32, #tpu.memory_space<vmem>>, vector<16x16xf32>
    %13 = vector.shape_cast %12 : vector<16x16xf32> to vector<1x16x16xf32>
    %14 = vector.broadcast %13 : vector<1x16x16xf32> to vector<16x16x16xf32>
    %15 = arith.addf %7, %14 : vector<16x16x16xf32>
    %cst_11 = arith.constant dense<0.000000e+00> : vector<16x16x16xf32>
    %16 = tpu.matmul %15, %11, %cst_11 {dimension_numbers = #tpu.dot_dimension_numbers<[2], [2], [1], [1], [0, 0, 0, 1, 1, 1], [0], [0]>} : vector<16x16x16xf32>, vector<16x16x16xf32>, vector<16x16x16xf32> -> vector<16x16x16xf32>
    %cst_12 = arith.constant 2.500000e-01 : f32
    %17 = vector.broadcast %cst_12 : f32 to vector<16x16x16xf32>
    %18 = arith.mulf %16, %17 : vector<16x16x16xf32>
    %cst_13 = arith.constant dense<0xFF800000> : vector<16x16xf32>
    %19 = vector.multi_reduction <maximumf>, %18, %cst_13 [1] : vector<16x16x16xf32> to vector<16x16xf32>
    %20 = vector.shape_cast %19 : vector<16x16xf32> to vector<16x1x16xf32>
    %21 = vector.broadcast %20 : vector<16x1x16xf32> to vector<16x16x16xf32>
    %22 = arith.subf %18, %21 : vector<16x16x16xf32>
    %23 = math.exp %22 : vector<16x16x16xf32>
    %cst_14 = arith.constant dense<0.000000e+00> : vector<16x16xf32>
    %24 = vector.multi_reduction <add>, %23, %cst_14 [1] : vector<16x16x16xf32> to vector<16x16xf32>
    %25 = vector.shape_cast %24 : vector<16x16xf32> to vector<16x1x16xf32>
    %26 = vector.broadcast %25 : vector<16x1x16xf32> to vector<16x16x16xf32>
    %27 = arith.divf %23, %26 : vector<16x16x16xf32>
    %cst_15 = arith.constant dense<0.000000e+00> : vector<16x16x4xf32>
    %28 = tpu.matmul %27, %0, %cst_15 {dimension_numbers = #tpu.dot_dimension_numbers<[2], [1], [1], [2], [0, 0, 0, 1, 1, 2], [0], [0]>} : vector<16x16x16xf32>, vector<16x16x4xf32>, vector<16x16x4xf32> -> vector<16x16x4xf32>
    %29 = vector.shape_cast %28 : vector<16x16x4xf32> to vector<256x4xf32>
    %c0_16 = arith.constant 0 : index
    %c0_17 = arith.constant 0 : index
    %30 = vector.load %arg6[%c0_16, %c0_17] : memref<4x8xf32, #tpu.memory_space<vmem>>, vector<4x8xf32>
    %cst_18 = arith.constant dense<0.000000e+00> : vector<256x8xf32>
    %31 = tpu.matmul %1, %30, %cst_18 {dimension_numbers = #tpu.dot_dimension_numbers<[1], [0], [0], [1], [0, 0, 1, 1], [], []>} : vector<256x4xf32>, vector<4x8xf32>, vector<256x8xf32> -> vector<256x8xf32>
    %c0_19 = arith.constant 0 : index
    %c0_20 = arith.constant 0 : index
    %32 = vector.load %arg7[%c0_19, %c0_20] : memref<4x8xf32, #tpu.memory_space<vmem>>, vector<4x8xf32>
    %cst_21 = arith.constant dense<0.000000e+00> : vector<256x8xf32>
    %33 = tpu.matmul %29, %32, %cst_21 {dimension_numbers = #tpu.dot_dimension_numbers<[1], [0], [0], [1], [0, 0, 1, 1], [], []>} : vector<256x4xf32>, vector<4x8xf32>, vector<256x8xf32> -> vector<256x8xf32>
    %34 = arith.addf %31, %33 : vector<256x8xf32>
    %c0_22 = arith.constant 0 : index
    %c0_23 = arith.constant 0 : index
    %35 = vector.load %arg8[%c0_22, %c0_23] : memref<1x8xf32, #tpu.memory_space<vmem>>, vector<1x8xf32>
    %36 = vector.broadcast %35 : vector<1x8xf32> to vector<256x8xf32>
    %37 = arith.addf %34, %36 : vector<256x8xf32>
    %c0_24 = arith.constant 0 : index
    %c0_25 = arith.constant 0 : index
    %38 = vector.load %arg9[%c0_24, %c0_25] : memref<256x8xf32, #tpu.memory_space<vmem>>, vector<256x8xf32>
    tpu.vector_store %arg9[%c0_24, %c0_25], %37 {strides = array<i32>} : memref<256x8xf32, #tpu.memory_space<vmem>>, vector<256x8xf32>,
    return
  }
  func.func @transform_0(%arg0: i32) -> (i32, i32, i32) {
    %c0_i32 = arith.constant 0 : i32
    %c0_i32_0 = arith.constant 0 : i32
    %c0_i32_1 = arith.constant 0 : i32
    return %arg0, %c0_i32, %c0_i32_0 : i32, i32, i32
  }
  func.func @transform_1(%arg0: i32) -> (i32, i32) {
    %c0_i32 = arith.constant 0 : i32
    %c0_i32_0 = arith.constant 0 : i32
    %c0_i32_1 = arith.constant 0 : i32
    return %c0_i32, %c0_i32_0 : i32, i32
  }
  func.func @transform_2(%arg0: i32) -> (i32, i32) {
    %c0_i32 = arith.constant 0 : i32
    %c0_i32_0 = arith.constant 0 : i32
    %c0_i32_1 = arith.constant 0 : i32
    return %c0_i32, %c0_i32_0 : i32, i32
  }
  func.func @transform_3(%arg0: i32) -> (i32, i32) {
    %c0_i32 = arith.constant 0 : i32
    %c0_i32_0 = arith.constant 0 : i32
    %c0_i32_1 = arith.constant 0 : i32
    return %c0_i32, %c0_i32_0 : i32, i32
  }
  func.func @transform_4(%arg0: i32) -> (i32, i32) {
    %c0_i32 = arith.constant 0 : i32
    %c0_i32_0 = arith.constant 0 : i32
    %c0_i32_1 = arith.constant 0 : i32
    return %c0_i32, %c0_i32_0 : i32, i32
  }
  func.func @transform_5(%arg0: i32) -> (i32, i32) {
    %c0_i32 = arith.constant 0 : i32
    %c0_i32_0 = arith.constant 0 : i32
    %c0_i32_1 = arith.constant 0 : i32
    return %c0_i32, %c0_i32_0 : i32, i32
  }
  func.func @transform_6(%arg0: i32) -> (i32, i32) {
    %c0_i32 = arith.constant 0 : i32
    %c0_i32_0 = arith.constant 0 : i32
    %c0_i32_1 = arith.constant 0 : i32
    return %c0_i32, %c0_i32_0 : i32, i32
  }
  func.func @transform_7(%arg0: i32) -> (i32, i32) {
    %c0_i32 = arith.constant 0 : i32
    %c0_i32_0 = arith.constant 0 : i32
    %c0_i32_1 = arith.constant 0 : i32
    return %c0_i32, %c0_i32_0 : i32, i32
  }
  func.func @transform_8(%arg0: i32) -> (i32, i32) {
    %c0_i32 = arith.constant 0 : i32
    %c0_i32_0 = arith.constant 0 : i32
    return %arg0, %c0_i32 : i32, i32
  }
}

</mosaic_0001>

<llo_original>
// kernel: tpu_custom_call.1
$region0: #{tpu_custom_call.1}
  #allocation0 [shape = 'u32[]', space=smem, size = 0x4, offset = 0x4, fixed_abs, tag = 'smem constant byte address 0x4 - core index']
  #allocation1 [shape = 'u32[144,128]{1,0:T(1,128)}', space=vmem, size = 0x12000, scoped, tag = 'internal scratch']
  %s0 = inlined_call_operand.vmem [shape: f32[16,16,4], index: 0, kind: input, shape index: {}]
  %s1 = inlined_call_operand.vmem [shape: f32[16,16], index: 1, kind: input, shape index: {}]
  %s2 = inlined_call_operand.vmem [shape: f32[16,16], index: 2, kind: input, shape index: {}]
  %s3 = inlined_call_operand.vmem [shape: f32[4,16], index: 3, kind: input, shape index: {}]
  %s4 = inlined_call_operand.vmem [shape: f32[4,16], index: 4, kind: input, shape index: {}]
  %s5 = inlined_call_operand.vmem [shape: f32[4,8], index: 5, kind: input, shape index: {}]
  %s6 = inlined_call_operand.vmem [shape: f32[4,8], index: 6, kind: input, shape index: {}]
  %s7 = inlined_call_operand.vmem [shape: f32[1,8], index: 7, kind: input, shape index: {}]
  %s8 = inlined_call_operand.vmem [shape: f32[256,8], index: 8, kind: output, shape index: {}]
  %s9 = sld [smem:[#allocation0]]
  $region42: #{tpu_custom_call.1} parent=0
    _
  %s11 = ssub.s32 1, %s9
  %s12 = scalar_select 0, %s11, %s9
  // Predicated region
  $region2: #{tpu_custom_call.1} parent=0 // pred_check
    _
  $region3: #{tpu_custom_call.1} parent=0 // pred_check_branch
    %14 = sbr.rel (0) target = $region5
  $region4: #{tpu_custom_call.1} parent=0 // pred_region
    _
  $region5: #{tpu_custom_call.1} parent=0 // pred_fallthru
    _
  // Predicated region
  $region6: #{tpu_custom_call.1} parent=0 // pred_check
    _
  $region7: #{tpu_custom_call.1} parent=0 // pred_check_branch
    %16 = sbr.rel (0) target = $region9
  $region8: #{tpu_custom_call.1} parent=0 // pred_region
    _
  $region9: #{tpu_custom_call.1} parent=0 // pred_fallthru
    _
  // Predicated region
  $region10: #{tpu_custom_call.1} parent=0 // pred_check
    _
  $region11: #{tpu_custom_call.1} parent=0 // pred_check_branch
    %18 = sbr.rel (0) target = $region13
  $region12: #{tpu_custom_call.1} parent=0 // pred_region
    _
  $region13: #{tpu_custom_call.1} parent=0 // pred_fallthru
    _
  // Predicated region
  $region14: #{tpu_custom_call.1} parent=0 // pred_check
    _
  $region15: #{tpu_custom_call.1} parent=0 // pred_check_branch
    %20 = sbr.rel (0) target = $region17
  $region16: #{tpu_custom_call.1} parent=0 // pred_region
    _
  $region17: #{tpu_custom_call.1} parent=0 // pred_fallthru
    _
  // Predicated region
  $region18: #{tpu_custom_call.1} parent=0 // pred_check
    _
  $region19: #{tpu_custom_call.1} parent=0 // pred_check_branch
    %22 = sbr.rel (0) target = $region21
  $region20: #{tpu_custom_call.1} parent=0 // pred_region
    _
  $region21: #{tpu_custom_call.1} parent=0 // pred_fallthru
    _
  // Predicated region
  $region22: #{tpu_custom_call.1} parent=0 // pred_check
    _
  $region23: #{tpu_custom_call.1} parent=0 // pred_check_branch
    %24 = sbr.rel (0) target = $region25
  $region24: #{tpu_custom_call.1} parent=0 // pred_region
    _
  $region25: #{tpu_custom_call.1} parent=0 // pred_fallthru
    _
  // Predicated region
  $region26: #{tpu_custom_call.1} parent=0 // pred_check
    _
  $region27: #{tpu_custom_call.1} parent=0 // pred_check_branch
    %26 = sbr.rel (0) target = $region29
  $region28: #{tpu_custom_call.1} parent=0 // pred_region
    _
  $region29: #{tpu_custom_call.1} parent=0 // pred_fallthru
    _
  // Predicated region
  $region30: #{tpu_custom_call.1} parent=0 // pred_check
    _
  $region31: #{tpu_custom_call.1} parent=0 // pred_check_branch
    %28 = sbr.rel (0) target = $region33
  $region32: #{tpu_custom_call.1} parent=0 // pred_region
    _
  $region33: #{tpu_custom_call.1} parent=0 // pred_fallthru
    _
  %v29 = vld [vmem:[%s0] sm:$0xff]
  %v30 = vld [vmem:[%s0 + $0x8] sm:$0xff]
  %v31 = vld [vmem:[%s0 + $0x10] sm:$0xff]
  %v32 = vld [vmem:[%s0 + $0x18] sm:$0xff]
  %v33 = vld [vmem:[%s0 + $0x20] sm:$0xff]
  %v34 = vld [vmem:[%s0 + $0x28] sm:$0xff]
  %v35 = vld [vmem:[%s0 + $0x30] sm:$0xff]
  %v36 = vld [vmem:[%s0 + $0x38] sm:$0xff]
  %v37 = vld [vmem:[%s0 + $0x40] sm:$0xff]
  %v38 = vld [vmem:[%s0 + $0x48] sm:$0xff]
  %v39 = vld [vmem:[%s0 + $0x50] sm:$0xff]
  %v40 = vld [vmem:[%s0 + $0x58] sm:$0xff]
  %v41 = vld [vmem:[%s0 + $0x60] sm:$0xff]
  %v42 = vld [vmem:[%s0 + $0x68] sm:$0xff]
  %v43 = vld [vmem:[%s0 + $0x70] sm:$0xff]
  %v44 = vld [vmem:[%s0 + $0x78] sm:$0xff]
  %v45 = vld [vmem:[%s0 + $0x80] sm:$0xff]
  %v46 = vld [vmem:[%s0 + $0x88] sm:$0xff]
  %v47 = vld [vmem:[%s0 + $0x90] sm:$0xff]
  %v48 = vld [vmem:[%s0 + $0x98] sm:$0xff]
  %v49 = vld [vmem:[%s0 + $0xa0] sm:$0xff]
  %v50 = vld [vmem:[%s0 + $0xa8] sm:$0xff]
  %v51 = vld [vmem:[%s0 + $0xb0] sm:$0xff]
  %v52 = vld [vmem:[%s0 + $0xb8] sm:$0xff]
  %v53 = vld [vmem:[%s0 + $0xc0] sm:$0xff]
  %v54 = vld [vmem:[%s0 + $0xc8] sm:$0xff]
  %v55 = vld [vmem:[%s0 + $0xd0] sm:$0xff]
  %v56 = vld [vmem:[%s0 + $0xd8] sm:$0xff]
  %v57 = vld [vmem:[%s0 + $0xe0] sm:$0xff]
  %v58 = vld [vmem:[%s0 + $0xe8] sm:$0xff]
  %v59 = vld [vmem:[%s0 + $0xf0] sm:$0xff]
  %v60 = vld [vmem:[%s0 + $0xf8] sm:$0xff]
  %v61 = vld [vmem:[%s3] sm:$0xf]
  %vm62 = vcmask 31744
  %v64 = vsel %vm62, %v29, 0
  %v67 = vsel %vm62, %v30, 0
  %v70 = vsel %vm62, %v31, 0
  %v73 = vsel %vm62, %v32, 0
  %v76 = vsel %vm62, %v33, 0
  %v79 = vsel %vm62, %v34, 0
  %v82 = vsel %vm62, %v35, 0
  %v85 = vsel %vm62, %v36, 0
  %v88 = vsel %vm62, %v37, 0
  %v91 = vsel %vm62, %v38, 0
  %v94 = vsel %vm62, %v39, 0
  %v97 = vsel %vm62, %v40, 0
  %v100 = vsel %vm62, %v41, 0
  %v103 = vsel %vm62, %v42, 0
  %v106 = vsel %vm62, %v43, 0
  %v109 = vsel %vm62, %v44, 0
  %v112 = vsel %vm62, %v45, 0
  %v115 = vsel %vm62, %v46, 0
  %v118 = vsel %vm62, %v47, 0
  %v121 = vsel %vm62, %v48, 0
  %v124 = vsel %vm62, %v49, 0
  %v127 = vsel %vm62, %v50, 0
  %v130 = vsel %vm62, %v51, 0
  %v133 = vsel %vm62, %v52, 0
  %v136 = vsel %vm62, %v53, 0
  %v139 = vsel %vm62, %v54, 0
  %v142 = vsel %vm62, %v55, 0
  %v145 = vsel %vm62, %v56, 0
  %v148 = vsel %vm62, %v57, 0
  %v151 = vsel %vm62, %v58, 0
  %v154 = vsel %vm62, %v59, 0
  %v157 = vsel %vm62, %v60, 0
  %vm159 = vcmask 1043456
  %v161 = vsel %vm159, %v61, 0
  %163 = vmatprep.subr.mxu0 0.0
  %164 = vmatpush1.msra.mxu0 %v161
  %165 = vmatprep.subr.mxu0 0.0
  %166 = vmatpush1.msra.mxu0 0.0
  %167 = vmatprep.subr.mxu0 0.0
  %168 = vmatpush1.msra.mxu0 0.0
  %169 = vmatprep.subr.mxu0 0.0
  %170 = vmatpush1.msra.mxu0 0.0
  %171 = vmatprep.subr.mxu0 0.0
  %172 = vmatpush1.msra.mxu0 0.0
  %173 = vmatprep.subr.mxu0 0.0
  %174 = vmatpush1.msra.mxu0 0.0
  %175 = vmatprep.subr.mxu0 0.0
  %176 = vmatpush1.msra.mxu0 0.0
  %177 = vmatprep.subr.mxu0 0.0
  %178 = vmatpush1.msra.mxu0 0.0
  %179 = vmatprep.subr.mxu0 0.0
  %180 = vmatpush1.msra.mxu0 0.0
  %181 = vmatprep.subr.mxu0 0.0
  %182 = vmatpush1.msra.mxu0 0.0
  %183 = vmatprep.subr.mxu0 0.0
  %184 = vmatpush1.msra.mxu0 0.0
  %185 = vmatprep.subr.mxu0 0.0
  %186 = vmatpush1.msra.mxu0 0.0
  %187 = vmatprep.subr.mxu0 0.0
  %188 = vmatpush1.msra.mxu0 0.0
  %189 = vmatprep.subr.mxu0 0.0
  %190 = vmatpush1.msra.mxu0 0.0
  %191 = vmatprep.subr.mxu0 0.0
  %192 = vmatpush1.msra.mxu0 0.0
  %193 = vmatprep.subr.mxu0 0.0
  %194 = vmatpush1.msra.mxu0 0.0
  %195 = vmatprep.subr.mxu0 0.0
  %196 = vmatpush1.msra.mxu0 0.0
  %197 = vmatprep.subr.mxu0 0.0
  %198 = vmatpush1.msra.mxu0 0.0
  %199 = vmatprep.subr.mxu0 0.0
  %200 = vmatpush1.msra.mxu0 0.0
  %201 = vmatprep.subr.mxu0 0.0
  %202 = vmatpush1.msra.mxu0 0.0
  %203 = vmatprep.subr.mxu0 0.0
  %204 = vmatpush1.msra.mxu0 0.0
  %205 = vmatprep.subr.mxu0 0.0
  %206 = vmatpush1.msra.mxu0 0.0
  %207 = vmatprep.subr.mxu0 0.0
  %208 = vmatpush1.msra.mxu0 0.0
  %209 = vmatprep.subr.mxu0 0.0
  %210 = vmatpush1.msra.mxu0 0.0
  %211 = vmatprep.subr.mxu0 0.0
  %212 = vmatpush1.msra.mxu0 0.0
  %213 = vmatprep.subr.mxu0 0.0
  %214 = vmatpush1.msra.mxu0 0.0
  %215 = vmatprep.subr.mxu0 0.0
  %216 = vmatpush1.msra.mxu0 0.0
  %217 = vmatprep.subr.mxu0 0.0
  %218 = vmatpush1.msra.mxu0 0.0
  %219 = vmatprep.subr.mxu0 0.0
  %220 = vmatpush1.msra.mxu0 0.0
  %221 = vmatprep.subr.mxu0 0.0
  %222 = vmatpush1.msra.mxu0 0.0
  %223 = vmatprep.subr.mxu0 0.0
  %224 = vmatpush1.msra.mxu0 0.0
  %225 = vmatprep.subr.mxu0 0.0
  %226 = vmatpush1.msra.mxu0 0.0
  %227 = vmatprep.mubr.f32.mxu0 0.0
  %228 = vmatmul.mubr.f32.gmra.mrb[0].mxu0 %v64
  %v229 = vpop.f32.mrb[0].mxu0
  %v230 = vadd.f32 0.0, %v229
  %v231 = vpop.f32.mrb[0].mxu0
  %232 = vmatprep.mubr.f32.mxu0 0.0
  %233 = vmatmul.mubr.f32.gmra.mrb[0].mxu0 %v67
  %v234 = vpop.f32.mrb[0].mxu0
  %v235 = vadd.f32 0.0, %v234
  %v236 = vpop.f32.mrb[0].mxu0
  %237 = vmatprep.mubr.f32.mxu0 0.0
  %238 = vmatmul.mubr.f32.gmra.mrb[0].mxu0 %v70
  %v239 = vpop.f32.mrb[0].mxu0
  %v240 = vadd.f32 0.0, %v239
  %v241 = vpop.f32.mrb[0].mxu0
  %242 = vmatprep.mubr.f32.mxu0 0.0
  %243 = vmatmul.mubr.f32.gmra.mrb[0].mxu0 %v73
  %v244 = vpop.f32.mrb[0].mxu0
  %v245 = vadd.f32 0.0, %v244
  %v246 = vpop.f32.mrb[0].mxu0
  %247 = vmatprep.mubr.f32.mxu0 0.0
  %248 = vmatmul.mubr.f32.gmra.mrb[0].mxu0 %v76
  %v249 = vpop.f32.mrb[0].mxu0
  %v250 = vadd.f32 0.0, %v249
  %v251 = vpop.f32.mrb[0].mxu0
  %252 = vmatprep.mubr.f32.mxu0 0.0
  %253 = vmatmul.mubr.f32.gmra.mrb[0].mxu0 %v79
  %v254 = vpop.f32.mrb[0].mxu0
  %v255 = vadd.f32 0.0, %v254
  %v256 = vpop.f32.mrb[0].mxu0
  %257 = vmatprep.mubr.f32.mxu0 0.0
  %258 = vmatmul.mubr.f32.gmra.mrb[0].mxu0 %v82
  %v259 = vpop.f32.mrb[0].mxu0
  %v260 = vadd.f32 0.0, %v259
  %v261 = vpop.f32.mrb[0].mxu0
  %262 = vmatprep.mubr.f32.mxu0 0.0
  %263 = vmatmul.mubr.f32.gmra.mrb[0].mxu0 %v85
  %v264 = vpop.f32.mrb[0].mxu0
  %v265 = vadd.f32 0.0, %v264
  %v266 = vpop.f32.mrb[0].mxu0
  %267 = vmatprep.mubr.f32.mxu0 0.0
  %268 = vmatmul.mubr.f32.gmra.mrb[0].mxu0 %v88
  %v269 = vpop.f32.mrb[0].mxu0
  %v270 = vadd.f32 0.0, %v269
  %v271 = vpop.f32.mrb[0].mxu0
  %272 = vmatprep.mubr.f32.mxu0 0.0
  %273 = vmatmul.mubr.f32.gmra.mrb[0].mxu0 %v91
  %v274 = vpop.f32.mrb[0].mxu0
  %v275 = vadd.f32 0.0, %v274
  %v276 = vpop.f32.mrb[0].mxu0
  %277 = vmatprep.mubr.f32.mxu0 0.0
  %278 = vmatmul.mubr.f32.gmra.mrb[0].mxu0 %v94
  %v279 = vpop.f32.mrb[0].mxu0
  %v280 = vadd.f32 0.0, %v279
  %v281 = vpop.f32.mrb[0].mxu0
  %282 = vmatprep.mubr.f32.mxu0 0.0
  %283 = vmatmul.mubr.f32.gmra.mrb[0].mxu0 %v97
  %v284 = vpop.f32.mrb[0].mxu0
  %v285 = vadd.f32 0.0, %v284
  %v286 = vpop.f32.mrb[0].mxu0
  %287 = vmatprep.mubr.f32.mxu0 0.0
  %288 = vmatmul.mubr.f32.gmra.mrb[0].mxu0 %v100
  %v289 = vpop.f32.mrb[0].mxu0
  %v290 = vadd.f32 0.0, %v289
  %v291 = vpop.f32.mrb[0].mxu0
  %292 = vmatprep.mubr.f32.mxu0 0.0
  %293 = vmatmul.mubr.f32.gmra.mrb[0].mxu0 %v103
  %v294 = vpop.f32.mrb[0].mxu0
  %v295 = vadd.f32 0.0, %v294
  %v296 = vpop.f32.mrb[0].mxu0
  %297 = vmatprep.mubr.f32.mxu0 0.0
  %298 = vmatmul.mubr.f32.gmra.mrb[0].mxu0 %v106
  %v299 = vpop.f32.mrb[0].mxu0
  %v300 = vadd.f32 0.0, %v299
  %v301 = vpop.f32.mrb[0].mxu0
  %302 = vmatprep.mubr.f32.mxu0 0.0
  %303 = vmatmul.mubr.f32.gmra.mrb[0].mxu0 %v109
  %v304 = vpop.f32.mrb[0].mxu0
  %v305 = vadd.f32 0.0, %v304
  %v306 = vpop.f32.mrb[0].mxu0
  %307 = vmatprep.mubr.f32.mxu0 0.0
  %308 = vmatmul.mubr.f32.gmra.mrb[0].mxu0 %v112
  %v309 = vpop.f32.mrb[0].mxu0
  %v310 = vadd.f32 0.0, %v309
  %v311 = vpop.f32.mrb[0].mxu0
  %312 = vmatprep.mubr.f32.mxu0 0.0
  %313 = vmatmul.mubr.f32.gmra.mrb[0].mxu0 %v115
  %v314 = vpop.f32.mrb[0].mxu0
  %v315 = vadd.f32 0.0, %v314
  %v316 = vpop.f32.mrb[0].mxu0
  %317 = vmatprep.mubr.f32.mxu0 0.0
  %318 = vmatmul.mubr.f32.gmra.mrb[0].mxu0 %v118
  %v319 = vpop.f32.mrb[0].mxu0
  %v320 = vadd.f32 0.0, %v319
  %v321 = vpop.f32.mrb[0].mxu0
  %322 = vmatprep.mubr.f32.mxu0 0.0
  %323 = vmatmul.mubr.f32.gmra.mrb[0].mxu0 %v121
  %v324 = vpop.f32.mrb[0].mxu0
  %v325 = vadd.f32 0.0, %v324
  %v326 = vpop.f32.mrb[0].mxu0
  %327 = vmatprep.mubr.f32.mxu0 0.0
  %328 = vmatmul.mubr.f32.gmra.mrb[0].mxu0 %v124
  %v329 = vpop.f32.mrb[0].mxu0
  %v330 = vadd.f32 0.0, %v329
  %v331 = vpop.f32.mrb[0].mxu0
  %332 = vmatprep.mubr.f32.mxu0 0.0
  %333 = vmatmul.mubr.f32.gmra.mrb[0].mxu0 %v127
  %v334 = vpop.f32.mrb[0].mxu0
  %v335 = vadd.f32 0.0, %v334
  %v336 = vpop.f32.mrb[0].mxu0
  %337 = vmatprep.mubr.f32.mxu0 0.0
  %338 = vmatmul.mubr.f32.gmra.mrb[0].mxu0 %v130
  %v339 = vpop.f32.mrb[0].mxu0
  %v340 = vadd.f32 0.0, %v339
  %v341 = vpop.f32.mrb[0].mxu0
  %342 = vmatprep.mubr.f32.mxu0 0.0
  %343 = vmatmul.mubr.f32.gmra.mrb[0].mxu0 %v133
  %v344 = vpop.f32.mrb[0].mxu0
  %v345 = vadd.f32 0.0, %v344
  %v346 = vpop.f32.mrb[0].mxu0
  %347 = vmatprep.mubr.f32.mxu0 0.0
  %348 = vmatmul.mubr.f32.gmra.mrb[0].mxu0 %v136
  %v349 = vpop.f32.mrb[0].mxu0
  %v350 = vadd.f32 0.0, %v349
  %v351 = vpop.f32.mrb[0].mxu0
  %352 = vmatprep.mubr.f32.mxu0 0.0
  %353 = vmatmul.mubr.f32.gmra.mrb[0].mxu0 %v139
  %v354 = vpop.f32.mrb[0].mxu0
  %v355 = vadd.f32 0.0, %v354
  %v356 = vpop.f32.mrb[0].mxu0
  %357 = vmatprep.mubr.f32.mxu0 0.0
  %358 = vmatmul.mubr.f32.gmra.mrb[0].mxu0 %v142
  %v359 = vpop.f32.mrb[0].mxu0
  %v360 = vadd.f32 0.0, %v359
  %v361 = vpop.f32.mrb[0].mxu0
  %362 = vmatprep.mubr.f32.mxu0 0.0
  %363 = vmatmul.mubr.f32.gmra.mrb[0].mxu0 %v145
  %v364 = vpop.f32.mrb[0].mxu0
  %v365 = vadd.f32 0.0, %v364
  %v366 = vpop.f32.mrb[0].mxu0
  %367 = vmatprep.mubr.f32.mxu0 0.0
  %368 = vmatmul.mubr.f32.gmra.mrb[0].mxu0 %v148
  %v369 = vpop.f32.mrb[0].mxu0
  %v370 = vadd.f32 0.0, %v369
  %v371 = vpop.f32.mrb[0].mxu0
  %372 = vmatprep.mubr.f32.mxu0 0.0
  %373 = vmatmul.mubr.f32.gmra.mrb[0].mxu0 %v151
  %v374 = vpop.f32.mrb[0].mxu0
  %v375 = vadd.f32 0.0, %v374
  %v376 = vpop.f32.mrb[0].mxu0
  %377 = vmatprep.mubr.f32.mxu0 0.0
  %378 = vmatmul.mubr.f32.gmra.mrb[0].mxu0 %v154
  %v379 = vpop.f32.mrb[0].mxu0
  %v380 = vadd.f32 0.0, %v379
  %v381 = vpop.f32.mrb[0].mxu0
  %382 = vmatprep.mubr.f32.mxu0 0.0
  %383 = vmatmul.mubr.f32.gmra.mrb[0].mxu0 %v157
  %v384 = vpop.f32.mrb[0].mxu0
  %v385 = vadd.f32 0.0, %v384
  %v386 = vpop.f32.mrb[0].mxu0
  %387 = vdwg.mxu0
  %v388 = vld [vmem:[%s4] sm:$0xf]
  %v390 = vsel %vm159, %v388, 0
  %392 = vmatprep.subr.mxu0 0.0
  %393 = vmatpush1.msra.mxu0 %v390
  %394 = vmatprep.subr.mxu0 0.0
  %395 = vmatpush1.msra.mxu0 0.0
  %396 = vmatprep.subr.mxu0 0.0
  %397 = vmatpush1.msra.mxu0 0.0
  %398 = vmatprep.subr.mxu0 0.0
  %399 = vmatpush1.msra.mxu0 0.0
  %400 = vmatprep.subr.mxu0 0.0
  %401 = vmatpush1.msra.mxu0 0.0
  %402 = vmatprep.subr.mxu0 0.0
  %403 = vmatpush1.msra.mxu0 0.0
  %404 = vmatprep.subr.mxu0 0.0
  %405 = vmatpush1.msra.mxu0 0.0
  %406 = vmatprep.subr.mxu0 0.0
  %407 = vmatpush1.msra.mxu0 0.0
  %408 = vmatprep.subr.mxu0 0.0
  %409 = vmatpush1.msra.mxu0 0.0
  %410 = vmatprep.subr.mxu0 0.0
  %411 = vmatpush1.msra.mxu0 0.0
  %412 = vmatprep.subr.mxu0 0.0
  %413 = vmatpush1.msra.mxu0 0.0
  %414 = vmatprep.subr.mxu0 0.0
  %415 = vmatpush1.msra.mxu0 0.0
  %416 = vmatprep.subr.mxu0 0.0
  %417 = vmatpush1.msra.mxu0 0.0
  %418 = vmatprep.subr.mxu0 0.0
  %419 = vmatpush1.msra.mxu0 0.0
  %420 = vmatprep.subr.mxu0 0.0
  %421 = vmatpush1.msra.mxu0 0.0
  %422 = vmatprep.subr.mxu0 0.0
  %423 = vmatpush1.msra.mxu0 0.0
  %424 = vmatprep.subr.mxu0 0.0
  %425 = vmatpush1.msra.mxu0 0.0
  %426 = vmatprep.subr.mxu0 0.0
  %427 = vmatpush1.msra.mxu0 0.0
  %428 = vmatprep.subr.mxu0 0.0
  %429 = vmatpush1.msra.mxu0 0.0
  %430 = vmatprep.subr.mxu0 0.0
  %431 = vmatpush1.msra.mxu0 0.0
  %432 = vmatprep.subr.mxu0 0.0
  %433 = vmatpush1.msra.mxu0 0.0
  %434 = vmatprep.subr.mxu0 0.0
  %435 = vmatpush1.msra.mxu0 0.0
  %436 = vmatprep.subr.mxu0 0.0
  %437 = vmatpush1.msra.mxu0 0.0
  %438 = vmatprep.subr.mxu0 0.0
  %439 = vmatpush1.msra.mxu0 0.0
  %440 = vmatprep.subr.mxu0 0.0
  %441 = vmatpush1.msra.mxu0 0.0
  %442 = vmatprep.subr.mxu0 0.0
  %443 = vmatpush1.msra.mxu0 0.0
  %444 = vmatprep.subr.mxu0 0.0
  %445 = vmatpush1.msra.mxu0 0.0
  %446 = vmatprep.subr.mxu0 0.0
  %447 = vmatpush1.msra.mxu0 0.0
  %448 = vmatprep.subr.mxu0 0.0
  %449 = vmatpush1.msra.mxu0 0.0
  %450 = vmatprep.subr.mxu0 0.0
  %451 = vmatpush1.msra.mxu0 0.0
  %452 = vmatprep.subr.mxu0 0.0
  %453 = vmatpush1.msra.mxu0 0.0
  %454 = vmatprep.subr.mxu0 0.0
  %455 = vmatpush1.msra.mxu0 0.0
  %456 = vmatprep.mubr.f32.mxu0 0.0
  %457 = vmatmul.mubr.f32.gmra.mrb[0].mxu0 %v64
  %v458 = vpop.f32.mrb[0].mxu0
  %v459 = vadd.f32 0.0, %v458
  %v460 = vpop.f32.mrb[0].mxu0
  %461 = vmatprep.mubr.f32.mxu0 0.0
  %462 = vmatmul.mubr.f32.gmra.mrb[0].mxu0 %v67
  %v463 = vpop.f32.mrb[0].mxu0
  %v464 = vadd.f32 0.0, %v463
  %v465 = vpop.f32.mrb[0].mxu0
  %466 = vmatprep.mubr.f32.mxu0 0.0
  %467 = vmatmul.mubr.f32.gmra.mrb[0].mxu0 %v70
  %v468 = vpop.f32.mrb[0].mxu0
  %v469 = vadd.f32 0.0, %v468
  %v470 = vpop.f32.mrb[0].mxu0
  %471 = vmatprep.mubr.f32.mxu0 0.0
  %472 = vmatmul.mubr.f32.gmra.mrb[0].mxu0 %v73
  %v473 = vpop.f32.mrb[0].mxu0
  %v474 = vadd.f32 0.0, %v473
  %v475 = vpop.f32.mrb[0].mxu0
  %476 = vmatprep.mubr.f32.mxu0 0.0
  %477 = vmatmul.mubr.f32.gmra.mrb[0].mxu0 %v76
  %v478 = vpop.f32.mrb[0].mxu0
  %v479 = vadd.f32 0.0, %v478
  %v480 = vpop.f32.mrb[0].mxu0
  %481 = vmatprep.mubr.f32.mxu0 0.0
  %482 = vmatmul.mubr.f32.gmra.mrb[0].mxu0 %v79
  %v483 = vpop.f32.mrb[0].mxu0
  %v484 = vadd.f32 0.0, %v483
  %v485 = vpop.f32.mrb[0].mxu0
  %486 = vmatprep.mubr.f32.mxu0 0.0
  %487 = vmatmul.mubr.f32.gmra.mrb[0].mxu0 %v82
  %v488 = vpop.f32.mrb[0].mxu0
  %v489 = vadd.f32 0.0, %v488
  %v490 = vpop.f32.mrb[0].mxu0
  %491 = vmatprep.mubr.f32.mxu0 0.0
  %492 = vmatmul.mubr.f32.gmra.mrb[0].mxu0 %v85
  %v493 = vpop.f32.mrb[0].mxu0
  %v494 = vadd.f32 0.0, %v493
  %v495 = vpop.f32.mrb[0].mxu0
  %496 = vmatprep.mubr.f32.mxu0 0.0
  %497 = vmatmul.mubr.f32.gmra.mrb[0].mxu0 %v88
  %v498 = vpop.f32.mrb[0].mxu0
  %v499 = vadd.f32 0.0, %v498
  %v500 = vpop.f32.mrb[0].mxu0
  %501 = vmatprep.mubr.f32.mxu0 0.0
  %502 = vmatmul.mubr.f32.gmra.mrb[0].mxu0 %v91
  %v503 = vpop.f32.mrb[0].mxu0
  %v504 = vadd.f32 0.0, %v503
  %v505 = vpop.f32.mrb[0].mxu0
  %506 = vmatprep.mubr.f32.mxu0 0.0
  %507 = vmatmul.mubr.f32.gmra.mrb[0].mxu0 %v94
  %v508 = vpop.f32.mrb[0].mxu0
  %v509 = vadd.f32 0.0, %v508
  %v510 = vpop.f32.mrb[0].mxu0
  %511 = vmatprep.mubr.f32.mxu0 0.0
  %512 = vmatmul.mubr.f32.gmra.mrb[0].mxu0 %v97
  %v513 = vpop.f32.mrb[0].mxu0
  %v514 = vadd.f32 0.0, %v513
  %v515 = vpop.f32.mrb[0].mxu0
  %516 = vmatprep.mubr.f32.mxu0 0.0
  %517 = vmatmul.mubr.f32.gmra.mrb[0].mxu0 %v100
  %v518 = vpop.f32.mrb[0].mxu0
  %v519 = vadd.f32 0.0, %v518
  %v520 = vpop.f32.mrb[0].mxu0
  %521 = vmatprep.mubr.f32.mxu0 0.0
  %522 = vmatmul.mubr.f32.gmra.mrb[0].mxu0 %v103
  %v523 = vpop.f32.mrb[0].mxu0
  %v524 = vadd.f32 0.0, %v523
  %v525 = vpop.f32.mrb[0].mxu0
  %526 = vmatprep.mubr.f32.mxu0 0.0
  %527 = vmatmul.mubr.f32.gmra.mrb[0].mxu0 %v106
  %v528 = vpop.f32.mrb[0].mxu0
  %v529 = vadd.f32 0.0, %v528
  %v530 = vpop.f32.mrb[0].mxu0
  %531 = vmatprep.mubr.f32.mxu0 0.0
  %532 = vmatmul.mubr.f32.gmra.mrb[0].mxu0 %v109
  %v533 = vpop.f32.mrb[0].mxu0
  %v534 = vadd.f32 0.0, %v533
  %v535 = vpop.f32.mrb[0].mxu0
  %536 = vmatprep.mubr.f32.mxu0 0.0
  %537 = vmatmul.mubr.f32.gmra.mrb[0].mxu0 %v112
  %v538 = vpop.f32.mrb[0].mxu0
  %v539 = vadd.f32 0.0, %v538
  %v540 = vpop.f32.mrb[0].mxu0
  %541 = vmatprep.mubr.f32.mxu0 0.0
  %542 = vmatmul.mubr.f32.gmra.mrb[0].mxu0 %v115
  %v543 = vpop.f32.mrb[0].mxu0
  %v544 = vadd.f32 0.0, %v543
  %v545 = vpop.f32.mrb[0].mxu0
  %546 = vmatprep.mubr.f32.mxu0 0.0
  %547 = vmatmul.mubr.f32.gmra.mrb[0].mxu0 %v118
  %v548 = vpop.f32.mrb[0].mxu0
  %v549 = vadd.f32 0.0, %v548
  %v550 = vpop.f32.mrb[0].mxu0
  %551 = vmatprep.mubr.f32.mxu0 0.0
  %552 = vmatmul.mubr.f32.gmra.mrb[0].mxu0 %v121
  %v553 = vpop.f32.mrb[0].mxu0
  %v554 = vadd.f32 0.0, %v553
  %v555 = vpop.f32.mrb[0].mxu0
  %556 = vmatprep.mubr.f32.mxu0 0.0
  %557 = vmatmul.mubr.f32.gmra.mrb[0].mxu0 %v124
  %v558 = vpop.f32.mrb[0].mxu0
  %v559 = vadd.f32 0.0, %v558
  %v560 = vpop.f32.mrb[0].mxu0
  %561 = vmatprep.mubr.f32.mxu0 0.0
  %562 = vmatmul.mubr.f32.gmra.mrb[0].mxu0 %v127
  %v563 = vpop.f32.mrb[0].mxu0
  %v564 = vadd.f32 0.0, %v563
  %v565 = vpop.f32.mrb[0].mxu0
  %566 = vmatprep.mubr.f32.mxu0 0.0
  %567 = vmatmul.mubr.f32.gmra.mrb[0].mxu0 %v130
  %v568 = vpop.f32.mrb[0].mxu0
  %v569 = vadd.f32 0.0, %v568
  %v570 = vpop.f32.mrb[0].mxu0
  %571 = vmatprep.mubr.f32.mxu0 0.0
  %572 = vmatmul.mubr.f32.gmra.mrb[0].mxu0 %v133
  %v573 = vpop.f32.mrb[0].mxu0
  %v574 = vadd.f32 0.0, %v573
  %v575 = vpop.f32.mrb[0].mxu0
  %576 = vmatprep.mubr.f32.mxu0 0.0
  %577 = vmatmul.mubr.f32.gmra.mrb[0].mxu0 %v136
  %v578 = vpop.f32.mrb[0].mxu0
  %v579 = vadd.f32 0.0, %v578
  %v580 = vpop.f32.mrb[0].mxu0
  %581 = vmatprep.mubr.f32.mxu0 0.0
  %582 = vmatmul.mubr.f32.gmra.mrb[0].mxu0 %v139
  %v583 = vpop.f32.mrb[0].mxu0
  %v584 = vadd.f32 0.0, %v583
  %v585 = vpop.f32.mrb[0].mxu0
  %586 = vmatprep.mubr.f32.mxu0 0.0
  %587 = vmatmul.mubr.f32.gmra.mrb[0].mxu0 %v142
  %v588 = vpop.f32.mrb[0].mxu0
  %v589 = vadd.f32 0.0, %v588
  %v590 = vpop.f32.mrb[0].mxu0
  %591 = vmatprep.mubr.f32.mxu0 0.0
  %592 = vmatmul.mubr.f32.gmra.mrb[0].mxu0 %v145
  %v593 = vpop.f32.mrb[0].mxu0
  %v594 = vadd.f32 0.0, %v593
  %v595 = vpop.f32.mrb[0].mxu0
  %596 = vmatprep.mubr.f32.mxu0 0.0
  %597 = vmatmul.mubr.f32.gmra.mrb[0].mxu0 %v148
  %v598 = vpop.f32.mrb[0].mxu0
  %v599 = vadd.f32 0.0, %v598
  %v600 = vpop.f32.mrb[0].mxu0
  %601 = vmatprep.mubr.f32.mxu0 0.0
  %602 = vmatmul.mubr.f32.gmra.mrb[0].mxu0 %v151
  %v603 = vpop.f32.mrb[0].mxu0
  %v604 = vadd.f32 0.0, %v603
  %v605 = vpop.f32.mrb[0].mxu0
  %606 = vmatprep.mubr.f32.mxu0 0.0
  %607 = vmatmul.mubr.f32.gmra.mrb[0].mxu0 %v154
  %v608 = vpop.f32.mrb[0].mxu0
  %v609 = vadd.f32 0.0, %v608
  %v610 = vpop.f32.mrb[0].mxu0
  %611 = vmatprep.mubr.f32.mxu0 0.0
  %612 = vmatmul.mubr.f32.gmra.mrb[0].mxu0 %v157
  %v613 = vpop.f32.mrb[0].mxu0
  %v614 = vadd.f32 0.0, %v613
  %v615 = vpop.f32.mrb[0].mxu0
  %616 = vdwg.mxu0
  %v617 = vld [vmem:[%s1] sm:$0xff]
  %v618 = vld [vmem:[%s1 + $0x8] sm:$0xff]
  %v619 = vadd.f32 %v230, %v617
  %v620 = vadd.f32 %v235, %v618
  %v621 = vadd.f32 %v240, %v617
  %v622 = vadd.f32 %v245, %v618
  %v623 = vadd.f32 %v250, %v617
  %v624 = vadd.f32 %v255, %v618
  %v625 = vadd.f32 %v260, %v617
  %v626 = vadd.f32 %v265, %v618
  %v627 = vadd.f32 %v270, %v617
  %v628 = vadd.f32 %v275, %v618
  %v629 = vadd.f32 %v280, %v617
  %v630 = vadd.f32 %v285, %v618
  %v631 = vadd.f32 %v290, %v617
  %v632 = vadd.f32 %v295, %v618
  %v633 = vadd.f32 %v300, %v617
  %v634 = vadd.f32 %v305, %v618
  %v635 = vadd.f32 %v310, %v617
  %v636 = vadd.f32 %v315, %v618
  %v637 = vadd.f32 %v320, %v617
  %v638 = vadd.f32 %v325, %v618
  %v639 = vadd.f32 %v330, %v617
  %v640 = vadd.f32 %v335, %v618
  %v641 = vadd.f32 %v340, %v617
  %v642 = vadd.f32 %v345, %v618
  %v643 = vadd.f32 %v350, %v617
  %v644 = vadd.f32 %v355, %v618
  %v645 = vadd.f32 %v360, %v617
  %v646 = vadd.f32 %v365, %v618
  %v647 = vadd.f32 %v370, %v617
  %v648 = vadd.f32 %v375, %v618
  %v649 = vadd.f32 %v380, %v617
  %v650 = vadd.f32 %v385, %v618
  %v651 = vld [vmem:[%s2] sm:$0xff]
  %v652 = vld [vmem:[%s2 + $0x8] sm:$0xff]
  %v653 = vadd.f32 %v459, %v651
  %v654 = vadd.f32 %v464, %v652
  %v655 = vadd.f32 %v469, %v651
  %v656 = vadd.f32 %v474, %v652
  %v657 = vadd.f32 %v479, %v651
  %v658 = vadd.f32 %v484, %v652
  %v659 = vadd.f32 %v489, %v651
  %v660 = vadd.f32 %v494, %v652
  %v661 = vadd.f32 %v499, %v651
  %v662 = vadd.f32 %v504, %v652
  %v663 = vadd.f32 %v509, %v651
  %v664 = vadd.f32 %v514, %v652
  %v665 = vadd.f32 %v519, %v651
  %v666 = vadd.f32 %v524, %v652
  %v667 = vadd.f32 %v529, %v651
  %v668 = vadd.f32 %v534, %v652
  %v669 = vadd.f32 %v539, %v651
  %v670 = vadd.f32 %v544, %v652
  %v671 = vadd.f32 %v549, %v651
  %v672 = vadd.f32 %v554, %v652
  %v673 = vadd.f32 %v559, %v651
  %v674 = vadd.f32 %v564, %v652
  %v675 = vadd.f32 %v569, %v651
  %v676 = vadd.f32 %v574, %v652
  %v677 = vadd.f32 %v579, %v651
  %v678 = vadd.f32 %v584, %v652
  %v679 = vadd.f32 %v589, %v651
  %v680 = vadd.f32 %v594, %v652
  %v681 = vadd.f32 %v599, %v651
  %v682 = vadd.f32 %v604, %v652
  %v683 = vadd.f32 %v609, %v651
  %v684 = vadd.f32 %v614, %v652
  %vm685 = vcmask 130048
  %v687 = vsel %vm685, %v653, 0
  %v690 = vsel %vm685, %v654, 0
  %v693 = vsel %vm685, %v619, 0
  %v696 = vsel %vm685, %v620, 0
  %698 = vmatprep.subr.mxu0 0.0
  %699 = vmatpush1.xpose.msra.mxu0 %v693
  %700 = vmatprep.subr.mxu0 0.0
  %701 = vmatpush1.xpose.msra.mxu0 %v696
  %702 = vmatprep.subr.mxu0 0.0
  %703 = vmatpush1.xpose.msra.mxu0 0.0
  %704 = vmatprep.subr.mxu0 0.0
  %705 = vmatpush1.xpose.msra.mxu0 0.0
  %706 = vmatprep.subr.mxu0 0.0
  %707 = vmatpush1.xpose.msra.mxu0 0.0
  %708 = vmatprep.subr.mxu0 0.0
  %709 = vmatpush1.xpose.msra.mxu0 0.0
  %710 = vmatprep.subr.mxu0 0.0
  %711 = vmatpush1.xpose.msra.mxu0 0.0
  %712 = vmatprep.subr.mxu0 0.0
  %713 = vmatpush1.xpose.msra.mxu0 0.0
  %714 = vmatprep.subr.mxu0 0.0
  %715 = vmatpush1.xpose.msra.mxu0 0.0
  %716 = vmatprep.subr.mxu0 0.0
  %717 = vmatpush1.xpose.msra.mxu0 0.0
  %718 = vmatprep.subr.mxu0 0.0
  %719 = vmatpush1.xpose.msra.mxu0 0.0
  %720 = vmatprep.subr.mxu0 0.0
  %721 = vmatpush1.xpose.msra.mxu0 0.0
  %722 = vmatprep.subr.mxu0 0.0
  %723 = vmatpush1.xpose.msra.mxu0 0.0
  %724 = vmatprep.subr.mxu0 0.0
  %725 = vmatpush1.xpose.msra.mxu0 0.0
  %726 = vmatprep.subr.mxu0 0.0
  %727 = vmatpush1.xpose.msra.mxu0 0.0
  %728 = vmatprep.subr.mxu0 0.0
  %729 = vmatpush1.xpose.msra.mxu0 0.0
  %730 = vmatprep.subr.mxu0 0.0
  %731 = vmatpush1.xpose.msra.mxu0 0.0
  %732 = vmatprep.subr.mxu0 0.0
  %733 = vmatpush1.xpose.msra.mxu0 0.0
  %734 = vmatprep.subr.mxu0 0.0
  %735 = vmatpush1.xpose.msra.mxu0 0.0
  %736 = vmatprep.subr.mxu0 0.0
  %737 = vmatpush1.xpose.msra.mxu0 0.0
  %738 = vmatprep.subr.mxu0 0.0
  %739 = vmatpush1.xpose.msra.mxu0 0.0
  %740 = vmatprep.subr.mxu0 0.0
  %741 = vmatpush1.xpose.msra.mxu0 0.0
  %742 = vmatprep.subr.mxu0 0.0
  %743 = vmatpush1.xpose.msra.mxu0 0.0
  %744 = vmatprep.subr.mxu0 0.0
  %745 = vmatpush1.xpose.msra.mxu0 0.0
  %746 = vmatprep.subr.mxu0 0.0
  %747 = vmatpush1.xpose.msra.mxu0 0.0
  %748 = vmatprep.subr.mxu0 0.0
  %749 = vmatpush1.xpose.msra.mxu0 0.0
  %750 = vmatprep.subr.mxu0 0.0
  %751 = vmatpush1.xpose.msra.mxu0 0.0
  %752 = vmatprep.subr.mxu0 0.0
  %753 = vmatpush1.xpose.msra.mxu0 0.0
  %754 = vmatprep.subr.mxu0 0.0
  %755 = vmatpush1.xpose.msra.mxu0 0.0
  %756 = vmatprep.subr.mxu0 0.0
  %757 = vmatpush1.xpose.msra.mxu0 0.0
  %758 = vmatprep.subr.mxu0 0.0
  %759 = vmatpush1.xpose.msra.mxu0 0.0
  %760 = vmatprep.subr.mxu0 0.0
  %761 = vmatpush1.xpose.msra.mxu0 0.0
  %762 = vmatprep.mubr.f32.mxu0 0.0
  %763 = vmatmul.mubr.f32.gmra.mrb[0].mxu0 %v687
  %v764 = vpop.f32.mrb[0].mxu0
  %v765 = vadd.f32 0.0, %v764
  %v766 = vpop.f32.mrb[0].mxu0
  %767 = vmatprep.mubr.f32.mxu0 0.0
  %768 = vmatmul.mubr.f32.gmra.mrb[0].mxu0 %v690
  %v769 = vpop.f32.mrb[0].mxu0
  %v770 = vadd.f32 0.0, %v769
  %v771 = vpop.f32.mrb[0].mxu0
  %772 = vdwg.mxu0
  %v774 = vsel %vm685, %v655, 0
  %v777 = vsel %vm685, %v656, 0
  %v780 = vsel %vm685, %v621, 0
  %v783 = vsel %vm685, %v622, 0
  %785 = vmatprep.subr.mxu0 0.0
  %786 = vmatpush1.xpose.msra.mxu0 %v780
  %787 = vmatprep.subr.mxu0 0.0
  %788 = vmatpush1.xpose.msra.mxu0 %v783
  %789 = vmatprep.subr.mxu0 0.0
  %790 = vmatpush1.xpose.msra.mxu0 0.0
  %791 = vmatprep.subr.mxu0 0.0
  %792 = vmatpush1.xpose.msra.mxu0 0.0
  %793 = vmatprep.subr.mxu0 0.0
  %794 = vmatpush1.xpose.msra.mxu0 0.0
  %795 = vmatprep.subr.mxu0 0.0
  %796 = vmatpush1.xpose.msra.mxu0 0.0
  %797 = vmatprep.subr.mxu0 0.0
  %798 = vmatpush1.xpose.msra.mxu0 0.0
  %799 = vmatprep.subr.mxu0 0.0
  %800 = vmatpush1.xpose.msra.mxu0 0.0
  %801 = vmatprep.subr.mxu0 0.0
  %802 = vmatpush1.xpose.msra.mxu0 0.0
  %803 = vmatprep.subr.mxu0 0.0
  %804 = vmatpush1.xpose.msra.mxu0 0.0
  %805 = vmatprep.subr.mxu0 0.0
  %806 = vmatpush1.xpose.msra.mxu0 0.0
  %807 = vmatprep.subr.mxu0 0.0
  %808 = vmatpush1.xpose.msra.mxu0 0.0
  %809 = vmatprep.subr.mxu0 0.0
  %810 = vmatpush1.xpose.msra.mxu0 0.0
  %811 = vmatprep.subr.mxu0 0.0
  %812 = vmatpush1.xpose.msra.mxu0 0.0
  %813 = vmatprep.subr.mxu0 0.0
  %814 = vmatpush1.xpose.msra.mxu0 0.0
  %815 = vmatprep.subr.mxu0 0.0
  %816 = vmatpush1.xpose.msra.mxu0 0.0
  %817 = vmatprep.subr.mxu0 0.0
  %818 = vmatpush1.xpose.msra.mxu0 0.0
  %819 = vmatprep.subr.mxu0 0.0
  %820 = vmatpush1.xpose.msra.mxu0 0.0
  %821 = vmatprep.subr.mxu0 0.0
  %822 = vmatpush1.xpose.msra.mxu0 0.0
  %823 = vmatprep.subr.mxu0 0.0
  %824 = vmatpush1.xpose.msra.mxu0 0.0
  %825 = vmatprep.subr.mxu0 0.0
  %826 = vmatpush1.xpose.msra.mxu0 0.0
  %827 = vmatprep.subr.mxu0 0.0
  %828 = vmatpush1.xpose.msra.mxu0 0.0
  %829 = vmatprep.subr.mxu0 0.0
  %830 = vmatpush1.xpose.msra.mxu0 0.0
  %831 = vmatprep.subr.mxu0 0.0
  %832 = vmatpush1.xpose.msra.mxu0 0.0
  %833 = vmatprep.subr.mxu0 0.0
  %834 = vmatpush1.xpose.msra.mxu0 0.0
  %835 = vmatprep.subr.mxu0 0.0
  %836 = vmatpush1.xpose.msra.mxu0 0.0
  %837 = vmatprep.subr.mxu0 0.0
  %838 = vmatpush1.xpose.msra.mxu0 0.0
  %839 = vmatprep.subr.mxu0 0.0
  %840 = vmatpush1.xpose.msra.mxu0 0.0
  %841 = vmatprep.subr.mxu0 0.0
  %842 = vmatpush1.xpose.msra.mxu0 0.0
  %843 = vmatprep.subr.mxu0 0.0
  %844 = vmatpush1.xpose.msra.mxu0 0.0
  %845 = vmatprep.subr.mxu0 0.0
  %846 = vmatpush1.xpose.msra.mxu0 0.0
  %847 = vmatprep.subr.mxu0 0.0
  %848 = vmatpush1.xpose.msra.mxu0 0.0
  %849 = vmatprep.mubr.f32.mxu0 0.0
  %850 = vmatmul.mubr.f32.gmra.mrb[0].mxu0 %v774
  %v851 = vpop.f32.mrb[0].mxu0
  %v852 = vadd.f32 0.0, %v851
  %v853 = vpop.f32.mrb[0].mxu0
  %854 = vmatprep.mubr.f32.mxu0 0.0
  %855 = vmatmul.mubr.f32.gmra.mrb[0].mxu0 %v777
  %v856 = vpop.f32.mrb[0].mxu0
  %v857 = vadd.f32 0.0, %v856
  %v858 = vpop.f32.mrb[0].mxu0
  %859 = vdwg.mxu0
  %v861 = vsel %vm685, %v657, 0
  %v864 = vsel %vm685, %v658, 0
  %v867 = vsel %vm685, %v623, 0
  %v870 = vsel %vm685, %v624, 0
  %872 = vmatprep.subr.mxu0 0.0
  %873 = vmatpush1.xpose.msra.mxu0 %v867
  %874 = vmatprep.subr.mxu0 0.0
  %875 = vmatpush1.xpose.msra.mxu0 %v870
  %876 = vmatprep.subr.mxu0 0.0
  %877 = vmatpush1.xpose.msra.mxu0 0.0
  %878 = vmatprep.subr.mxu0 0.0
  %879 = vmatpush1.xpose.msra.mxu0 0.0
  %880 = vmatprep.subr.mxu0 0.0
  %881 = vmatpush1.xpose.msra.mxu0 0.0
  %882 = vmatprep.subr.mxu0 0.0
  %883 = vmatpush1.xpose.msra.mxu0 0.0
  %884 = vmatprep.subr.mxu0 0.0
  %885 = vmatpush1.xpose.msra.mxu0 0.0
  %886 = vmatprep.subr.mxu0 0.0
  %887 = vmatpush1.xpose.msra.mxu0 0.0
  %888 = vmatprep.subr.mxu0 0.0
  %889 = vmatpush1.xpose.msra.mxu0 0.0
  %890 = vmatprep.subr.mxu0 0.0
  %891 = vmatpush1.xpose.msra.mxu0 0.0
  %892 = vmatprep.subr.mxu0 0.0
  %893 = vmatpush1.xpose.msra.mxu0 0.0
  %894 = vmatprep.subr.mxu0 0.0
  %895 = vmatpush1.xpose.msra.mxu0 0.0
  %896 = vmatprep.subr.mxu0 0.0
  %897 = vmatpush1.xpose.msra.mxu0 0.0
  %898 = vmatprep.subr.mxu0 0.0
  %899 = vmatpush1.xpose.msra.mxu0 0.0
  %900 = vmatprep.subr.mxu0 0.0
  %901 = vmatpush1.xpose.msra.mxu0 0.0
  %902 = vmatprep.subr.mxu0 0.0
  %903 = vmatpush1.xpose.msra.mxu0 0.0
  %904 = vmatprep.subr.mxu0 0.0
  %905 = vmatpush1.xpose.msra.mxu0 0.0
  %906 = vmatprep.subr.mxu0 0.0
  %907 = vmatpush1.xpose.msra.mxu0 0.0
  %908 = vmatprep.subr.mxu0 0.0
  %909 = vmatpush1.xpose.msra.mxu0 0.0
  %910 = vmatprep.subr.mxu0 0.0
  %911 = vmatpush1.xpose.msra.mxu0 0.0
  %912 = vmatprep.subr.mxu0 0.0
  %913 = vmatpush1.xpose.msra.mxu0 0.0
  %914 = vmatprep.subr.mxu0 0.0
  %915 = vmatpush1.xpose.msra.mxu0 0.0
  %916 = vmatprep.subr.mxu0 0.0
  %917 = vmatpush1.xpose.msra.mxu0 0.0
  %918 = vmatprep.subr.mxu0 0.0
  %919 = vmatpush1.xpose.msra.mxu0 0.0
  %920 = vmatprep.subr.mxu0 0.0
  %921 = vmatpush1.xpose.msra.mxu0 0.0
  %922 = vmatprep.subr.mxu0 0.0
  %923 = vmatpush1.xpose.msra.mxu0 0.0
  %924 = vmatprep.subr.mxu0 0.0
  %925 = vmatpush1.xpose.msra.mxu0 0.0
  %926 = vmatprep.subr.mxu0 0.0
  %927 = vmatpush1.xpose.msra.mxu0 0.0
  %928 = vmatprep.subr.mxu0 0.0
  %929 = vmatpush1.xpose.msra.mxu0 0.0
  %930 = vmatprep.subr.mxu0 0.0
  %931 = vmatpush1.xpose.msra.mxu0 0.0
  %932 = vmatprep.subr.mxu0 0.0
  %933 = vmatpush1.xpose.msra.mxu0 0.0
  %934 = vmatprep.subr.mxu0 0.0
  %935 = vmatpush1.xpose.msra.mxu0 0.0
  %936 = vmatprep.mubr.f32.mxu0 0.0
  %937 = vmatmul.mubr.f32.gmra.mrb[0].mxu0 %v861
  %v938 = vpop.f32.mrb[0].mxu0
  %v939 = vadd.f32 0.0, %v938
  %v940 = vpop.f32.mrb[0].mxu0
  %941 = vmatprep.mubr.f32.mxu0 0.0
  %942 = vmatmul.mubr.f32.gmra.mrb[0].mxu0 %v864
  %v943 = vpop.f32.mrb[0].mxu0
  %v944 = vadd.f32 0.0, %v943
  %v945 = vpop.f32.mrb[0].mxu0
  %946 = vdwg.mxu0
  %v948 = vsel %vm685, %v659, 0
  %v951 = vsel %vm685, %v660, 0
  %v954 = vsel %vm685, %v625, 0
  %v957 = vsel %vm685, %v626, 0
  %959 = vmatprep.subr.mxu0 0.0
  %960 = vmatpush1.xpose.msra.mxu0 %v954
  %961 = vmatprep.subr.mxu0 0.0
  %962 = vmatpush1.xpose.msra.mxu0 %v957
  %963 = vmatprep.subr.mxu0 0.0
  %964 = vmatpush1.xpose.msra.mxu0 0.0
  %965 = vmatprep.subr.mxu0 0.0
  %966 = vmatpush1.xpose.msra.mxu0 0.0
  %967 = vmatprep.subr.mxu0 0.0
  %968 = vmatpush1.xpose.msra.mxu0 0.0
  %969 = vmatprep.subr.mxu0 0.0
  %970 = vmatpush1.xpose.msra.mxu0 0.0
  %971 = vmatprep.subr.mxu0 0.0
  %972 = vmatpush1.xpose.msra.mxu0 0.0
  %973 = vmatprep.subr.mxu0 0.0
  %974 = vmatpush1.xpose.msra.mxu0 0.0
  %975 = vmatprep.subr.mxu0 0.0
  %976 = vmatpush1.xpose.msra.mxu0 0.0
  %977 = vmatprep.subr.mxu0 0.0
  %978 = vmatpush1.xpose.msra.mxu0 0.0
  %979 = vmatprep.subr.mxu0 0.0
  %980 = vmatpush1.xpose.msra.mxu0 0.0
  %981 = vmatprep.subr.mxu0 0.0
  %982 = vmatpush1.xpose.msra.mxu0 0.0
  %983 = vmatprep.subr.mxu0 0.0
  %984 = vmatpush1.xpose.msra.mxu0 0.0
  %985 = vmatprep.subr.mxu0 0.0
  %986 = vmatpush1.xpose.msra.mxu0 0.0
  %987 = vmatprep.subr.mxu0 0.0
  %988 = vmatpush1.xpose.msra.mxu0 0.0
  %989 = vmatprep.subr.mxu0 0.0
  %990 = vmatpush1.xpose.msra.mxu0 0.0
  %991 = vmatprep.subr.mxu0 0.0
  %992 = vmatpush1.xpose.msra.mxu0 0.0
  %993 = vmatprep.subr.mxu0 0.0
  %994 = vmatpush1.xpose.msra.mxu0 0.0
  %995 = vmatprep.subr.mxu0 0.0
  %996 = vmatpush1.xpose.msra.mxu0 0.0
  %997 = vmatprep.subr.mxu0 0.0
  %998 = vmatpush1.xpose.msra.mxu0 0.0
  %999 = vmatprep.subr.mxu0 0.0
  %1000 = vmatpush1.xpose.msra.mxu0 0.0
  %1001 = vmatprep.subr.mxu0 0.0
  %1002 = vmatpush1.xpose.msra.mxu0 0.0
  %1003 = vmatprep.subr.mxu0 0.0
  %1004 = vmatpush1.xpose.msra.mxu0 0.0
  %1005 = vmatprep.subr.mxu0 0.0
  %1006 = vmatpush1.xpose.msra.mxu0 0.0
  %1007 = vmatprep.subr.mxu0 0.0
  %1008 = vmatpush1.xpose.msra.mxu0 0.0
  %1009 = vmatprep.subr.mxu0 0.0
  %1010 = vmatpush1.xpose.msra.mxu0 0.0
  %1011 = vmatprep.subr.mxu0 0.0
  %1012 = vmatpush1.xpose.msra.mxu0 0.0
  %1013 = vmatprep.subr.mxu0 0.0
  %1014 = vmatpush1.xpose.msra.mxu0 0.0
  %1015 = vmatprep.subr.mxu0 0.0
  %1016 = vmatpush1.xpose.msra.mxu0 0.0
  %1017 = vmatprep.subr.mxu0 0.0
  %1018 = vmatpush1.xpose.msra.mxu0 0.0
  %1019 = vmatprep.subr.mxu0 0.0
  %1020 = vmatpush1.xpose.msra.mxu0 0.0
  %1021 = vmatprep.subr.mxu0 0.0
  %1022 = vmatpush1.xpose.msra.mxu0 0.0
  %1023 = vmatprep.mubr.f32.mxu0 0.0
  %1024 = vmatmul.mubr.f32.gmra.mrb[0].mxu0 %v948
  %v1025 = vpop.f32.mrb[0].mxu0
  %v1026 = vadd.f32 0.0, %v1025
  %v1027 = vpop.f32.mrb[0].mxu0
  %1028 = vmatprep.mubr.f32.mxu0 0.0
  %1029 = vmatmul.mubr.f32.gmra.mrb[0].mxu0 %v951
  %v1030 = vpop.f32.mrb[0].mxu0
  %v1031 = vadd.f32 0.0, %v1030
  %v1032 = vpop.f32.mrb[0].mxu0
  %1033 = vdwg.mxu0
  %v1035 = vsel %vm685, %v661, 0
  %v1038 = vsel %vm685, %v662, 0
  %v1041 = vsel %vm685, %v627, 0
  %v1044 = vsel %vm685, %v628, 0
  %1046 = vmatprep.subr.mxu0 0.0
  %1047 = vmatpush1.xpose.msra.mxu0 %v1041
  %1048 = vmatprep.subr.mxu0 0.0
  %1049 = vmatpush1.xpose.msra.mxu0 %v1044
  %1050 = vmatprep.subr.mxu0 0.0
  %1051 = vmatpush1.xpose.msra.mxu0 0.0
  %1052 = vmatprep.subr.mxu0 0.0
  %1053 = vmatpush1.xpose.msra.mxu0 0.0
  %1054 = vmatprep.subr.mxu0 0.0
  %1055 = vmatpush1.xpose.msra.mxu0 0.0
  %1056 = vmatprep.subr.mxu0 0.0
  %1057 = vmatpush1.xpose.msra.mxu0 0.0
  %1058 = vmatprep.subr.mxu0 0.0
  %1059 = vmatpush1.xpose.msra.mxu0 0.0
  %1060 = vmatprep.subr.mxu0 0.0
  %1061 = vmatpush1.xpose.msra.mxu0 0.0
  %1062 = vmatprep.subr.mxu0 0.0
  %1063 = vmatpush1.xpose.msra.mxu0 0.0
  %1064 = vmatprep.subr.mxu0 0.0
  %1065 = vmatpush1.xpose.msra.mxu0 0.0
  %1066 = vmatprep.subr.mxu0 0.0
  %1067 = vmatpush1.xpose.msra.mxu0 0.0
  %1068 = vmatprep.subr.mxu0 0.0
  %1069 = vmatpush1.xpose.msra.mxu0 0.0
  %1070 = vmatprep.subr.mxu0 0.0
  %1071 = vmatpush1.xpose.msra.mxu0 0.0
  %1072 = vmatprep.subr.mxu0 0.0
  %1073 = vmatpush1.xpose.msra.mxu0 0.0
  %1074 = vmatprep.subr.mxu0 0.0
  %1075 = vmatpush1.xpose.msra.mxu0 0.0
  %1076 = vmatprep.subr.mxu0 0.0
  %1077 = vmatpush1.xpose.msra.mxu0 0.0
  %1078 = vmatprep.subr.mxu0 0.0
  %1079 = vmatpush1.xpose.msra.mxu0 0.0
  %1080 = vmatprep.subr.mxu0 0.0
  %1081 = vmatpush1.xpose.msra.mxu0 0.0
  %1082 = vmatprep.subr.mxu0 0.0
  %1083 = vmatpush1.xpose.msra.mxu0 0.0
  %1084 = vmatprep.subr.mxu0 0.0
  %1085 = vmatpush1.xpose.msra.mxu0 0.0
  %1086 = vmatprep.subr.mxu0 0.0
  %1087 = vmatpush1.xpose.msra.mxu0 0.0
  %1088 = vmatprep.subr.mxu0 0.0
  %1089 = vmatpush1.xpose.msra.mxu0 0.0
  %1090 = vmatprep.subr.mxu0 0.0
  %1091 = vmatpush1.xpose.msra.mxu0 0.0
  %1092 = vmatprep.subr.mxu0 0.0
  %1093 = vmatpush1.xpose.msra.mxu0 0.0
  %1094 = vmatprep.subr.mxu0 0.0
  %1095 = vmatpush1.xpose.msra.mxu0 0.0
  %1096 = vmatprep.subr.mxu0 0.0
  %1097 = vmatpush1.xpose.msra.mxu0 0.0
  %1098 = vmatprep.subr.mxu0 0.0
  %1099 = vmatpush1.xpose.msra.mxu0 0.0
  %1100 = vmatprep.subr.mxu0 0.0
  %1101 = vmatpush1.xpose.msra.mxu0 0.0
  %1102 = vmatprep.subr.mxu0 0.0
  %1103 = vmatpush1.xpose.msra.mxu0 0.0
  %1104 = vmatprep.subr.mxu0 0.0
  %1105 = vmatpush1.xpose.msra.mxu0 0.0
  %1106 = vmatprep.subr.mxu0 0.0
  %1107 = vmatpush1.xpose.msra.mxu0 0.0
  %1108 = vmatprep.subr.mxu0 0.0
  %1109 = vmatpush1.xpose.msra.mxu0 0.0
  %1110 = vmatprep.mubr.f32.mxu0 0.0
  %1111 = vmatmul.mubr.f32.gmra.mrb[0].mxu0 %v1035
  %v1112 = vpop.f32.mrb[0].mxu0
  %v1113 = vadd.f32 0.0, %v1112
  %v1114 = vpop.f32.mrb[0].mxu0
  %1115 = vmatprep.mubr.f32.mxu0 0.0
  %1116 = vmatmul.mubr.f32.gmra.mrb[0].mxu0 %v1038
  %v1117 = vpop.f32.mrb[0].mxu0
  %v1118 = vadd.f32 0.0, %v1117
  %v1119 = vpop.f32.mrb[0].mxu0
  %1120 = vdwg.mxu0
  %v1122 = vsel %vm685, %v663, 0
  %v1125 = vsel %vm685, %v664, 0
  %v1128 = vsel %vm685, %v629, 0
  %v1131 = vsel %vm685, %v630, 0
  %1133 = vmatprep.subr.mxu0 0.0
  %1134 = vmatpush1.xpose.msra.mxu0 %v1128
  %1135 = vmatprep.subr.mxu0 0.0
  %1136 = vmatpush1.xpose.msra.mxu0 %v1131
  %1137 = vmatprep.subr.mxu0 0.0
  %1138 = vmatpush1.xpose.msra.mxu0 0.0
  %1139 = vmatprep.subr.mxu0 0.0
  %1140 = vmatpush1.xpose.msra.mxu0 0.0
  %1141 = vmatprep.subr.mxu0 0.0
  %1142 = vmatpush1.xpose.msra.mxu0 0.0
  %1143 = vmatprep.subr.mxu0 0.0
  %1144 = vmatpush1.xpose.msra.mxu0 0.0
  %1145 = vmatprep.subr.mxu0 0.0
  %1146 = vmatpush1.xpose.msra.mxu0 0.0
  %1147 = vmatprep.subr.mxu0 0.0
  %1148 = vmatpush1.xpose.msra.mxu0 0.0
  %1149 = vmatprep.subr.mxu0 0.0
  %1150 = vmatpush1.xpose.msra.mxu0 0.0
  %1151 = vmatprep.subr.mxu0 0.0
  %1152 = vmatpush1.xpose.msra.mxu0 0.0
  %1153 = vmatprep.subr.mxu0 0.0
  %1154 = vmatpush1.xpose.msra.mxu0 0.0
  %1155 = vmatprep.subr.mxu0 0.0
  %1156 = vmatpush1.xpose.msra.mxu0 0.0
  %1157 = vmatprep.subr.mxu0 0.0
  %1158 = vmatpush1.xpose.msra.mxu0 0.0
  %1159 = vmatprep.subr.mxu0 0.0
  %1160 = vmatpush1.xpose.msra.mxu0 0.0
  %1161 = vmatprep.subr.mxu0 0.0
  %1162 = vmatpush1.xpose.msra.mxu0 0.0
  %1163 = vmatprep.subr.mxu0 0.0
  %1164 = vmatpush1.xpose.msra.mxu0 0.0
  %1165 = vmatprep.subr.mxu0 0.0
  %1166 = vmatpush1.xpose.msra.mxu0 0.0
  %1167 = vmatprep.subr.mxu0 0.0
  %1168 = vmatpush1.xpose.msra.mxu0 0.0
  %1169 = vmatprep.subr.mxu0 0.0
  %1170 = vmatpush1.xpose.msra.mxu0 0.0
  %1171 = vmatprep.subr.mxu0 0.0
  %1172 = vmatpush1.xpose.msra.mxu0 0.0
  %1173 = vmatprep.subr.mxu0 0.0
  %1174 = vmatpush1.xpose.msra.mxu0 0.0
  %1175 = vmatprep.subr.mxu0 0.0
  %1176 = vmatpush1.xpose.msra.mxu0 0.0
  %1177 = vmatprep.subr.mxu0 0.0
  %1178 = vmatpush1.xpose.msra.mxu0 0.0
  %1179 = vmatprep.subr.mxu0 0.0
  %1180 = vmatpush1.xpose.msra.mxu0 0.0
  %1181 = vmatprep.subr.mxu0 0.0
  %1182 = vmatpush1.xpose.msra.mxu0 0.0
  %1183 = vmatprep.subr.mxu0 0.0
  %1184 = vmatpush1.xpose.msra.mxu0 0.0
  %1185 = vmatprep.subr.mxu0 0.0
  %1186 = vmatpush1.xpose.msra.mxu0 0.0
  %1187 = vmatprep.subr.mxu0 0.0
  %1188 = vmatpush1.xpose.msra.mxu0 0.0
  %1189 = vmatprep.subr.mxu0 0.0
  %1190 = vmatpush1.xpose.msra.mxu0 0.0
  %1191 = vmatprep.subr.mxu0 0.0
  %1192 = vmatpush1.xpose.msra.mxu0 0.0
  %1193 = vmatprep.subr.mxu0 0.0
  %1194 = vmatpush1.xpose.msra.mxu0 0.0
  %1195 = vmatprep.subr.mxu0 0.0
  %1196 = vmatpush1.xpose.msra.mxu0 0.0
  %1197 = vmatprep.mubr.f32.mxu0 0.0
  %1198 = vmatmul.mubr.f32.gmra.mrb[0].mxu0 %v1122
  %v1199 = vpop.f32.mrb[0].mxu0
  %v1200 = vadd.f32 0.0, %v1199
  %v1201 = vpop.f32.mrb[0].mxu0
  %1202 = vmatprep.mubr.f32.mxu0 0.0
  %1203 = vmatmul.mubr.f32.gmra.mrb[0].mxu0 %v1125
  %v1204 = vpop.f32.mrb[0].mxu0
  %v1205 = vadd.f32 0.0, %v1204
  %v1206 = vpop.f32.mrb[0].mxu0
  %1207 = vdwg.mxu0
  %v1209 = vsel %vm685, %v665, 0
  %v1212 = vsel %vm685, %v666, 0
  %v1215 = vsel %vm685, %v631, 0
  %v1218 = vsel %vm685, %v632, 0
  %1220 = vmatprep.subr.mxu0 0.0
  %1221 = vmatpush1.xpose.msra.mxu0 %v1215
  %1222 = vmatprep.subr.mxu0 0.0
  %1223 = vmatpush1.xpose.msra.mxu0 %v1218
  %1224 = vmatprep.subr.mxu0 0.0
  %1225 = vmatpush1.xpose.msra.mxu0 0.0
  %1226 = vmatprep.subr.mxu0 0.0
  %1227 = vmatpush1.xpose.msra.mxu0 0.0
  %1228 = vmatprep.subr.mxu0 0.0
  %1229 = vmatpush1.xpose.msra.mxu0 0.0
  %1230 = vmatprep.subr.mxu0 0.0
  %1231 = vmatpush1.xpose.msra.mxu0 0.0
  %1232 = vmatprep.subr.mxu0 0.0
  %1233 = vmatpush1.xpose.msra.mxu0 0.0
  %1234 = vmatprep.subr.mxu0 0.0
  %1235 = vmatpush1.xpose.msra.mxu0 0.0
  %1236 = vmatprep.subr.mxu0 0.0
  %1237 = vmatpush1.xpose.msra.mxu0 0.0
  %1238 = vmatprep.subr.mxu0 0.0
  %1239 = vmatpush1.xpose.msra.mxu0 0.0
  %1240 = vmatprep.subr.mxu0 0.0
  %1241 = vmatpush1.xpose.msra.mxu0 0.0
  %1242 = vmatprep.subr.mxu0 0.0
  %1243 = vmatpush1.xpose.msra.mxu0 0.0
  %1244 = vmatprep.subr.mxu0 0.0
  %1245 = vmatpush1.xpose.msra.mxu0 0.0
  %1246 = vmatprep.subr.mxu0 0.0
  %1247 = vmatpush1.xpose.msra.mxu0 0.0
  %1248 = vmatprep.subr.mxu0 0.0
  %1249 = vmatpush1.xpose.msra.mxu0 0.0
  %1250 = vmatprep.subr.mxu0 0.0
  %1251 = vmatpush1.xpose.msra.mxu0 0.0
  %1252 = vmatprep.subr.mxu0 0.0
  %1253 = vmatpush1.xpose.msra.mxu0 0.0
  %1254 = vmatprep.subr.mxu0 0.0
  %1255 = vmatpush1.xpose.msra.mxu0 0.0
  %1256 = vmatprep.subr.mxu0 0.0
  %1257 = vmatpush1.xpose.msra.mxu0 0.0
  %1258 = vmatprep.subr.mxu0 0.0
  %1259 = vmatpush1.xpose.msra.mxu0 0.0
  %1260 = vmatprep.subr.mxu0 0.0
  %1261 = vmatpush1.xpose.msra.mxu0 0.0
  %1262 = vmatprep.subr.mxu0 0.0
  %1263 = vmatpush1.xpose.msra.mxu0 0.0
  %1264 = vmatprep.subr.mxu0 0.0
  %1265 = vmatpush1.xpose.msra.mxu0 0.0
  %1266 = vmatprep.subr.mxu0 0.0
  %1267 = vmatpush1.xpose.msra.mxu0 0.0
  %1268 = vmatprep.subr.mxu0 0.0
  %1269 = vmatpush1.xpose.msra.mxu0 0.0
  %1270 = vmatprep.subr.mxu0 0.0
  %1271 = vmatpush1.xpose.msra.mxu0 0.0
  %1272 = vmatprep.subr.mxu0 0.0
  %1273 = vmatpush1.xpose.msra.mxu0 0.0
  %1274 = vmatprep.subr.mxu0 0.0
  %1275 = vmatpush1.xpose.msra.mxu0 0.0
  %1276 = vmatprep.subr.mxu0 0.0
  %1277 = vmatpush1.xpose.msra.mxu0 0.0
  %1278 = vmatprep.subr.mxu0 0.0
  %1279 = vmatpush1.xpose.msra.mxu0 0.0
  %1280 = vmatprep.subr.mxu0 0.0
  %1281 = vmatpush1.xpose.msra.mxu0 0.0
  %1282 = vmatprep.subr.mxu0 0.0
  %1283 = vmatpush1.xpose.msra.mxu0 0.0
  %1284 = vmatprep.mubr.f32.mxu0 0.0
  %1285 = vmatmul.mubr.f32.gmra.mrb[0].mxu0 %v1209
  %v1286 = vpop.f32.mrb[0].mxu0
  %v1287 = vadd.f32 0.0, %v1286
  %v1288 = vpop.f32.mrb[0].mxu0
  %1289 = vmatprep.mubr.f32.mxu0 0.0
  %1290 = vmatmul.mubr.f32.gmra.mrb[0].mxu0 %v1212
  %v1291 = vpop.f32.mrb[0].mxu0
  %v1292 = vadd.f32 0.0, %v1291
  %v1293 = vpop.f32.mrb[0].mxu0
  %1294 = vdwg.mxu0
  %v1296 = vsel %vm685, %v667, 0
  %v1299 = vsel %vm685, %v668, 0
  %v1302 = vsel %vm685, %v633, 0
  %v1305 = vsel %vm685, %v634, 0
  %1307 = vmatprep.subr.mxu0 0.0
  %1308 = vmatpush1.xpose.msra.mxu0 %v1302
  %1309 = vmatprep.subr.mxu0 0.0
  %1310 = vmatpush1.xpose.msra.mxu0 %v1305
  %1311 = vmatprep.subr.mxu0 0.0
  %1312 = vmatpush1.xpose.msra.mxu0 0.0
  %1313 = vmatprep.subr.mxu0 0.0
  %1314 = vmatpush1.xpose.msra.mxu0 0.0
  %1315 = vmatprep.subr.mxu0 0.0
  %1316 = vmatpush1.xpose.msra.mxu0 0.0
  %1317 = vmatprep.subr.mxu0 0.0
  %1318 = vmatpush1.xpose.msra.mxu0 0.0
  %1319 = vmatprep.subr.mxu0 0.0
  %1320 = vmatpush1.xpose.msra.mxu0 0.0
  %1321 = vmatprep.subr.mxu0 0.0
  %1322 = vmatpush1.xpose.msra.mxu0 0.0
  %1323 = vmatprep.subr.mxu0 0.0
  %1324 = vmatpush1.xpose.msra.mxu0 0.0
  %1325 = vmatprep.subr.mxu0 0.0
  %1326 = vmatpush1.xpose.msra.mxu0 0.0
  %1327 = vmatprep.subr.mxu0 0.0
  %1328 = vmatpush1.xpose.msra.mxu0 0.0
  %1329 = vmatprep.subr.mxu0 0.0
  %1330 = vmatpush1.xpose.msra.mxu0 0.0
  %1331 = vmatprep.subr.mxu0 0.0
  %1332 = vmatpush1.xpose.msra.mxu0 0.0
  %1333 = vmatprep.subr.mxu0 0.0
  %1334 = vmatpush1.xpose.msra.mxu0 0.0
  %1335 = vmatprep.subr.mxu0 0.0
  %1336 = vmatpush1.xpose.msra.mxu0 0.0
  %1337 = vmatprep.subr.mxu0 0.0
  %1338 = vmatpush1.xpose.msra.mxu0 0.0
  %1339 = vmatprep.subr.mxu0 0.0
  %1340 = vmatpush1.xpose.msra.mxu0 0.0
  %1341 = vmatprep.subr.mxu0 0.0
  %1342 = vmatpush1.xpose.msra.mxu0 0.0
  %1343 = vmatprep.subr.mxu0 0.0
  %1344 = vmatpush1.xpose.msra.mxu0 0.0
  %1345 = vmatprep.subr.mxu0 0.0
  %1346 = vmatpush1.xpose.msra.mxu0 0.0
  %1347 = vmatprep.subr.mxu0 0.0
  %1348 = vmatpush1.xpose.msra.mxu0 0.0
  %1349 = vmatprep.subr.mxu0 0.0
  %1350 = vmatpush1.xpose.msra.mxu0 0.0
  %1351 = vmatprep.subr.mxu0 0.0
  %1352 = vmatpush1.xpose.msra.mxu0 0.0
  %1353 = vmatprep.subr.mxu0 0.0
  %1354 = vmatpush1.xpose.msra.mxu0 0.0
  %1355 = vmatprep.subr.mxu0 0.0
  %1356 = vmatpush1.xpose.msra.mxu0 0.0
  %1357 = vmatprep.subr.mxu0 0.0
  %1358 = vmatpush1.xpose.msra.mxu0 0.0
  %1359 = vmatprep.subr.mxu0 0.0
  %1360 = vmatpush1.xpose.msra.mxu0 0.0
  %1361 = vmatprep.subr.mxu0 0.0
  %1362 = vmatpush1.xpose.msra.mxu0 0.0
  %1363 = vmatprep.subr.mxu0 0.0
  %1364 = vmatpush1.xpose.msra.mxu0 0.0
  %1365 = vmatprep.subr.mxu0 0.0
  %1366 = vmatpush1.xpose.msra.mxu0 0.0
  %1367 = vmatprep.subr.mxu0 0.0
  %1368 = vmatpush1.xpose.msra.mxu0 0.0
  %1369 = vmatprep.subr.mxu0 0.0
  %1370 = vmatpush1.xpose.msra.mxu0 0.0
  %1371 = vmatprep.mubr.f32.mxu0 0.0
  %1372 = vmatmul.mubr.f32.gmra.mrb[0].mxu0 %v1296
  %v1373 = vpop.f32.mrb[0].mxu0
  %v1374 = vadd.f32 0.0, %v1373
  %v1375 = vpop.f32.mrb[0].mxu0
  %1376 = vmatprep.mubr.f32.mxu0 0.0
  %1377 = vmatmul.mubr.f32.gmra.mrb[0].mxu0 %v1299
  %v1378 = vpop.f32.mrb[0].mxu0
  %v1379 = vadd.f32 0.0, %v1378
  %v1380 = vpop.f32.mrb[0].mxu0
  %1381 = vdwg.mxu0
  %v1383 = vsel %vm685, %v669, 0
  %v1386 = vsel %vm685, %v670, 0
  %v1389 = vsel %vm685, %v635, 0
  %v1392 = vsel %vm685, %v636, 0
  %1394 = vmatprep.subr.mxu0 0.0
  %1395 = vmatpush1.xpose.msra.mxu0 %v1389
  %1396 = vmatprep.subr.mxu0 0.0
  %1397 = vmatpush1.xpose.msra.mxu0 %v1392
  %1398 = vmatprep.subr.mxu0 0.0
  %1399 = vmatpush1.xpose.msra.mxu0 0.0
  %1400 = vmatprep.subr.mxu0 0.0
  %1401 = vmatpush1.xpose.msra.mxu0 0.0
  %1402 = vmatprep.subr.mxu0 0.0
  %1403 = vmatpush1.xpose.msra.mxu0 0.0
  %1404 = vmatprep.subr.mxu0 0.0
  %1405 = vmatpush1.xpose.msra.mxu0 0.0
  %1406 = vmatprep.subr.mxu0 0.0
  %1407 = vmatpush1.xpose.msra.mxu0 0.0
  %1408 = vmatprep.subr.mxu0 0.0
  %1409 = vmatpush1.xpose.msra.mxu0 0.0
  %1410 = vmatprep.subr.mxu0 0.0
  %1411 = vmatpush1.xpose.msra.mxu0 0.0
  %1412 = vmatprep.subr.mxu0 0.0
  %1413 = vmatpush1.xpose.msra.mxu0 0.0
  %1414 = vmatprep.subr.mxu0 0.0
  %1415 = vmatpush1.xpose.msra.mxu0 0.0
  %1416 = vmatprep.subr.mxu0 0.0
  %1417 = vmatpush1.xpose.msra.mxu0 0.0
  %1418 = vmatprep.subr.mxu0 0.0
  %1419 = vmatpush1.xpose.msra.mxu0 0.0
  %1420 = vmatprep.subr.mxu0 0.0
  %1421 = vmatpush1.xpose.msra.mxu0 0.0
  %1422 = vmatprep.subr.mxu0 0.0
  %1423 = vmatpush1.xpose.msra.mxu0 0.0
  %1424 = vmatprep.subr.mxu0 0.0
  %1425 = vmatpush1.xpose.msra.mxu0 0.0
  %1426 = vmatprep.subr.mxu0 0.0
  %1427 = vmatpush1.xpose.msra.mxu0 0.0
  %1428 = vmatprep.subr.mxu0 0.0
  %1429 = vmatpush1.xpose.msra.mxu0 0.0
  %1430 = vmatprep.subr.mxu0 0.0
  %1431 = vmatpush1.xpose.msra.mxu0 0.0
  %1432 = vmatprep.subr.mxu0 0.0
  %1433 = vmatpush1.xpose.msra.mxu0 0.0
  %1434 = vmatprep.subr.mxu0 0.0
  %1435 = vmatpush1.xpose.msra.mxu0 0.0
  %1436 = vmatprep.subr.mxu0 0.0
  %1437 = vmatpush1.xpose.msra.mxu0 0.0
  %1438 = vmatprep.subr.mxu0 0.0
  %1439 = vmatpush1.xpose.msra.mxu0 0.0
  %1440 = vmatprep.subr.mxu0 0.0
  %1441 = vmatpush1.xpose.msra.mxu0 0.0
  %1442 = vmatprep.subr.mxu0 0.0
  %1443 = vmatpush1.xpose.msra.mxu0 0.0
  %1444 = vmatprep.subr.mxu0 0.0
  %1445 = vmatpush1.xpose.msra.mxu0 0.0
  %1446 = vmatprep.subr.mxu0 0.0
  %1447 = vmatpush1.xpose.msra.mxu0 0.0
  %1448 = vmatprep.subr.mxu0 0.0
  %1449 = vmatpush1.xpose.msra.mxu0 0.0
  %1450 = vmatprep.subr.mxu0 0.0
  %1451 = vmatpush1.xpose.msra.mxu0 0.0
  %1452 = vmatprep.subr.mxu0 0.0
  %1453 = vmatpush1.xpose.msra.mxu0 0.0
  %1454 = vmatprep.subr.mxu0 0.0
  %1455 = vmatpush1.xpose.msra.mxu0 0.0
  %1456 = vmatprep.subr.mxu0 0.0
  %1457 = vmatpush1.xpose.msra.mxu0 0.0
  %1458 = vmatprep.mubr.f32.mxu0 0.0
  %1459 = vmatmul.mubr.f32.gmra.mrb[0].mxu0 %v1383
  %v1460 = vpop.f32.mrb[0].mxu0
  %v1461 = vadd.f32 0.0, %v1460
  %v1462 = vpop.f32.mrb[0].mxu0
  %1463 = vmatprep.mubr.f32.mxu0 0.0
  %1464 = vmatmul.mubr.f32.gmra.mrb[0].mxu0 %v1386
  %v1465 = vpop.f32.mrb[0].mxu0
  %v1466 = vadd.f32 0.0, %v1465
  %v1467 = vpop.f32.mrb[0].mxu0
  %1468 = vdwg.mxu0
  %v1470 = vsel %vm685, %v671, 0
  %v1473 = vsel %vm685, %v672, 0
  %v1476 = vsel %vm685, %v637, 0
  %v1479 = vsel %vm685, %v638, 0
  %1481 = vmatprep.subr.mxu0 0.0
  %1482 = vmatpush1.xpose.msra.mxu0 %v1476
  %1483 = vmatprep.subr.mxu0 0.0
  %1484 = vmatpush1.xpose.msra.mxu0 %v1479
  %1485 = vmatprep.subr.mxu0 0.0
  %1486 = vmatpush1.xpose.msra.mxu0 0.0
  %1487 = vmatprep.subr.mxu0 0.0
  %1488 = vmatpush1.xpose.msra.mxu0 0.0
  %1489 = vmatprep.subr.mxu0 0.0
  %1490 = vmatpush1.xpose.msra.mxu0 0.0
  %1491 = vmatprep.subr.mxu0 0.0
  %1492 = vmatpush1.xpose.msra.mxu0 0.0
  %1493 = vmatprep.subr.mxu0 0.0
  %1494 = vmatpush1.xpose.msra.mxu0 0.0
  %1495 = vmatprep.subr.mxu0 0.0
  %1496 = vmatpush1.xpose.msra.mxu0 0.0
  %1497 = vmatprep.subr.mxu0 0.0
  %1498 = vmatpush1.xpose.msra.mxu0 0.0
  %1499 = vmatprep.subr.mxu0 0.0
  %1500 = vmatpush1.xpose.msra.mxu0 0.0
  %1501 = vmatprep.subr.mxu0 0.0
  %1502 = vmatpush1.xpose.msra.mxu0 0.0
  %1503 = vmatprep.subr.mxu0 0.0
  %1504 = vmatpush1.xpose.msra.mxu0 0.0
  %1505 = vmatprep.subr.mxu0 0.0
  %1506 = vmatpush1.xpose.msra.mxu0 0.0
  %1507 = vmatprep.subr.mxu0 0.0
  %1508 = vmatpush1.xpose.msra.mxu0 0.0
  %1509 = vmatprep.subr.mxu0 0.0
  %1510 = vmatpush1.xpose.msra.mxu0 0.0
  %1511 = vmatprep.subr.mxu0 0.0
  %1512 = vmatpush1.xpose.msra.mxu0 0.0
  %1513 = vmatprep.subr.mxu0 0.0
  %1514 = vmatpush1.xpose.msra.mxu0 0.0
  %1515 = vmatprep.subr.mxu0 0.0
  %1516 = vmatpush1.xpose.msra.mxu0 0.0
  %1517 = vmatprep.subr.mxu0 0.0
  %1518 = vmatpush1.xpose.msra.mxu0 0.0
  %1519 = vmatprep.subr.mxu0 0.0
  %1520 = vmatpush1.xpose.msra.mxu0 0.0
  %1521 = vmatprep.subr.mxu0 0.0
  %1522 = vmatpush1.xpose.msra.mxu0 0.0
  %1523 = vmatprep.subr.mxu0 0.0
  %1524 = vmatpush1.xpose.msra.mxu0 0.0
  %1525 = vmatprep.subr.mxu0 0.0
  %1526 = vmatpush1.xpose.msra.mxu0 0.0
  %1527 = vmatprep.subr.mxu0 0.0
  %1528 = vmatpush1.xpose.msra.mxu0 0.0
  %1529 = vmatprep.subr.mxu0 0.0
  %1530 = vmatpush1.xpose.msra.mxu0 0.0
  %1531 = vmatprep.subr.mxu0 0.0
  %1532 = vmatpush1.xpose.msra.mxu0 0.0
  %1533 = vmatprep.subr.mxu0 0.0
  %1534 = vmatpush1.xpose.msra.mxu0 0.0
  %1535 = vmatprep.subr.mxu0 0.0
  %1536 = vmatpush1.xpose.msra.mxu0 0.0
  %1537 = vmatprep.subr.mxu0 0.0
  %1538 = vmatpush1.xpose.msra.mxu0 0.0
  %1539 = vmatprep.subr.mxu0 0.0
  %1540 = vmatpush1.xpose.msra.mxu0 0.0
  %1541 = vmatprep.subr.mxu0 0.0
  %1542 = vmatpush1.xpose.msra.mxu0 0.0
  %1543 = vmatprep.subr.mxu0 0.0
  %1544 = vmatpush1.xpose.msra.mxu0 0.0
  %1545 = vmatprep.mubr.f32.mxu0 0.0
  %1546 = vmatmul.mubr.f32.gmra.mrb[0].mxu0 %v1470
  %v1547 = vpop.f32.mrb[0].mxu0
  %v1548 = vadd.f32 0.0, %v1547
  %v1549 = vpop.f32.mrb[0].mxu0
  %1550 = vmatprep.mubr.f32.mxu0 0.0
  %1551 = vmatmul.mubr.f32.gmra.mrb[0].mxu0 %v1473
  %v1552 = vpop.f32.mrb[0].mxu0
  %v1553 = vadd.f32 0.0, %v1552
  %v1554 = vpop.f32.mrb[0].mxu0
  %1555 = vdwg.mxu0
  %v1557 = vsel %vm685, %v673, 0
  %v1560 = vsel %vm685, %v674, 0
  %v1563 = vsel %vm685, %v639, 0
  %v1566 = vsel %vm685, %v640, 0
  %1568 = vmatprep.subr.mxu0 0.0
  %1569 = vmatpush1.xpose.msra.mxu0 %v1563
  %1570 = vmatprep.subr.mxu0 0.0
  %1571 = vmatpush1.xpose.msra.mxu0 %v1566
  %1572 = vmatprep.subr.mxu0 0.0
  %1573 = vmatpush1.xpose.msra.mxu0 0.0
  %1574 = vmatprep.subr.mxu0 0.0
  %1575 = vmatpush1.xpose.msra.mxu0 0.0
  %1576 = vmatprep.subr.mxu0 0.0
  %1577 = vmatpush1.xpose.msra.mxu0 0.0
  %1578 = vmatprep.subr.mxu0 0.0
  %1579 = vmatpush1.xpose.msra.mxu0 0.0
  %1580 = vmatprep.subr.mxu0 0.0
  %1581 = vmatpush1.xpose.msra.mxu0 0.0
  %1582 = vmatprep.subr.mxu0 0.0
  %1583 = vmatpush1.xpose.msra.mxu0 0.0
  %1584 = vmatprep.subr.mxu0 0.0
  %1585 = vmatpush1.xpose.msra.mxu0 0.0
  %1586 = vmatprep.subr.mxu0 0.0
  %1587 = vmatpush1.xpose.msra.mxu0 0.0
  %1588 = vmatprep.subr.mxu0 0.0
  %1589 = vmatpush1.xpose.msra.mxu0 0.0
  %1590 = vmatprep.subr.mxu0 0.0
  %1591 = vmatpush1.xpose.msra.mxu0 0.0
  %1592 = vmatprep.subr.mxu0 0.0
  %1593 = vmatpush1.xpose.msra.mxu0 0.0
  %1594 = vmatprep.subr.mxu0 0.0
  %1595 = vmatpush1.xpose.msra.mxu0 0.0
  %1596 = vmatprep.subr.mxu0 0.0
  %1597 = vmatpush1.xpose.msra.mxu0 0.0
  %1598 = vmatprep.subr.mxu0 0.0
  %1599 = vmatpush1.xpose.msra.mxu0 0.0
  %1600 = vmatprep.subr.mxu0 0.0
  %1601 = vmatpush1.xpose.msra.mxu0 0.0
  %1602 = vmatprep.subr.mxu0 0.0
  %1603 = vmatpush1.xpose.msra.mxu0 0.0
  %1604 = vmatprep.subr.mxu0 0.0
  %1605 = vmatpush1.xpose.msra.mxu0 0.0
  %1606 = vmatprep.subr.mxu0 0.0
  %1607 = vmatpush1.xpose.msra.mxu0 0.0
  %1608 = vmatprep.subr.mxu0 0.0
  %1609 = vmatpush1.xpose.msra.mxu0 0.0
  %1610 = vmatprep.subr.mxu0 0.0
  %1611 = vmatpush1.xpose.msra.mxu0 0.0
  %1612 = vmatprep.subr.mxu0 0.0
  %1613 = vmatpush1.xpose.msra.mxu0 0.0
  %1614 = vmatprep.subr.mxu0 0.0
  %1615 = vmatpush1.xpose.msra.mxu0 0.0
  %1616 = vmatprep.subr.mxu0 0.0
  %1617 = vmatpush1.xpose.msra.mxu0 0.0
  %1618 = vmatprep.subr.mxu0 0.0
  %1619 = vmatpush1.xpose.msra.mxu0 0.0
  %1620 = vmatprep.subr.mxu0 0.0
  %1621 = vmatpush1.xpose.msra.mxu0 0.0
  %1622 = vmatprep.subr.mxu0 0.0
  %1623 = vmatpush1.xpose.msra.mxu0 0.0
  %1624 = vmatprep.subr.mxu0 0.0
  %1625 = vmatpush1.xpose.msra.mxu0 0.0
  %1626 = vmatprep.subr.mxu0 0.0
  %1627 = vmatpush1.xpose.msra.mxu0 0.0
  %1628 = vmatprep.subr.mxu0 0.0
  %1629 = vmatpush1.xpose.msra.mxu0 0.0
  %1630 = vmatprep.subr.mxu0 0.0
  %1631 = vmatpush1.xpose.msra.mxu0 0.0
  %1632 = vmatprep.mubr.f32.mxu0 0.0
  %1633 = vmatmul.mubr.f32.gmra.mrb[0].mxu0 %v1557
  %v1634 = vpop.f32.mrb[0].mxu0
  %v1635 = vadd.f32 0.0, %v1634
  %v1636 = vpop.f32.mrb[0].mxu0
  %1637 = vmatprep.mubr.f32.mxu0 0.0
  %1638 = vmatmul.mubr.f32.gmra.mrb[0].mxu0 %v1560
  %v1639 = vpop.f32.mrb[0].mxu0
  %v1640 = vadd.f32 0.0, %v1639
  %v1641 = vpop.f32.mrb[0].mxu0
  %1642 = vdwg.mxu0
  %v1644 = vsel %vm685, %v675, 0
  %v1647 = vsel %vm685, %v676, 0
  %v1650 = vsel %vm685, %v641, 0
  %v1653 = vsel %vm685, %v642, 0
  %1655 = vmatprep.subr.mxu0 0.0
  %1656 = vmatpush1.xpose.msra.mxu0 %v1650
  %1657 = vmatprep.subr.mxu0 0.0
  %1658 = vmatpush1.xpose.msra.mxu0 %v1653
  %1659 = vmatprep.subr.mxu0 0.0
  %1660 = vmatpush1.xpose.msra.mxu0 0.0
  %1661 = vmatprep.subr.mxu0 0.0
  %1662 = vmatpush1.xpose.msra.mxu0 0.0
  %1663 = vmatprep.subr.mxu0 0.0
  %1664 = vmatpush1.xpose.msra.mxu0 0.0
  %1665 = vmatprep.subr.mxu0 0.0
  %1666 = vmatpush1.xpose.msra.mxu0 0.0
  %1667 = vmatprep.subr.mxu0 0.0
  %1668 = vmatpush1.xpose.msra.mxu0 0.0
  %1669 = vmatprep.subr.mxu0 0.0
  %1670 = vmatpush1.xpose.msra.mxu0 0.0
  %1671 = vmatprep.subr.mxu0 0.0
  %1672 = vmatpush1.xpose.msra.mxu0 0.0
  %1673 = vmatprep.subr.mxu0 0.0
  %1674 = vmatpush1.xpose.msra.mxu0 0.0
  %1675 = vmatprep.subr.mxu0 0.0
  %1676 = vmatpush1.xpose.msra.mxu0 0.0
  %1677 = vmatprep.subr.mxu0 0.0
  %1678 = vmatpush1.xpose.msra.mxu0 0.0
  %1679 = vmatprep.subr.mxu0 0.0
  %1680 = vmatpush1.xpose.msra.mxu0 0.0
  %1681 = vmatprep.subr.mxu0 0.0
  %1682 = vmatpush1.xpose.msra.mxu0 0.0
  %1683 = vmatprep.subr.mxu0 0.0
  %1684 = vmatpush1.xpose.msra.mxu0 0.0
  %1685 = vmatprep.subr.mxu0 0.0
  %1686 = vmatpush1.xpose.msra.mxu0 0.0
  %1687 = vmatprep.subr.mxu0 0.0
  %1688 = vmatpush1.xpose.msra.mxu0 0.0
  %1689 = vmatprep.subr.mxu0 0.0
  %1690 = vmatpush1.xpose.msra.mxu0 0.0
  %1691 = vmatprep.subr.mxu0 0.0
  %1692 = vmatpush1.xpose.msra.mxu0 0.0
  %1693 = vmatprep.subr.mxu0 0.0
  %1694 = vmatpush1.xpose.msra.mxu0 0.0
  %1695 = vmatprep.subr.mxu0 0.0
  %1696 = vmatpush1.xpose.msra.mxu0 0.0
  %1697 = vmatprep.subr.mxu0 0.0
  %1698 = vmatpush1.xpose.msra.mxu0 0.0
  %1699 = vmatprep.subr.mxu0 0.0
  %1700 = vmatpush1.xpose.msra.mxu0 0.0
  %1701 = vmatprep.subr.mxu0 0.0
  %1702 = vmatpush1.xpose.msra.mxu0 0.0
  %1703 = vmatprep.subr.mxu0 0.0
  %1704 = vmatpush1.xpose.msra.mxu0 0.0
  %1705 = vmatprep.subr.mxu0 0.0
  %1706 = vmatpush1.xpose.msra.mxu0 0.0
  %1707 = vmatprep.subr.mxu0 0.0
  %1708 = vmatpush1.xpose.msra.mxu0 0.0
  %1709 = vmatprep.subr.mxu0 0.0
  %1710 = vmatpush1.xpose.msra.mxu0 0.0
  %1711 = vmatprep.subr.mxu0 0.0
  %1712 = vmatpush1.xpose.msra.mxu0 0.0
  %1713 = vmatprep.subr.mxu0 0.0
  %1714 = vmatpush1.xpose.msra.mxu0 0.0
  %1715 = vmatprep.subr.mxu0 0.0
  %1716 = vmatpush1.xpose.msra.mxu0 0.0
  %1717 = vmatprep.subr.mxu0 0.0
  %1718 = vmatpush1.xpose.msra.mxu0 0.0
  %1719 = vmatprep.mubr.f32.mxu0 0.0
  %1720 = vmatmul.mubr.f32.gmra.mrb[0].mxu0 %v1644
  %v1721 = vpop.f32.mrb[0].mxu0
  %v1722 = vadd.f32 0.0, %v1721
  %v1723 = vpop.f32.mrb[0].mxu0
  %1724 = vmatprep.mubr.f32.mxu0 0.0
  %1725 = vmatmul.mubr.f32.gmra.mrb[0].mxu0 %v1647
  %v1726 = vpop.f32.mrb[0].mxu0
  %v1727 = vadd.f32 0.0, %v1726
  %v1728 = vpop.f32.mrb[0].mxu0
  %1729 = vdwg.mxu0
  %v1731 = vsel %vm685, %v677, 0
  %v1734 = vsel %vm685, %v678, 0
  %v1737 = vsel %vm685, %v643, 0
  %v1740 = vsel %vm685, %v644, 0
  %1742 = vmatprep.subr.mxu0 0.0
  %1743 = vmatpush1.xpose.msra.mxu0 %v1737
  %1744 = vmatprep.subr.mxu0 0.0
  %1745 = vmatpush1.xpose.msra.mxu0 %v1740
  %1746 = vmatprep.subr.mxu0 0.0
  %1747 = vmatpush1.xpose.msra.mxu0 0.0
  %1748 = vmatprep.subr.mxu0 0.0
  %1749 = vmatpush1.xpose.msra.mxu0 0.0
  %1750 = vmatprep.subr.mxu0 0.0
  %1751 = vmatpush1.xpose.msra.mxu0 0.0
  %1752 = vmatprep.subr.mxu0 0.0
  %1753 = vmatpush1.xpose.msra.mxu0 0.0
  %1754 = vmatprep.subr.mxu0 0.0
  %1755 = vmatpush1.xpose.msra.mxu0 0.0
  %1756 = vmatprep.subr.mxu0 0.0
  %1757 = vmatpush1.xpose.msra.mxu0 0.0
  %1758 = vmatprep.subr.mxu0 0.0
  %1759 = vmatpush1.xpose.msra.mxu0 0.0
  %1760 = vmatprep.subr.mxu0 0.0
  %1761 = vmatpush1.xpose.msra.mxu0 0.0
  %1762 = vmatprep.subr.mxu0 0.0
  %1763 = vmatpush1.xpose.msra.mxu0 0.0
  %1764 = vmatprep.subr.mxu0 0.0
  %1765 = vmatpush1.xpose.msra.mxu0 0.0
  %1766 = vmatprep.subr.mxu0 0.0
  %1767 = vmatpush1.xpose.msra.mxu0 0.0
  %1768 = vmatprep.subr.mxu0 0.0
  %1769 = vmatpush1.xpose.msra.mxu0 0.0
  %1770 = vmatprep.subr.mxu0 0.0
  %1771 = vmatpush1.xpose.msra.mxu0 0.0
  %1772 = vmatprep.subr.mxu0 0.0
  %1773 = vmatpush1.xpose.msra.mxu0 0.0
  %1774 = vmatprep.subr.mxu0 0.0
  %1775 = vmatpush1.xpose.msra.mxu0 0.0
  %1776 = vmatprep.subr.mxu0 0.0
  %1777 = vmatpush1.xpose.msra.mxu0 0.0
  %1778 = vmatprep.subr.mxu0 0.0
  %1779 = vmatpush1.xpose.msra.mxu0 0.0
  %1780 = vmatprep.subr.mxu0 0.0
  %1781 = vmatpush1.xpose.msra.mxu0 0.0
  %1782 = vmatprep.subr.mxu0 0.0
  %1783 = vmatpush1.xpose.msra.mxu0 0.0
  %1784 = vmatprep.subr.mxu0 0.0
  %1785 = vmatpush1.xpose.msra.mxu0 0.0
  %1786 = vmatprep.subr.mxu0 0.0
  %1787 = vmatpush1.xpose.msra.mxu0 0.0
  %1788 = vmatprep.subr.mxu0 0.0
  %1789 = vmatpush1.xpose.msra.mxu0 0.0
  %1790 = vmatprep.subr.mxu0 0.0
  %1791 = vmatpush1.xpose.msra.mxu0 0.0
  %1792 = vmatprep.subr.mxu0 0.0
  %1793 = vmatpush1.xpose.msra.mxu0 0.0
  %1794 = vmatprep.subr.mxu0 0.0
  %1795 = vmatpush1.xpose.msra.mxu0 0.0
  %1796 = vmatprep.subr.mxu0 0.0
  %1797 = vmatpush1.xpose.msra.mxu0 0.0
  %1798 = vmatprep.subr.mxu0 0.0
  %1799 = vmatpush1.xpose.msra.mxu0 0.0
  %1800 = vmatprep.subr.mxu0 0.0
  %1801 = vmatpush1.xpose.msra.mxu0 0.0
  %1802 = vmatprep.subr.mxu0 0.0
  %1803 = vmatpush1.xpose.msra.mxu0 0.0
  %1804 = vmatprep.subr.mxu0 0.0
  %1805 = vmatpush1.xpose.msra.mxu0 0.0
  %1806 = vmatprep.mubr.f32.mxu0 0.0
  %1807 = vmatmul.mubr.f32.gmra.mrb[0].mxu0 %v1731
  %v1808 = vpop.f32.mrb[0].mxu0
  %v1809 = vadd.f32 0.0, %v1808
  %v1810 = vpop.f32.mrb[0].mxu0
  %1811 = vmatprep.mubr.f32.mxu0 0.0
  %1812 = vmatmul.mubr.f32.gmra.mrb[0].mxu0 %v1734
  %v1813 = vpop.f32.mrb[0].mxu0
  %v1814 = vadd.f32 0.0, %v1813
  %v1815 = vpop.f32.mrb[0].mxu0
  %1816 = vdwg.mxu0
  %v1818 = vsel %vm685, %v679, 0
  %v1821 = vsel %vm685, %v680, 0
  %v1824 = vsel %vm685, %v645, 0
  %v1827 = vsel %vm685, %v646, 0
  %1829 = vmatprep.subr.mxu0 0.0
  %1830 = vmatpush1.xpose.msra.mxu0 %v1824
  %1831 = vmatprep.subr.mxu0 0.0
  %1832 = vmatpush1.xpose.msra.mxu0 %v1827
  %1833 = vmatprep.subr.mxu0 0.0
  %1834 = vmatpush1.xpose.msra.mxu0 0.0
  %1835 = vmatprep.subr.mxu0 0.0
  %1836 = vmatpush1.xpose.msra.mxu0 0.0
  %1837 = vmatprep.subr.mxu0 0.0
  %1838 = vmatpush1.xpose.msra.mxu0 0.0
  %1839 = vmatprep.subr.mxu0 0.0
  %1840 = vmatpush1.xpose.msra.mxu0 0.0
  %1841 = vmatprep.subr.mxu0 0.0
  %1842 = vmatpush1.xpose.msra.mxu0 0.0
  %1843 = vmatprep.subr.mxu0 0.0
  %1844 = vmatpush1.xpose.msra.mxu0 0.0
  %1845 = vmatprep.subr.mxu0 0.0
  %1846 = vmatpush1.xpose.msra.mxu0 0.0
  %1847 = vmatprep.subr.mxu0 0.0
  %1848 = vmatpush1.xpose.msra.mxu0 0.0
  %1849 = vmatprep.subr.mxu0 0.0
  %1850 = vmatpush1.xpose.msra.mxu0 0.0
  %1851 = vmatprep.subr.mxu0 0.0
  %1852 = vmatpush1.xpose.msra.mxu0 0.0
  %1853 = vmatprep.subr.mxu0 0.0
  %1854 = vmatpush1.xpose.msra.mxu0 0.0
  %1855 = vmatprep.subr.mxu0 0.0
  %1856 = vmatpush1.xpose.msra.mxu0 0.0
  %1857 = vmatprep.subr.mxu0 0.0
  %1858 = vmatpush1.xpose.msra.mxu0 0.0
  %1859 = vmatprep.subr.mxu0 0.0
  %1860 = vmatpush1.xpose.msra.mxu0 0.0
  %1861 = vmatprep.subr.mxu0 0.0
  %1862 = vmatpush1.xpose.msra.mxu0 0.0
  %1863 = vmatprep.subr.mxu0 0.0
  %1864 = vmatpush1.xpose.msra.mxu0 0.0
  %1865 = vmatprep.subr.mxu0 0.0
  %1866 = vmatpush1.xpose.msra.mxu0 0.0
  %1867 = vmatprep.subr.mxu0 0.0
  %1868 = vmatpush1.xpose.msra.mxu0 0.0
  %1869 = vmatprep.subr.mxu0 0.0
  %1870 = vmatpush1.xpose.msra.mxu0 0.0
  %1871 = vmatprep.subr.mxu0 0.0
  %1872 = vmatpush1.xpose.msra.mxu0 0.0
  %1873 = vmatprep.subr.mxu0 0.0
  %1874 = vmatpush1.xpose.msra.mxu0 0.0
  %1875 = vmatprep.subr.mxu0 0.0
  %1876 = vmatpush1.xpose.msra.mxu0 0.0
  %1877 = vmatprep.subr.mxu0 0.0
  %1878 = vmatpush1.xpose.msra.mxu0 0.0
  %1879 = vmatprep.subr.mxu0 0.0
  %1880 = vmatpush1.xpose.msra.mxu0 0.0
  %1881 = vmatprep.subr.mxu0 0.0
  %1882 = vmatpush1.xpose.msra.mxu0 0.0
  %1883 = vmatprep.subr.mxu0 0.0
  %1884 = vmatpush1.xpose.msra.mxu0 0.0
  %1885 = vmatprep.subr.mxu0 0.0
  %1886 = vmatpush1.xpose.msra.mxu0 0.0
  %1887 = vmatprep.subr.mxu0 0.0
  %1888 = vmatpush1.xpose.msra.mxu0 0.0
  %1889 = vmatprep.subr.mxu0 0.0
  %1890 = vmatpush1.xpose.msra.mxu0 0.0
  %1891 = vmatprep.subr.mxu0 0.0
  %1892 = vmatpush1.xpose.msra.mxu0 0.0
  %1893 = vmatprep.mubr.f32.mxu0 0.0
  %1894 = vmatmul.mubr.f32.gmra.mrb[0].mxu0 %v1818
  %v1895 = vpop.f32.mrb[0].mxu0
  %v1896 = vadd.f32 0.0, %v1895
  %v1897 = vpop.f32.mrb[0].mxu0
  %1898 = vmatprep.mubr.f32.mxu0 0.0
  %1899 = vmatmul.mubr.f32.gmra.mrb[0].mxu0 %v1821
  %v1900 = vpop.f32.mrb[0].mxu0
  %v1901 = vadd.f32 0.0, %v1900
  %v1902 = vpop.f32.mrb[0].mxu0
  %1903 = vdwg.mxu0
  %v1905 = vsel %vm685, %v681, 0
  %v1908 = vsel %vm685, %v682, 0
  %v1911 = vsel %vm685, %v647, 0
  %v1914 = vsel %vm685, %v648, 0
  %1916 = vmatprep.subr.mxu0 0.0
  %1917 = vmatpush1.xpose.msra.mxu0 %v1911
  %1918 = vmatprep.subr.mxu0 0.0
  %1919 = vmatpush1.xpose.msra.mxu0 %v1914
  %1920 = vmatprep.subr.mxu0 0.0
  %1921 = vmatpush1.xpose.msra.mxu0 0.0
  %1922 = vmatprep.subr.mxu0 0.0
  %1923 = vmatpush1.xpose.msra.mxu0 0.0
  %1924 = vmatprep.subr.mxu0 0.0
  %1925 = vmatpush1.xpose.msra.mxu0 0.0
  %1926 = vmatprep.subr.mxu0 0.0
  %1927 = vmatpush1.xpose.msra.mxu0 0.0
  %1928 = vmatprep.subr.mxu0 0.0
  %1929 = vmatpush1.xpose.msra.mxu0 0.0
  %1930 = vmatprep.subr.mxu0 0.0
  %1931 = vmatpush1.xpose.msra.mxu0 0.0
  %1932 = vmatprep.subr.mxu0 0.0
  %1933 = vmatpush1.xpose.msra.mxu0 0.0
  %1934 = vmatprep.subr.mxu0 0.0
  %1935 = vmatpush1.xpose.msra.mxu0 0.0
  %1936 = vmatprep.subr.mxu0 0.0
  %1937 = vmatpush1.xpose.msra.mxu0 0.0
  %1938 = vmatprep.subr.mxu0 0.0
  %1939 = vmatpush1.xpose.msra.mxu0 0.0
  %1940 = vmatprep.subr.mxu0 0.0
  %1941 = vmatpush1.xpose.msra.mxu0 0.0
  %1942 = vmatprep.subr.mxu0 0.0
  %1943 = vmatpush1.xpose.msra.mxu0 0.0
  %1944 = vmatprep.subr.mxu0 0.0
  %1945 = vmatpush1.xpose.msra.mxu0 0.0
  %1946 = vmatprep.subr.mxu0 0.0
  %1947 = vmatpush1.xpose.msra.mxu0 0.0
  %1948 = vmatprep.subr.mxu0 0.0
  %1949 = vmatpush1.xpose.msra.mxu0 0.0
  %1950 = vmatprep.subr.mxu0 0.0
  %1951 = vmatpush1.xpose.msra.mxu0 0.0
  %1952 = vmatprep.subr.mxu0 0.0
  %1953 = vmatpush1.xpose.msra.mxu0 0.0
  %1954 = vmatprep.subr.mxu0 0.0
  %1955 = vmatpush1.xpose.msra.mxu0 0.0
  %1956 = vmatprep.subr.mxu0 0.0
  %1957 = vmatpush1.xpose.msra.mxu0 0.0
  %1958 = vmatprep.subr.mxu0 0.0
  %1959 = vmatpush1.xpose.msra.mxu0 0.0
  %1960 = vmatprep.subr.mxu0 0.0
  %1961 = vmatpush1.xpose.msra.mxu0 0.0
  %1962 = vmatprep.subr.mxu0 0.0
  %1963 = vmatpush1.xpose.msra.mxu0 0.0
  %1964 = vmatprep.subr.mxu0 0.0
  %1965 = vmatpush1.xpose.msra.mxu0 0.0
  %1966 = vmatprep.subr.mxu0 0.0
  %1967 = vmatpush1.xpose.msra.mxu0 0.0
  %1968 = vmatprep.subr.mxu0 0.0
  %1969 = vmatpush1.xpose.msra.mxu0 0.0
  %1970 = vmatprep.subr.mxu0 0.0
  %1971 = vmatpush1.xpose.msra.mxu0 0.0
  %1972 = vmatprep.subr.mxu0 0.0
  %1973 = vmatpush1.xpose.msra.mxu0 0.0
  %1974 = vmatprep.subr.mxu0 0.0
  %1975 = vmatpush1.xpose.msra.mxu0 0.0
  %1976 = vmatprep.subr.mxu0 0.0
  %1977 = vmatpush1.xpose.msra.mxu0 0.0
  %1978 = vmatprep.subr.mxu0 0.0
  %1979 = vmatpush1.xpose.msra.mxu0 0.0
  %1980 = vmatprep.mubr.f32.mxu0 0.0
  %1981 = vmatmul.mubr.f32.gmra.mrb[0].mxu0 %v1905
  %v1982 = vpop.f32.mrb[0].mxu0
  %v1983 = vadd.f32 0.0, %v1982
  %v1984 = vpop.f32.mrb[0].mxu0
  %1985 = vmatprep.mubr.f32.mxu0 0.0
  %1986 = vmatmul.mubr.f32.gmra.mrb[0].mxu0 %v1908
  %v1987 = vpop.f32.mrb[0].mxu0
  %v1988 = vadd.f32 0.0, %v1987
  %v1989 = vpop.f32.mrb[0].mxu0
  %1990 = vdwg.mxu0
  %v1992 = vsel %vm685, %v683, 0
  %v1995 = vsel %vm685, %v684, 0
  %v1998 = vsel %vm685, %v649, 0
  %v2001 = vsel %vm685, %v650, 0
  %2003 = vmatprep.subr.mxu0 0.0
  %2004 = vmatpush1.xpose.msra.mxu0 %v1998
  %2005 = vmatprep.subr.mxu0 0.0
  %2006 = vmatpush1.xpose.msra.mxu0 %v2001
  %2007 = vmatprep.subr.mxu0 0.0
  %2008 = vmatpush1.xpose.msra.mxu0 0.0
  %2009 = vmatprep.subr.mxu0 0.0
  %2010 = vmatpush1.xpose.msra.mxu0 0.0
  %2011 = vmatprep.subr.mxu0 0.0
  %2012 = vmatpush1.xpose.msra.mxu0 0.0
  %2013 = vmatprep.subr.mxu0 0.0
  %2014 = vmatpush1.xpose.msra.mxu0 0.0
  %2015 = vmatprep.subr.mxu0 0.0
  %2016 = vmatpush1.xpose.msra.mxu0 0.0
  %2017 = vmatprep.subr.mxu0 0.0
  %2018 = vmatpush1.xpose.msra.mxu0 0.0
  %2019 = vmatprep.subr.mxu0 0.0
  %2020 = vmatpush1.xpose.msra.mxu0 0.0
  %2021 = vmatprep.subr.mxu0 0.0
  %2022 = vmatpush1.xpose.msra.mxu0 0.0
  %2023 = vmatprep.subr.mxu0 0.0
  %2024 = vmatpush1.xpose.msra.mxu0 0.0
  %2025 = vmatprep.subr.mxu0 0.0
  %2026 = vmatpush1.xpose.msra.mxu0 0.0
  %2027 = vmatprep.subr.mxu0 0.0
  %2028 = vmatpush1.xpose.msra.mxu0 0.0
  %2029 = vmatprep.subr.mxu0 0.0
  %2030 = vmatpush1.xpose.msra.mxu0 0.0
  %2031 = vmatprep.subr.mxu0 0.0
  %2032 = vmatpush1.xpose.msra.mxu0 0.0
  %2033 = vmatprep.subr.mxu0 0.0
  %2034 = vmatpush1.xpose.msra.mxu0 0.0
  %2035 = vmatprep.subr.mxu0 0.0
  %2036 = vmatpush1.xpose.msra.mxu0 0.0
  %2037 = vmatprep.subr.mxu0 0.0
  %2038 = vmatpush1.xpose.msra.mxu0 0.0
  %2039 = vmatprep.subr.mxu0 0.0
  %2040 = vmatpush1.xpose.msra.mxu0 0.0
  %2041 = vmatprep.subr.mxu0 0.0
  %2042 = vmatpush1.xpose.msra.mxu0 0.0
  %2043 = vmatprep.subr.mxu0 0.0
  %2044 = vmatpush1.xpose.msra.mxu0 0.0
  %2045 = vmatprep.subr.mxu0 0.0
  %2046 = vmatpush1.xpose.msra.mxu0 0.0
  %2047 = vmatprep.subr.mxu0 0.0
  %2048 = vmatpush1.xpose.msra.mxu0 0.0
  %2049 = vmatprep.subr.mxu0 0.0
  %2050 = vmatpush1.xpose.msra.mxu0 0.0
  %2051 = vmatprep.subr.mxu0 0.0
  %2052 = vmatpush1.xpose.msra.mxu0 0.0
  %2053 = vmatprep.subr.mxu0 0.0
  %2054 = vmatpush1.xpose.msra.mxu0 0.0
  %2055 = vmatprep.subr.mxu0 0.0
  %2056 = vmatpush1.xpose.msra.mxu0 0.0
  %2057 = vmatprep.subr.mxu0 0.0
  %2058 = vmatpush1.xpose.msra.mxu0 0.0
  %2059 = vmatprep.subr.mxu0 0.0
  %2060 = vmatpush1.xpose.msra.mxu0 0.0
  %2061 = vmatprep.subr.mxu0 0.0
  %2062 = vmatpush1.xpose.msra.mxu0 0.0
  %2063 = vmatprep.subr.mxu0 0.0
  %2064 = vmatpush1.xpose.msra.mxu0 0.0
  %2065 = vmatprep.subr.mxu0 0.0
  %2066 = vmatpush1.xpose.msra.mxu0 0.0
  %2067 = vmatprep.mubr.f32.mxu0 0.0
  %2068 = vmatmul.mubr.f32.gmra.mrb[0].mxu0 %v1992
  %v2069 = vpop.f32.mrb[0].mxu0
  %v2070 = vadd.f32 0.0, %v2069
  %v2071 = vpop.f32.mrb[0].mxu0
  %2072 = vmatprep.mubr.f32.mxu0 0.0
  %2073 = vmatmul.mubr.f32.gmra.mrb[0].mxu0 %v1995
  %v2074 = vpop.f32.mrb[0].mxu0
  %v2075 = vadd.f32 0.0, %v2074
  %v2076 = vpop.f32.mrb[0].mxu0
  %2077 = vdwg.mxu0
  %v2078 = vmul.f32 %v765, 0.25
  %v2079 = vmul.f32 %v770, 0.25
  %v2080 = vmul.f32 %v852, 0.25
  %v2081 = vmul.f32 %v857, 0.25
  %v2082 = vmul.f32 %v939, 0.25
  %v2083 = vmul.f32 %v944, 0.25
  %v2084 = vmul.f32 %v1026, 0.25
  %v2085 = vmul.f32 %v1031, 0.25
  %v2086 = vmul.f32 %v1113, 0.25
  %v2087 = vmul.f32 %v1118, 0.25
  %v2088 = vmul.f32 %v1200, 0.25
  %v2089 = vmul.f32 %v1205, 0.25
  %v2090 = vmul.f32 %v1287, 0.25
  %v2091 = vmul.f32 %v1292, 0.25
  %v2092 = vmul.f32 %v1374, 0.25
  %v2093 = vmul.f32 %v1379, 0.25
  %v2094 = vmul.f32 %v1461, 0.25
  %v2095 = vmul.f32 %v1466, 0.25
  %v2096 = vmul.f32 %v1548, 0.25
  %v2097 = vmul.f32 %v1553, 0.25
  %v2098 = vmul.f32 %v1635, 0.25
  %v2099 = vmul.f32 %v1640, 0.25
  %v2100 = vmul.f32 %v1722, 0.25
  %v2101 = vmul.f32 %v1727, 0.25
  %v2102 = vmul.f32 %v1809, 0.25
  %v2103 = vmul.f32 %v1814, 0.25
  %v2104 = vmul.f32 %v1896, 0.25
  %v2105 = vmul.f32 %v1901, 0.25
  %v2106 = vmul.f32 %v1983, 0.25
  %v2107 = vmul.f32 %v1988, 0.25
  %v2108 = vmul.f32 %v2070, 0.25
  %v2109 = vmul.f32 %v2075, 0.25
  %v2110 = vsel %vm685, %v2078, -inf
  %v2111 = vsel %vm685, %v2079, -inf
  %v2112 = vmax.f32 %v2110, %v2111
  %v2113 = vrot.slane %v2112, 4
  %v2114 = vmax.f32 %v2112, %v2113
  %v2115 = vrot.slane %v2114, 2
  %v2116 = vmax.f32 %v2114, %v2115
  %v2117 = vrot.slane %v2116, 1
  %v2118 = vmax.f32 %v2116, %v2117
  %v2119 = vsel %vm685, %v2080, -inf
  %v2120 = vsel %vm685, %v2081, -inf
  %v2121 = vmax.f32 %v2119, %v2120
  %v2122 = vrot.slane %v2121, 4
  %v2123 = vmax.f32 %v2121, %v2122
  %v2124 = vrot.slane %v2123, 2
  %v2125 = vmax.f32 %v2123, %v2124
  %v2126 = vrot.slane %v2125, 1
  %v2127 = vmax.f32 %v2125, %v2126
  %v2128 = vsel %vm685, %v2082, -inf
  %v2129 = vsel %vm685, %v2083, -inf
  %v2130 = vmax.f32 %v2128, %v2129
  %v2131 = vrot.slane %v2130, 4
  %v2132 = vmax.f32 %v2130, %v2131
  %v2133 = vrot.slane %v2132, 2
  %v2134 = vmax.f32 %v2132, %v2133
  %v2135 = vrot.slane %v2134, 1
  %v2136 = vmax.f32 %v2134, %v2135
  %v2137 = vsel %vm685, %v2084, -inf
  %v2138 = vsel %vm685, %v2085, -inf
  %v2139 = vmax.f32 %v2137, %v2138
  %v2140 = vrot.slane %v2139, 4
  %v2141 = vmax.f32 %v2139, %v2140
  %v2142 = vrot.slane %v2141, 2
  %v2143 = vmax.f32 %v2141, %v2142
  %v2144 = vrot.slane %v2143, 1
  %v2145 = vmax.f32 %v2143, %v2144
  %v2146 = vsel %vm685, %v2086, -inf
  %v2147 = vsel %vm685, %v2087, -inf
  %v2148 = vmax.f32 %v2146, %v2147
  %v2149 = vrot.slane %v2148, 4
  %v2150 = vmax.f32 %v2148, %v2149
  %v2151 = vrot.slane %v2150, 2
  %v2152 = vmax.f32 %v2150, %v2151
  %v2153 = vrot.slane %v2152, 1
  %v2154 = vmax.f32 %v2152, %v2153
  %v2155 = vsel %vm685, %v2088, -inf
  %v2156 = vsel %vm685, %v2089, -inf
  %v2157 = vmax.f32 %v2155, %v2156
  %v2158 = vrot.slane %v2157, 4
  %v2159 = vmax.f32 %v2157, %v2158
  %v2160 = vrot.slane %v2159, 2
  %v2161 = vmax.f32 %v2159, %v2160
  %v2162 = vrot.slane %v2161, 1
  %v2163 = vmax.f32 %v2161, %v2162
  %v2164 = vsel %vm685, %v2090, -inf
  %v2165 = vsel %vm685, %v2091, -inf
  %v2166 = vmax.f32 %v2164, %v2165
  %v2167 = vrot.slane %v2166, 4
  %v2168 = vmax.f32 %v2166, %v2167
  %v2169 = vrot.slane %v2168, 2
  %v2170 = vmax.f32 %v2168, %v2169
  %v2171 = vrot.slane %v2170, 1
  %v2172 = vmax.f32 %v2170, %v2171
  %v2173 = vsel %vm685, %v2092, -inf
  %v2174 = vsel %vm685, %v2093, -inf
  %v2175 = vmax.f32 %v2173, %v2174
  %v2176 = vrot.slane %v2175, 4
  %v2177 = vmax.f32 %v2175, %v2176
  %v2178 = vrot.slane %v2177, 2
  %v2179 = vmax.f32 %v2177, %v2178
  %v2180 = vrot.slane %v2179, 1
  %v2181 = vmax.f32 %v2179, %v2180
  %v2182 = vsel %vm685, %v2094, -inf
  %v2183 = vsel %vm685, %v2095, -inf
  %v2184 = vmax.f32 %v2182, %v2183
  %v2185 = vrot.slane %v2184, 4
  %v2186 = vmax.f32 %v2184, %v2185
  %v2187 = vrot.slane %v2186, 2
  %v2188 = vmax.f32 %v2186, %v2187
  %v2189 = vrot.slane %v2188, 1
  %v2190 = vmax.f32 %v2188, %v2189
  %v2191 = vsel %vm685, %v2096, -inf
  %v2192 = vsel %vm685, %v2097, -inf
  %v2193 = vmax.f32 %v2191, %v2192
  %v2194 = vrot.slane %v2193, 4
  %v2195 = vmax.f32 %v2193, %v2194
  %v2196 = vrot.slane %v2195, 2
  %v2197 = vmax.f32 %v2195, %v2196
  %v2198 = vrot.slane %v2197, 1
  %v2199 = vmax.f32 %v2197, %v2198
  %v2200 = vsel %vm685, %v2098, -inf
  %v2201 = vsel %vm685, %v2099, -inf
  %v2202 = vmax.f32 %v2200, %v2201
  %v2203 = vrot.slane %v2202, 4
  %v2204 = vmax.f32 %v2202, %v2203
  %v2205 = vrot.slane %v2204, 2
  %v2206 = vmax.f32 %v2204, %v2205
  %v2207 = vrot.slane %v2206, 1
  %v2208 = vmax.f32 %v2206, %v2207
  %v2209 = vsel %vm685, %v2100, -inf
  %v2210 = vsel %vm685, %v2101, -inf
  %v2211 = vmax.f32 %v2209, %v2210
  %v2212 = vrot.slane %v2211, 4
  %v2213 = vmax.f32 %v2211, %v2212
  %v2214 = vrot.slane %v2213, 2
  %v2215 = vmax.f32 %v2213, %v2214
  %v2216 = vrot.slane %v2215, 1
  %v2217 = vmax.f32 %v2215, %v2216
  %v2218 = vsel %vm685, %v2102, -inf
  %v2219 = vsel %vm685, %v2103, -inf
  %v2220 = vmax.f32 %v2218, %v2219
  %v2221 = vrot.slane %v2220, 4
  %v2222 = vmax.f32 %v2220, %v2221
  %v2223 = vrot.slane %v2222, 2
  %v2224 = vmax.f32 %v2222, %v2223
  %v2225 = vrot.slane %v2224, 1
  %v2226 = vmax.f32 %v2224, %v2225
  %v2227 = vsel %vm685, %v2104, -inf
  %v2228 = vsel %vm685, %v2105, -inf
  %v2229 = vmax.f32 %v2227, %v2228
  %v2230 = vrot.slane %v2229, 4
  %v2231 = vmax.f32 %v2229, %v2230
  %v2232 = vrot.slane %v2231, 2
  %v2233 = vmax.f32 %v2231, %v2232
  %v2234 = vrot.slane %v2233, 1
  %v2235 = vmax.f32 %v2233, %v2234
  %v2236 = vsel %vm685, %v2106, -inf
  %v2237 = vsel %vm685, %v2107, -inf
  %v2238 = vmax.f32 %v2236, %v2237
  %v2239 = vrot.slane %v2238, 4
  %v2240 = vmax.f32 %v2238, %v2239
  %v2241 = vrot.slane %v2240, 2
  %v2242 = vmax.f32 %v2240, %v2241
  %v2243 = vrot.slane %v2242, 1
  %v2244 = vmax.f32 %v2242, %v2243
  %v2245 = vsel %vm685, %v2108, -inf
  %v2246 = vsel %vm685, %v2109, -inf
  %v2247 = vmax.f32 %v2245, %v2246
  %v2248 = vrot.slane %v2247, 4
  %v2249 = vmax.f32 %v2247, %v2248
  %v2250 = vrot.slane %v2249, 2
  %v2251 = vmax.f32 %v2249, %v2250
  %v2252 = vrot.slane %v2251, 1
  %v2253 = vmax.f32 %v2251, %v2252
  %v2254 = vsub.f32 %v2078, %v2118
  %v2255 = vsub.f32 %v2079, %v2118
  %v2256 = vsub.f32 %v2080, %v2127
  %v2257 = vsub.f32 %v2081, %v2127
  %v2258 = vsub.f32 %v2082, %v2136
  %v2259 = vsub.f32 %v2083, %v2136
  %v2260 = vsub.f32 %v2084, %v2145
  %v2261 = vsub.f32 %v2085, %v2145
  %v2262 = vsub.f32 %v2086, %v2154
  %v2263 = vsub.f32 %v2087, %v2154
  %v2264 = vsub.f32 %v2088, %v2163
  %v2265 = vsub.f32 %v2089, %v2163
  %v2266 = vsub.f32 %v2090, %v2172
  %v2267 = vsub.f32 %v2091, %v2172
  %v2268 = vsub.f32 %v2092, %v2181
  %v2269 = vsub.f32 %v2093, %v2181
  %v2270 = vsub.f32 %v2094, %v2190
  %v2271 = vsub.f32 %v2095, %v2190
  %v2272 = vsub.f32 %v2096, %v2199
  %v2273 = vsub.f32 %v2097, %v2199
  %v2274 = vsub.f32 %v2098, %v2208
  %v2275 = vsub.f32 %v2099, %v2208
  %v2276 = vsub.f32 %v2100, %v2217
  %v2277 = vsub.f32 %v2101, %v2217
  %v2278 = vsub.f32 %v2102, %v2226
  %v2279 = vsub.f32 %v2103, %v2226
  %v2280 = vsub.f32 %v2104, %v2235
  %v2281 = vsub.f32 %v2105, %v2235
  %v2282 = vsub.f32 %v2106, %v2244
  %v2283 = vsub.f32 %v2107, %v2244
  %v2284 = vsub.f32 %v2108, %v2253
  %v2285 = vsub.f32 %v2109, %v2253
  %v2286 = vmul.f32 %v2254, 1.442695
  %v2287 = vpow.pop %v2286
  %v2288 = vmul.f32 %v2255, 1.442695
  %v2289 = vpow.pop %v2288
  %v2290 = vmul.f32 %v2256, 1.442695
  %v2291 = vpow.pop %v2290
  %v2292 = vmul.f32 %v2257, 1.442695
  %v2293 = vpow.pop %v2292
  %v2294 = vmul.f32 %v2258, 1.442695
  %v2295 = vpow.pop %v2294
  %v2296 = vmul.f32 %v2259, 1.442695
  %v2297 = vpow.pop %v2296
  %v2298 = vmul.f32 %v2260, 1.442695
  %v2299 = vpow.pop %v2298
  %v2300 = vmul.f32 %v2261, 1.442695
  %v2301 = vpow.pop %v2300
  %v2302 = vmul.f32 %v2262, 1.442695
  %v2303 = vpow.pop %v2302
  %v2304 = vmul.f32 %v2263, 1.442695
  %v2305 = vpow.pop %v2304
  %v2306 = vmul.f32 %v2264, 1.442695
  %v2307 = vpow.pop %v2306
  %v2308 = vmul.f32 %v2265, 1.442695
  %v2309 = vpow.pop %v2308
  %v2310 = vmul.f32 %v2266, 1.442695
  %v2311 = vpow.pop %v2310
  %v2312 = vmul.f32 %v2267, 1.442695
  %v2313 = vpow.pop %v2312
  %v2314 = vmul.f32 %v2268, 1.442695
  %v2315 = vpow.pop %v2314
  %v2316 = vmul.f32 %v2269, 1.442695
  %v2317 = vpow.pop %v2316
  %v2318 = vmul.f32 %v2270, 1.442695
  %v2319 = vpow.pop %v2318
  %v2320 = vmul.f32 %v2271, 1.442695
  %v2321 = vpow.pop %v2320
  %v2322 = vmul.f32 %v2272, 1.442695
  %v2323 = vpow.pop %v2322
  %v2324 = vmul.f32 %v2273, 1.442695
  %v2325 = vpow.pop %v2324
  %v2326 = vmul.f32 %v2274, 1.442695
  %v2327 = vpow.pop %v2326
  %v2328 = vmul.f32 %v2275, 1.442695
  %v2329 = vpow.pop %v2328
  %v2330 = vmul.f32 %v2276, 1.442695
  %v2331 = vpow.pop %v2330
  %v2332 = vmul.f32 %v2277, 1.442695
  %v2333 = vpow.pop %v2332
  %v2334 = vmul.f32 %v2278, 1.442695
  %v2335 = vpow.pop %v2334
  %v2336 = vmul.f32 %v2279, 1.442695
  %v2337 = vpow.pop %v2336
  %v2338 = vmul.f32 %v2280, 1.442695
  %v2339 = vpow.pop %v2338
  %v2340 = vmul.f32 %v2281, 1.442695
  %v2341 = vpow.pop %v2340
  %v2342 = vmul.f32 %v2282, 1.442695
  %v2343 = vpow.pop %v2342
  %v2344 = vmul.f32 %v2283, 1.442695
  %v2345 = vpow.pop %v2344
  %v2346 = vmul.f32 %v2284, 1.442695
  %v2347 = vpow.pop %v2346
  %v2348 = vmul.f32 %v2285, 1.442695
  %v2349 = vpow.pop %v2348
  %v2350 = vsel %vm685, %v2287, 0.0
  %v2351 = vsel %vm685, %v2289, 0.0
  %v2352 = vadd.f32 %v2350, %v2351
  %v2353 = vrot.slane %v2352, 4
  %v2354 = vadd.f32 %v2352, %v2353
  %v2355 = vrot.slane %v2354, 2
  %v2356 = vadd.f32 %v2354, %v2355
  %v2357 = vrot.slane %v2356, 1
  %v2358 = vadd.f32 %v2356, %v2357
  %v2359 = vsel %vm685, %v2291, 0.0
  %v2360 = vsel %vm685, %v2293, 0.0
  %v2361 = vadd.f32 %v2359, %v2360
  %v2362 = vrot.slane %v2361, 4
  %v2363 = vadd.f32 %v2361, %v2362
  %v2364 = vrot.slane %v2363, 2
  %v2365 = vadd.f32 %v2363, %v2364
  %v2366 = vrot.slane %v2365, 1
  %v2367 = vadd.f32 %v2365, %v2366
  %v2368 = vsel %vm685, %v2295, 0.0
  %v2369 = vsel %vm685, %v2297, 0.0
  %v2370 = vadd.f32 %v2368, %v2369
  %v2371 = vrot.slane %v2370, 4
  %v2372 = vadd.f32 %v2370, %v2371
  %v2373 = vrot.slane %v2372, 2
  %v2374 = vadd.f32 %v2372, %v2373
  %v2375 = vrot.slane %v2374, 1
  %v2376 = vadd.f32 %v2374, %v2375
  %v2377 = vsel %vm685, %v2299, 0.0
  %v2378 = vsel %vm685, %v2301, 0.0
  %v2379 = vadd.f32 %v2377, %v2378
  %v2380 = vrot.slane %v2379, 4
  %v2381 = vadd.f32 %v2379, %v2380
  %v2382 = vrot.slane %v2381, 2
  %v2383 = vadd.f32 %v2381, %v2382
  %v2384 = vrot.slane %v2383, 1
  %v2385 = vadd.f32 %v2383, %v2384
  %v2386 = vsel %vm685, %v2303, 0.0
  %v2387 = vsel %vm685, %v2305, 0.0
  %v2388 = vadd.f32 %v2386, %v2387
  %v2389 = vrot.slane %v2388, 4
  %v2390 = vadd.f32 %v2388, %v2389
  %v2391 = vrot.slane %v2390, 2
  %v2392 = vadd.f32 %v2390, %v2391
  %v2393 = vrot.slane %v2392, 1
  %v2394 = vadd.f32 %v2392, %v2393
  %v2395 = vsel %vm685, %v2307, 0.0
  %v2396 = vsel %vm685, %v2309, 0.0
  %v2397 = vadd.f32 %v2395, %v2396
  %v2398 = vrot.slane %v2397, 4
  %v2399 = vadd.f32 %v2397, %v2398
  %v2400 = vrot.slane %v2399, 2
  %v2401 = vadd.f32 %v2399, %v2400
  %v2402 = vrot.slane %v2401, 1
  %v2403 = vadd.f32 %v2401, %v2402
  %v2404 = vsel %vm685, %v2311, 0.0
  %v2405 = vsel %vm685, %v2313, 0.0
  %v2406 = vadd.f32 %v2404, %v2405
  %v2407 = vrot.slane %v2406, 4
  %v2408 = vadd.f32 %v2406, %v2407
  %v2409 = vrot.slane %v2408, 2
  %v2410 = vadd.f32 %v2408, %v2409
  %v2411 = vrot.slane %v2410, 1
  %v2412 = vadd.f32 %v2410, %v2411
  %v2413 = vsel %vm685, %v2315, 0.0
  %v2414 = vsel %vm685, %v2317, 0.0
  %v2415 = vadd.f32 %v2413, %v2414
  %v2416 = vrot.slane %v2415, 4
  %v2417 = vadd.f32 %v2415, %v2416
  %v2418 = vrot.slane %v2417, 2
  %v2419 = vadd.f32 %v2417, %v2418
  %v2420 = vrot.slane %v2419, 1
  %v2421 = vadd.f32 %v2419, %v2420
  %v2422 = vsel %vm685, %v2319, 0.0
  %v2423 = vsel %vm685, %v2321, 0.0
  %v2424 = vadd.f32 %v2422, %v2423
  %v2425 = vrot.slane %v2424, 4
  %v2426 = vadd.f32 %v2424, %v2425
  %v2427 = vrot.slane %v2426, 2
  %v2428 = vadd.f32 %v2426, %v2427
  %v2429 = vrot.slane %v2428, 1
  %v2430 = vadd.f32 %v2428, %v2429
  %v2431 = vsel %vm685, %v2323, 0.0
  %v2432 = vsel %vm685, %v2325, 0.0
  %v2433 = vadd.f32 %v2431, %v2432
  %v2434 = vrot.slane %v2433, 4
  %v2435 = vadd.f32 %v2433, %v2434
  %v2436 = vrot.slane %v2435, 2
  %v2437 = vadd.f32 %v2435, %v2436
  %v2438 = vrot.slane %v2437, 1
  %v2439 = vadd.f32 %v2437, %v2438
  %v2440 = vsel %vm685, %v2327, 0.0
  %v2441 = vsel %vm685, %v2329, 0.0
  %v2442 = vadd.f32 %v2440, %v2441
  %v2443 = vrot.slane %v2442, 4
  %v2444 = vadd.f32 %v2442, %v2443
  %v2445 = vrot.slane %v2444, 2
  %v2446 = vadd.f32 %v2444, %v2445
  %v2447 = vrot.slane %v2446, 1
  %v2448 = vadd.f32 %v2446, %v2447
  %v2449 = vsel %vm685, %v2331, 0.0
  %v2450 = vsel %vm685, %v2333, 0.0
  %v2451 = vadd.f32 %v2449, %v2450
  %v2452 = vrot.slane %v2451, 4
  %v2453 = vadd.f32 %v2451, %v2452
  %v2454 = vrot.slane %v2453, 2
  %v2455 = vadd.f32 %v2453, %v2454
  %v2456 = vrot.slane %v2455, 1
  %v2457 = vadd.f32 %v2455, %v2456
  %v2458 = vsel %vm685, %v2335, 0.0
  %v2459 = vsel %vm685, %v2337, 0.0
  %v2460 = vadd.f32 %v2458, %v2459
  %v2461 = vrot.slane %v2460, 4
  %v2462 = vadd.f32 %v2460, %v2461
  %v2463 = vrot.slane %v2462, 2
  %v2464 = vadd.f32 %v2462, %v2463
  %v2465 = vrot.slane %v2464, 1
  %v2466 = vadd.f32 %v2464, %v2465
  %v2467 = vsel %vm685, %v2339, 0.0
  %v2468 = vsel %vm685, %v2341, 0.0
  %v2469 = vadd.f32 %v2467, %v2468
  %v2470 = vrot.slane %v2469, 4
  %v2471 = vadd.f32 %v2469, %v2470
  %v2472 = vrot.slane %v2471, 2
  %v2473 = vadd.f32 %v2471, %v2472
  %v2474 = vrot.slane %v2473, 1
  %v2475 = vadd.f32 %v2473, %v2474
  %v2476 = vsel %vm685, %v2343, 0.0
  %v2477 = vsel %vm685, %v2345, 0.0
  %v2478 = vadd.f32 %v2476, %v2477
  %v2479 = vrot.slane %v2478, 4
  %v2480 = vadd.f32 %v2478, %v2479
  %v2481 = vrot.slane %v2480, 2
  %v2482 = vadd.f32 %v2480, %v2481
  %v2483 = vrot.slane %v2482, 1
  %v2484 = vadd.f32 %v2482, %v2483
  %v2485 = vsel %vm685, %v2347, 0.0
  %v2486 = vsel %vm685, %v2349, 0.0
  %v2487 = vadd.f32 %v2485, %v2486
  %v2488 = vrot.slane %v2487, 4
  %v2489 = vadd.f32 %v2487, %v2488
  %v2490 = vrot.slane %v2489, 2
  %v2491 = vadd.f32 %v2489, %v2490
  %v2492 = vrot.slane %v2491, 1
  %v2493 = vadd.f32 %v2491, %v2492
  %v2494 = vrcp.pop %v2358
  %v2495 = vmul.f32 %v2287, %v2494
  %v2496 = vmul.f32 %v2289, %v2494
  %v2497 = vrcp.pop %v2367
  %v2498 = vmul.f32 %v2291, %v2497
  %v2499 = vmul.f32 %v2293, %v2497
  %v2500 = vrcp.pop %v2376
  %v2501 = vmul.f32 %v2295, %v2500
  %v2502 = vmul.f32 %v2297, %v2500
  %v2503 = vrcp.pop %v2385
  %v2504 = vmul.f32 %v2299, %v2503
  %v2505 = vmul.f32 %v2301, %v2503
  %v2506 = vrcp.pop %v2394
  %v2507 = vmul.f32 %v2303, %v2506
  %v2508 = vmul.f32 %v2305, %v2506
  %v2509 = vrcp.pop %v2403
  %v2510 = vmul.f32 %v2307, %v2509
  %v2511 = vmul.f32 %v2309, %v2509
  %v2512 = vrcp.pop %v2412
  %v2513 = vmul.f32 %v2311, %v2512
  %v2514 = vmul.f32 %v2313, %v2512
  %v2515 = vrcp.pop %v2421
  %v2516 = vmul.f32 %v2315, %v2515
  %v2517 = vmul.f32 %v2317, %v2515
  %v2518 = vrcp.pop %v2430
  %v2519 = vmul.f32 %v2319, %v2518
  %v2520 = vmul.f32 %v2321, %v2518
  %v2521 = vrcp.pop %v2439
  %v2522 = vmul.f32 %v2323, %v2521
  %v2523 = vmul.f32 %v2325, %v2521
  %v2524 = vrcp.pop %v2448
  %v2525 = vmul.f32 %v2327, %v2524
  %v2526 = vmul.f32 %v2329, %v2524
  %v2527 = vrcp.pop %v2457
  %v2528 = vmul.f32 %v2331, %v2527
  %v2529 = vmul.f32 %v2333, %v2527
  %v2530 = vrcp.pop %v2466
  %v2531 = vmul.f32 %v2335, %v2530
  %v2532 = vmul.f32 %v2337, %v2530
  %v2533 = vrcp.pop %v2475
  %v2534 = vmul.f32 %v2339, %v2533
  %v2535 = vmul.f32 %v2341, %v2533
  %v2536 = vrcp.pop %v2484
  %v2537 = vmul.f32 %v2343, %v2536
  %v2538 = vmul.f32 %v2345, %v2536
  %v2539 = vrcp.pop %v2493
  %v2540 = vmul.f32 %v2347, %v2539
  %v2541 = vmul.f32 %v2349, %v2539
  %v2543 = vsel %vm685, %v2495, 0
  %v2546 = vsel %vm685, %v2496, 0
  %2548 = vmatprep.subr.mxu0 0.0
  %2549 = vmatpush1.msra.mxu0 %v29
  %2550 = vmatprep.subr.mxu0 0.0
  %2551 = vmatpush1.msra.mxu0 %v30
  %2552 = vmatprep.subr.mxu0 0.0
  %2553 = vmatpush1.msra.mxu0 0.0
  %2554 = vmatprep.subr.mxu0 0.0
  %2555 = vmatpush1.msra.mxu0 0.0
  %2556 = vmatprep.subr.mxu0 0.0
  %2557 = vmatpush1.msra.mxu0 0.0
  %2558 = vmatprep.subr.mxu0 0.0
  %2559 = vmatpush1.msra.mxu0 0.0
  %2560 = vmatprep.subr.mxu0 0.0
  %2561 = vmatpush1.msra.mxu0 0.0
  %2562 = vmatprep.subr.mxu0 0.0
  %2563 = vmatpush1.msra.mxu0 0.0
  %2564 = vmatprep.subr.mxu0 0.0
  %2565 = vmatpush1.msra.mxu0 0.0
  %2566 = vmatprep.subr.mxu0 0.0
  %2567 = vmatpush1.msra.mxu0 0.0
  %2568 = vmatprep.subr.mxu0 0.0
  %2569 = vmatpush1.msra.mxu0 0.0
  %2570 = vmatprep.subr.mxu0 0.0
  %2571 = vmatpush1.msra.mxu0 0.0
  %2572 = vmatprep.subr.mxu0 0.0
  %2573 = vmatpush1.msra.mxu0 0.0
  %2574 = vmatprep.subr.mxu0 0.0
  %2575 = vmatpush1.msra.mxu0 0.0
  %2576 = vmatprep.subr.mxu0 0.0
  %2577 = vmatpush1.msra.mxu0 0.0
  %2578 = vmatprep.subr.mxu0 0.0
  %2579 = vmatpush1.msra.mxu0 0.0
  %2580 = vmatprep.subr.mxu0 0.0
  %2581 = vmatpush1.msra.mxu0 0.0
  %2582 = vmatprep.subr.mxu0 0.0
  %2583 = vmatpush1.msra.mxu0 0.0
  %2584 = vmatprep.subr.mxu0 0.0
  %2585 = vmatpush1.msra.mxu0 0.0
  %2586 = vmatprep.subr.mxu0 0.0
  %2587 = vmatpush1.msra.mxu0 0.0
  %2588 = vmatprep.subr.mxu0 0.0
  %2589 = vmatpush1.msra.mxu0 0.0
  %2590 = vmatprep.subr.mxu0 0.0
  %2591 = vmatpush1.msra.mxu0 0.0
  %2592 = vmatprep.subr.mxu0 0.0
  %2593 = vmatpush1.msra.mxu0 0.0
  %2594 = vmatprep.subr.mxu0 0.0
  %2595 = vmatpush1.msra.mxu0 0.0
  %2596 = vmatprep.subr.mxu0 0.0
  %2597 = vmatpush1.msra.mxu0 0.0
  %2598 = vmatprep.subr.mxu0 0.0
  %2599 = vmatpush1.msra.mxu0 0.0
  %2600 = vmatprep.subr.mxu0 0.0
  %2601 = vmatpush1.msra.mxu0 0.0
  %2602 = vmatprep.subr.mxu0 0.0
  %2603 = vmatpush1.msra.mxu0 0.0
  %2604 = vmatprep.subr.mxu0 0.0
  %2605 = vmatpush1.msra.mxu0 0.0
  %2606 = vmatprep.subr.mxu0 0.0
  %2607 = vmatpush1.msra.mxu0 0.0
  %2608 = vmatprep.subr.mxu0 0.0
  %2609 = vmatpush1.msra.mxu0 0.0
  %2610 = vmatprep.subr.mxu0 0.0
  %2611 = vmatpush1.msra.mxu0 0.0
  %2612 = vmatprep.mubr.f32.mxu0 0.0
  %2613 = vmatmul.mubr.f32.gmra.mrb[0].mxu0 %v2543
  %v2614 = vpop.f32.mrb[0].mxu0
  %v2615 = vadd.f32 0.0, %v2614
  %v2616 = vpop.f32.mrb[0].mxu0
  %2617 = vmatprep.mubr.f32.mxu0 0.0
  %2618 = vmatmul.mubr.f32.gmra.mrb[0].mxu0 %v2546
  %v2619 = vpop.f32.mrb[0].mxu0
  %v2620 = vadd.f32 0.0, %v2619
  %v2621 = vpop.f32.mrb[0].mxu0
  %2622 = vdwg.mxu0
  %v2624 = vsel %vm685, %v2498, 0
  %v2627 = vsel %vm685, %v2499, 0
  %2629 = vmatprep.subr.mxu0 0.0
  %2630 = vmatpush1.msra.mxu0 %v31
  %2631 = vmatprep.subr.mxu0 0.0
  %2632 = vmatpush1.msra.mxu0 %v32
  %2633 = vmatprep.subr.mxu0 0.0
  %2634 = vmatpush1.msra.mxu0 0.0
  %2635 = vmatprep.subr.mxu0 0.0
  %2636 = vmatpush1.msra.mxu0 0.0
  %2637 = vmatprep.subr.mxu0 0.0
  %2638 = vmatpush1.msra.mxu0 0.0
  %2639 = vmatprep.subr.mxu0 0.0
  %2640 = vmatpush1.msra.mxu0 0.0
  %2641 = vmatprep.subr.mxu0 0.0
  %2642 = vmatpush1.msra.mxu0 0.0
  %2643 = vmatprep.subr.mxu0 0.0
  %2644 = vmatpush1.msra.mxu0 0.0
  %2645 = vmatprep.subr.mxu0 0.0
  %2646 = vmatpush1.msra.mxu0 0.0
  %2647 = vmatprep.subr.mxu0 0.0
  %2648 = vmatpush1.msra.mxu0 0.0
  %2649 = vmatprep.subr.mxu0 0.0
  %2650 = vmatpush1.msra.mxu0 0.0
  %2651 = vmatprep.subr.mxu0 0.0
  %2652 = vmatpush1.msra.mxu0 0.0
  %2653 = vmatprep.subr.mxu0 0.0
  %2654 = vmatpush1.msra.mxu0 0.0
  %2655 = vmatprep.subr.mxu0 0.0
  %2656 = vmatpush1.msra.mxu0 0.0
  %2657 = vmatprep.subr.mxu0 0.0
  %2658 = vmatpush1.msra.mxu0 0.0
  %2659 = vmatprep.subr.mxu0 0.0
  %2660 = vmatpush1.msra.mxu0 0.0
  %2661 = vmatprep.subr.mxu0 0.0
  %2662 = vmatpush1.msra.mxu0 0.0
  %2663 = vmatprep.subr.mxu0 0.0
  %2664 = vmatpush1.msra.mxu0 0.0
  %2665 = vmatprep.subr.mxu0 0.0
  %2666 = vmatpush1.msra.mxu0 0.0
  %2667 = vmatprep.subr.mxu0 0.0
  %2668 = vmatpush1.msra.mxu0 0.0
  %2669 = vmatprep.subr.mxu0 0.0
  %2670 = vmatpush1.msra.mxu0 0.0
  %2671 = vmatprep.subr.mxu0 0.0
  %2672 = vmatpush1.msra.mxu0 0.0
  %2673 = vmatprep.subr.mxu0 0.0
  %2674 = vmatpush1.msra.mxu0 0.0
  %2675 = vmatprep.subr.mxu0 0.0
  %2676 = vmatpush1.msra.mxu0 0.0
  %2677 = vmatprep.subr.mxu0 0.0
  %2678 = vmatpush1.msra.mxu0 0.0
  %2679 = vmatprep.subr.mxu0 0.0
  %2680 = vmatpush1.msra.mxu0 0.0
  %2681 = vmatprep.subr.mxu0 0.0
  %2682 = vmatpush1.msra.mxu0 0.0
  %2683 = vmatprep.subr.mxu0 0.0
  %2684 = vmatpush1.msra.mxu0 0.0
  %2685 = vmatprep.subr.mxu0 0.0
  %2686 = vmatpush1.msra.mxu0 0.0
  %2687 = vmatprep.subr.mxu0 0.0
  %2688 = vmatpush1.msra.mxu0 0.0
  %2689 = vmatprep.subr.mxu0 0.0
  %2690 = vmatpush1.msra.mxu0 0.0
  %2691 = vmatprep.subr.mxu0 0.0
  %2692 = vmatpush1.msra.mxu0 0.0
  %2693 = vmatprep.mubr.f32.mxu0 0.0
  %2694 = vmatmul.mubr.f32.gmra.mrb[0].mxu0 %v2624
  %v2695 = vpop.f32.mrb[0].mxu0
  %v2696 = vadd.f32 0.0, %v2695
  %v2697 = vpop.f32.mrb[0].mxu0
  %2698 = vmatprep.mubr.f32.mxu0 0.0
  %2699 = vmatmul.mubr.f32.gmra.mrb[0].mxu0 %v2627
  %v2700 = vpop.f32.mrb[0].mxu0
  %v2701 = vadd.f32 0.0, %v2700
  %v2702 = vpop.f32.mrb[0].mxu0
  %2703 = vdwg.mxu0
  %v2705 = vsel %vm685, %v2501, 0
  %v2708 = vsel %vm685, %v2502, 0
  %2710 = vmatprep.subr.mxu0 0.0
  %2711 = vmatpush1.msra.mxu0 %v33
  %2712 = vmatprep.subr.mxu0 0.0
  %2713 = vmatpush1.msra.mxu0 %v34
  %2714 = vmatprep.subr.mxu0 0.0
  %2715 = vmatpush1.msra.mxu0 0.0
  %2716 = vmatprep.subr.mxu0 0.0
  %2717 = vmatpush1.msra.mxu0 0.0
  %2718 = vmatprep.subr.mxu0 0.0
  %2719 = vmatpush1.msra.mxu0 0.0
  %2720 = vmatprep.subr.mxu0 0.0
  %2721 = vmatpush1.msra.mxu0 0.0
  %2722 = vmatprep.subr.mxu0 0.0
  %2723 = vmatpush1.msra.mxu0 0.0
  %2724 = vmatprep.subr.mxu0 0.0
  %2725 = vmatpush1.msra.mxu0 0.0
  %2726 = vmatprep.subr.mxu0 0.0
  %2727 = vmatpush1.msra.mxu0 0.0
  %2728 = vmatprep.subr.mxu0 0.0
  %2729 = vmatpush1.msra.mxu0 0.0
  %2730 = vmatprep.subr.mxu0 0.0
  %2731 = vmatpush1.msra.mxu0 0.0
  %2732 = vmatprep.subr.mxu0 0.0
  %2733 = vmatpush1.msra.mxu0 0.0
  %2734 = vmatprep.subr.mxu0 0.0
  %2735 = vmatpush1.msra.mxu0 0.0
  %2736 = vmatprep.subr.mxu0 0.0
  %2737 = vmatpush1.msra.mxu0 0.0
  %2738 = vmatprep.subr.mxu0 0.0
  %2739 = vmatpush1.msra.mxu0 0.0
  %2740 = vmatprep.subr.mxu0 0.0
  %2741 = vmatpush1.msra.mxu0 0.0
  %2742 = vmatprep.subr.mxu0 0.0
  %2743 = vmatpush1.msra.mxu0 0.0
  %2744 = vmatprep.subr.mxu0 0.0
  %2745 = vmatpush1.msra.mxu0 0.0
  %2746 = vmatprep.subr.mxu0 0.0
  %2747 = vmatpush1.msra.mxu0 0.0
  %2748 = vmatprep.subr.mxu0 0.0
  %2749 = vmatpush1.msra.mxu0 0.0
  %2750 = vmatprep.subr.mxu0 0.0
  %2751 = vmatpush1.msra.mxu0 0.0
  %2752 = vmatprep.subr.mxu0 0.0
  %2753 = vmatpush1.msra.mxu0 0.0
  %2754 = vmatprep.subr.mxu0 0.0
  %2755 = vmatpush1.msra.mxu0 0.0
  %2756 = vmatprep.subr.mxu0 0.0
  %2757 = vmatpush1.msra.mxu0 0.0
  %2758 = vmatprep.subr.mxu0 0.0
  %2759 = vmatpush1.msra.mxu0 0.0
  %2760 = vmatprep.subr.mxu0 0.0
  %2761 = vmatpush1.msra.mxu0 0.0
  %2762 = vmatprep.subr.mxu0 0.0
  %2763 = vmatpush1.msra.mxu0 0.0
  %2764 = vmatprep.subr.mxu0 0.0
  %2765 = vmatpush1.msra.mxu0 0.0
  %2766 = vmatprep.subr.mxu0 0.0
  %2767 = vmatpush1.msra.mxu0 0.0
  %2768 = vmatprep.subr.mxu0 0.0
  %2769 = vmatpush1.msra.mxu0 0.0
  %2770 = vmatprep.subr.mxu0 0.0
  %2771 = vmatpush1.msra.mxu0 0.0
  %2772 = vmatprep.subr.mxu0 0.0
  %2773 = vmatpush1.msra.mxu0 0.0
  %2774 = vmatprep.mubr.f32.mxu0 0.0
  %2775 = vmatmul.mubr.f32.gmra.mrb[0].mxu0 %v2705
  %v2776 = vpop.f32.mrb[0].mxu0
  %v2777 = vadd.f32 0.0, %v2776
  %v2778 = vpop.f32.mrb[0].mxu0
  %2779 = vmatprep.mubr.f32.mxu0 0.0
  %2780 = vmatmul.mubr.f32.gmra.mrb[0].mxu0 %v2708
  %v2781 = vpop.f32.mrb[0].mxu0
  %v2782 = vadd.f32 0.0, %v2781
  %v2783 = vpop.f32.mrb[0].mxu0
  %2784 = vdwg.mxu0
  %v2786 = vsel %vm685, %v2504, 0
  %v2789 = vsel %vm685, %v2505, 0
  %2791 = vmatprep.subr.mxu0 0.0
  %2792 = vmatpush1.msra.mxu0 %v35
  %2793 = vmatprep.subr.mxu0 0.0
  %2794 = vmatpush1.msra.mxu0 %v36
  %2795 = vmatprep.subr.mxu0 0.0
  %2796 = vmatpush1.msra.mxu0 0.0
  %2797 = vmatprep.subr.mxu0 0.0
  %2798 = vmatpush1.msra.mxu0 0.0
  %2799 = vmatprep.subr.mxu0 0.0
  %2800 = vmatpush1.msra.mxu0 0.0
  %2801 = vmatprep.subr.mxu0 0.0
  %2802 = vmatpush1.msra.mxu0 0.0
  %2803 = vmatprep.subr.mxu0 0.0
  %2804 = vmatpush1.msra.mxu0 0.0
  %2805 = vmatprep.subr.mxu0 0.0
  %2806 = vmatpush1.msra.mxu0 0.0
  %2807 = vmatprep.subr.mxu0 0.0
  %2808 = vmatpush1.msra.mxu0 0.0
  %2809 = vmatprep.subr.mxu0 0.0
  %2810 = vmatpush1.msra.mxu0 0.0
  %2811 = vmatprep.subr.mxu0 0.0
  %2812 = vmatpush1.msra.mxu0 0.0
  %2813 = vmatprep.subr.mxu0 0.0
  %2814 = vmatpush1.msra.mxu0 0.0
  %2815 = vmatprep.subr.mxu0 0.0
  %2816 = vmatpush1.msra.mxu0 0.0
  %2817 = vmatprep.subr.mxu0 0.0
  %2818 = vmatpush1.msra.mxu0 0.0
  %2819 = vmatprep.subr.mxu0 0.0
  %2820 = vmatpush1.msra.mxu0 0.0
  %2821 = vmatprep.subr.mxu0 0.0
  %2822 = vmatpush1.msra.mxu0 0.0
  %2823 = vmatprep.subr.mxu0 0.0
  %2824 = vmatpush1.msra.mxu0 0.0
  %2825 = vmatprep.subr.mxu0 0.0
  %2826 = vmatpush1.msra.mxu0 0.0
  %2827 = vmatprep.subr.mxu0 0.0
  %2828 = vmatpush1.msra.mxu0 0.0
  %2829 = vmatprep.subr.mxu0 0.0
  %2830 = vmatpush1.msra.mxu0 0.0
  %2831 = vmatprep.subr.mxu0 0.0
  %2832 = vmatpush1.msra.mxu0 0.0
  %2833 = vmatprep.subr.mxu0 0.0
  %2834 = vmatpush1.msra.mxu0 0.0
  %2835 = vmatprep.subr.mxu0 0.0
  %2836 = vmatpush1.msra.mxu0 0.0
  %2837 = vmatprep.subr.mxu0 0.0
  %2838 = vmatpush1.msra.mxu0 0.0
  %2839 = vmatprep.subr.mxu0 0.0
  %2840 = vmatpush1.msra.mxu0 0.0
  %2841 = vmatprep.subr.mxu0 0.0
  %2842 = vmatpush1.msra.mxu0 0.0
  %2843 = vmatprep.subr.mxu0 0.0
  %2844 = vmatpush1.msra.mxu0 0.0
  %2845 = vmatprep.subr.mxu0 0.0
  %2846 = vmatpush1.msra.mxu0 0.0
  %2847 = vmatprep.subr.mxu0 0.0
  %2848 = vmatpush1.msra.mxu0 0.0
  %2849 = vmatprep.subr.mxu0 0.0
  %2850 = vmatpush1.msra.mxu0 0.0
  %2851 = vmatprep.subr.mxu0 0.0
  %2852 = vmatpush1.msra.mxu0 0.0
  %2853 = vmatprep.subr.mxu0 0.0
  %2854 = vmatpush1.msra.mxu0 0.0
  %2855 = vmatprep.mubr.f32.mxu0 0.0
  %2856 = vmatmul.mubr.f32.gmra.mrb[0].mxu0 %v2786
  %v2857 = vpop.f32.mrb[0].mxu0
  %v2858 = vadd.f32 0.0, %v2857
  %v2859 = vpop.f32.mrb[0].mxu0
  %2860 = vmatprep.mubr.f32.mxu0 0.0
  %2861 = vmatmul.mubr.f32.gmra.mrb[0].mxu0 %v2789
  %v2862 = vpop.f32.mrb[0].mxu0
  %v2863 = vadd.f32 0.0, %v2862
  %v2864 = vpop.f32.mrb[0].mxu0
  %2865 = vdwg.mxu0
  %v2867 = vsel %vm685, %v2507, 0
  %v2870 = vsel %vm685, %v2508, 0
  %2872 = vmatprep.subr.mxu0 0.0
  %2873 = vmatpush1.msra.mxu0 %v37
  %2874 = vmatprep.subr.mxu0 0.0
  %2875 = vmatpush1.msra.mxu0 %v38
  %2876 = vmatprep.subr.mxu0 0.0
  %2877 = vmatpush1.msra.mxu0 0.0
  %2878 = vmatprep.subr.mxu0 0.0
  %2879 = vmatpush1.msra.mxu0 0.0
  %2880 = vmatprep.subr.mxu0 0.0
  %2881 = vmatpush1.msra.mxu0 0.0
  %2882 = vmatprep.subr.mxu0 0.0
  %2883 = vmatpush1.msra.mxu0 0.0
  %2884 = vmatprep.subr.mxu0 0.0
  %2885 = vmatpush1.msra.mxu0 0.0
  %2886 = vmatprep.subr.mxu0 0.0
  %2887 = vmatpush1.msra.mxu0 0.0
  %2888 = vmatprep.subr.mxu0 0.0
  %2889 = vmatpush1.msra.mxu0 0.0
  %2890 = vmatprep.subr.mxu0 0.0
  %2891 = vmatpush1.msra.mxu0 0.0
  %2892 = vmatprep.subr.mxu0 0.0
  %2893 = vmatpush1.msra.mxu0 0.0
  %2894 = vmatprep.subr.mxu0 0.0
  %2895 = vmatpush1.msra.mxu0 0.0
  %2896 = vmatprep.subr.mxu0 0.0
  %2897 = vmatpush1.msra.mxu0 0.0
  %2898 = vmatprep.subr.mxu0 0.0
  %2899 = vmatpush1.msra.mxu0 0.0
  %2900 = vmatprep.subr.mxu0 0.0
  %2901 = vmatpush1.msra.mxu0 0.0
  %2902 = vmatprep.subr.mxu0 0.0
  %2903 = vmatpush1.msra.mxu0 0.0
  %2904 = vmatprep.subr.mxu0 0.0
  %2905 = vmatpush1.msra.mxu0 0.0
  %2906 = vmatprep.subr.mxu0 0.0
  %2907 = vmatpush1.msra.mxu0 0.0
  %2908 = vmatprep.subr.mxu0 0.0
  %2909 = vmatpush1.msra.mxu0 0.0
  %2910 = vmatprep.subr.mxu0 0.0
  %2911 = vmatpush1.msra.mxu0 0.0
  %2912 = vmatprep.subr.mxu0 0.0
  %2913 = vmatpush1.msra.mxu0 0.0
  %2914 = vmatprep.subr.mxu0 0.0
  %2915 = vmatpush1.msra.mxu0 0.0
  %2916 = vmatprep.subr.mxu0 0.0
  %2917 = vmatpush1.msra.mxu0 0.0
  %2918 = vmatprep.subr.mxu0 0.0
  %2919 = vmatpush1.msra.mxu0 0.0
  %2920 = vmatprep.subr.mxu0 0.0
  %2921 = vmatpush1.msra.mxu0 0.0
  %2922 = vmatprep.subr.mxu0 0.0
  %2923 = vmatpush1.msra.mxu0 0.0
  %2924 = vmatprep.subr.mxu0 0.0
  %2925 = vmatpush1.msra.mxu0 0.0
  %2926 = vmatprep.subr.mxu0 0.0
  %2927 = vmatpush1.msra.mxu0 0.0
  %2928 = vmatprep.subr.mxu0 0.0
  %2929 = vmatpush1.msra.mxu0 0.0
  %2930 = vmatprep.subr.mxu0 0.0
  %2931 = vmatpush1.msra.mxu0 0.0
  %2932 = vmatprep.subr.mxu0 0.0
  %2933 = vmatpush1.msra.mxu0 0.0
  %2934 = vmatprep.subr.mxu0 0.0
  %2935 = vmatpush1.msra.mxu0 0.0
  %2936 = vmatprep.mubr.f32.mxu0 0.0
  %2937 = vmatmul.mubr.f32.gmra.mrb[0].mxu0 %v2867
  %v2938 = vpop.f32.mrb[0].mxu0
  %v2939 = vadd.f32 0.0, %v2938
  %v2940 = vpop.f32.mrb[0].mxu0
  %2941 = vmatprep.mubr.f32.mxu0 0.0
  %2942 = vmatmul.mubr.f32.gmra.mrb[0].mxu0 %v2870
  %v2943 = vpop.f32.mrb[0].mxu0
  %v2944 = vadd.f32 0.0, %v2943
  %v2945 = vpop.f32.mrb[0].mxu0
  %2946 = vdwg.mxu0
  %v2948 = vsel %vm685, %v2510, 0
  %v2951 = vsel %vm685, %v2511, 0
  %2953 = vmatprep.subr.mxu0 0.0
  %2954 = vmatpush1.msra.mxu0 %v39
  %2955 = vmatprep.subr.mxu0 0.0
  %2956 = vmatpush1.msra.mxu0 %v40
  %2957 = vmatprep.subr.mxu0 0.0
  %2958 = vmatpush1.msra.mxu0 0.0
  %2959 = vmatprep.subr.mxu0 0.0
  %2960 = vmatpush1.msra.mxu0 0.0
  %2961 = vmatprep.subr.mxu0 0.0
  %2962 = vmatpush1.msra.mxu0 0.0
  %2963 = vmatprep.subr.mxu0 0.0
  %2964 = vmatpush1.msra.mxu0 0.0
  %2965 = vmatprep.subr.mxu0 0.0
  %2966 = vmatpush1.msra.mxu0 0.0
  %2967 = vmatprep.subr.mxu0 0.0
  %2968 = vmatpush1.msra.mxu0 0.0
  %2969 = vmatprep.subr.mxu0 0.0
  %2970 = vmatpush1.msra.mxu0 0.0
  %2971 = vmatprep.subr.mxu0 0.0
  %2972 = vmatpush1.msra.mxu0 0.0
  %2973 = vmatprep.subr.mxu0 0.0
  %2974 = vmatpush1.msra.mxu0 0.0
  %2975 = vmatprep.subr.mxu0 0.0
  %2976 = vmatpush1.msra.mxu0 0.0
  %2977 = vmatprep.subr.mxu0 0.0
  %2978 = vmatpush1.msra.mxu0 0.0
  %2979 = vmatprep.subr.mxu0 0.0
  %2980 = vmatpush1.msra.mxu0 0.0
  %2981 = vmatprep.subr.mxu0 0.0
  %2982 = vmatpush1.msra.mxu0 0.0
  %2983 = vmatprep.subr.mxu0 0.0
  %2984 = vmatpush1.msra.mxu0 0.0
  %2985 = vmatprep.subr.mxu0 0.0
  %2986 = vmatpush1.msra.mxu0 0.0
  %2987 = vmatprep.subr.mxu0 0.0
  %2988 = vmatpush1.msra.mxu0 0.0
  %2989 = vmatprep.subr.mxu0 0.0
  %2990 = vmatpush1.msra.mxu0 0.0
  %2991 = vmatprep.subr.mxu0 0.0
  %2992 = vmatpush1.msra.mxu0 0.0
  %2993 = vmatprep.subr.mxu0 0.0
  %2994 = vmatpush1.msra.mxu0 0.0
  %2995 = vmatprep.subr.mxu0 0.0
  %2996 = vmatpush1.msra.mxu0 0.0
  %2997 = vmatprep.subr.mxu0 0.0
  %2998 = vmatpush1.msra.mxu0 0.0
  %2999 = vmatprep.subr.mxu0 0.0
  %3000 = vmatpush1.msra.mxu0 0.0
  %3001 = vmatprep.subr.mxu0 0.0
  %3002 = vmatpush1.msra.mxu0 0.0
  %3003 = vmatprep.subr.mxu0 0.0
  %3004 = vmatpush1.msra.mxu0 0.0
  %3005 = vmatprep.subr.mxu0 0.0
  %3006 = vmatpush1.msra.mxu0 0.0
  %3007 = vmatprep.subr.mxu0 0.0
  %3008 = vmatpush1.msra.mxu0 0.0
  %3009 = vmatprep.subr.mxu0 0.0
  %3010 = vmatpush1.msra.mxu0 0.0
  %3011 = vmatprep.subr.mxu0 0.0
  %3012 = vmatpush1.msra.mxu0 0.0
  %3013 = vmatprep.subr.mxu0 0.0
  %3014 = vmatpush1.msra.mxu0 0.0
  %3015 = vmatprep.subr.mxu0 0.0
  %3016 = vmatpush1.msra.mxu0 0.0
  %3017 = vmatprep.mubr.f32.mxu0 0.0
  %3018 = vmatmul.mubr.f32.gmra.mrb[0].mxu0 %v2948
  %v3019 = vpop.f32.mrb[0].mxu0
  %v3020 = vadd.f32 0.0, %v3019
  %v3021 = vpop.f32.mrb[0].mxu0
  %3022 = vmatprep.mubr.f32.mxu0 0.0
  %3023 = vmatmul.mubr.f32.gmra.mrb[0].mxu0 %v2951
  %v3024 = vpop.f32.mrb[0].mxu0
  %v3025 = vadd.f32 0.0, %v3024
  %v3026 = vpop.f32.mrb[0].mxu0
  %3027 = vdwg.mxu0
  %v3029 = vsel %vm685, %v2513, 0
  %v3032 = vsel %vm685, %v2514, 0
  %3034 = vmatprep.subr.mxu0 0.0
  %3035 = vmatpush1.msra.mxu0 %v41
  %3036 = vmatprep.subr.mxu0 0.0
  %3037 = vmatpush1.msra.mxu0 %v42
  %3038 = vmatprep.subr.mxu0 0.0
  %3039 = vmatpush1.msra.mxu0 0.0
  %3040 = vmatprep.subr.mxu0 0.0
  %3041 = vmatpush1.msra.mxu0 0.0
  %3042 = vmatprep.subr.mxu0 0.0
  %3043 = vmatpush1.msra.mxu0 0.0
  %3044 = vmatprep.subr.mxu0 0.0
  %3045 = vmatpush1.msra.mxu0 0.0
  %3046 = vmatprep.subr.mxu0 0.0
  %3047 = vmatpush1.msra.mxu0 0.0
  %3048 = vmatprep.subr.mxu0 0.0
  %3049 = vmatpush1.msra.mxu0 0.0
  %3050 = vmatprep.subr.mxu0 0.0
  %3051 = vmatpush1.msra.mxu0 0.0
  %3052 = vmatprep.subr.mxu0 0.0
  %3053 = vmatpush1.msra.mxu0 0.0
  %3054 = vmatprep.subr.mxu0 0.0
  %3055 = vmatpush1.msra.mxu0 0.0
  %3056 = vmatprep.subr.mxu0 0.0
  %3057 = vmatpush1.msra.mxu0 0.0
  %3058 = vmatprep.subr.mxu0 0.0
  %3059 = vmatpush1.msra.mxu0 0.0
  %3060 = vmatprep.subr.mxu0 0.0
  %3061 = vmatpush1.msra.mxu0 0.0
  %3062 = vmatprep.subr.mxu0 0.0
  %3063 = vmatpush1.msra.mxu0 0.0
  %3064 = vmatprep.subr.mxu0 0.0
  %3065 = vmatpush1.msra.mxu0 0.0
  %3066 = vmatprep.subr.mxu0 0.0
  %3067 = vmatpush1.msra.mxu0 0.0
  %3068 = vmatprep.subr.mxu0 0.0
  %3069 = vmatpush1.msra.mxu0 0.0
  %3070 = vmatprep.subr.mxu0 0.0
  %3071 = vmatpush1.msra.mxu0 0.0
  %3072 = vmatprep.subr.mxu0 0.0
  %3073 = vmatpush1.msra.mxu0 0.0
  %3074 = vmatprep.subr.mxu0 0.0
  %3075 = vmatpush1.msra.mxu0 0.0
  %3076 = vmatprep.subr.mxu0 0.0
  %3077 = vmatpush1.msra.mxu0 0.0
  %3078 = vmatprep.subr.mxu0 0.0
  %3079 = vmatpush1.msra.mxu0 0.0
  %3080 = vmatprep.subr.mxu0 0.0
  %3081 = vmatpush1.msra.mxu0 0.0
  %3082 = vmatprep.subr.mxu0 0.0
  %3083 = vmatpush1.msra.mxu0 0.0
  %3084 = vmatprep.subr.mxu0 0.0
  %3085 = vmatpush1.msra.mxu0 0.0
  %3086 = vmatprep.subr.mxu0 0.0
  %3087 = vmatpush1.msra.mxu0 0.0
  %3088 = vmatprep.subr.mxu0 0.0
  %3089 = vmatpush1.msra.mxu0 0.0
  %3090 = vmatprep.subr.mxu0 0.0
  %3091 = vmatpush1.msra.mxu0 0.0
  %3092 = vmatprep.subr.mxu0 0.0
  %3093 = vmatpush1.msra.mxu0 0.0
  %3094 = vmatprep.subr.mxu0 0.0
  %3095 = vmatpush1.msra.mxu0 0.0
  %3096 = vmatprep.subr.mxu0 0.0
  %3097 = vmatpush1.msra.mxu0 0.0
  %3098 = vmatprep.mubr.f32.mxu0 0.0
  %3099 = vmatmul.mubr.f32.gmra.mrb[0].mxu0 %v3029
  %v3100 = vpop.f32.mrb[0].mxu0
  %v3101 = vadd.f32 0.0, %v3100
  %v3102 = vpop.f32.mrb[0].mxu0
  %3103 = vmatprep.mubr.f32.mxu0 0.0
  %3104 = vmatmul.mubr.f32.gmra.mrb[0].mxu0 %v3032
  %v3105 = vpop.f32.mrb[0].mxu0
  %v3106 = vadd.f32 0.0, %v3105
  %v3107 = vpop.f32.mrb[0].mxu0
  %3108 = vdwg.mxu0
  %v3110 = vsel %vm685, %v2516, 0
  %v3113 = vsel %vm685, %v2517, 0
  %3115 = vmatprep.subr.mxu0 0.0
  %3116 = vmatpush1.msra.mxu0 %v43
  %3117 = vmatprep.subr.mxu0 0.0
  %3118 = vmatpush1.msra.mxu0 %v44
  %3119 = vmatprep.subr.mxu0 0.0
  %3120 = vmatpush1.msra.mxu0 0.0
  %3121 = vmatprep.subr.mxu0 0.0
  %3122 = vmatpush1.msra.mxu0 0.0
  %3123 = vmatprep.subr.mxu0 0.0
  %3124 = vmatpush1.msra.mxu0 0.0
  %3125 = vmatprep.subr.mxu0 0.0
  %3126 = vmatpush1.msra.mxu0 0.0
  %3127 = vmatprep.subr.mxu0 0.0
  %3128 = vmatpush1.msra.mxu0 0.0
  %3129 = vmatprep.subr.mxu0 0.0
  %3130 = vmatpush1.msra.mxu0 0.0
  %3131 = vmatprep.subr.mxu0 0.0
  %3132 = vmatpush1.msra.mxu0 0.0
  %3133 = vmatprep.subr.mxu0 0.0
  %3134 = vmatpush1.msra.mxu0 0.0
  %3135 = vmatprep.subr.mxu0 0.0
  %3136 = vmatpush1.msra.mxu0 0.0
  %3137 = vmatprep.subr.mxu0 0.0
  %3138 = vmatpush1.msra.mxu0 0.0
  %3139 = vmatprep.subr.mxu0 0.0
  %3140 = vmatpush1.msra.mxu0 0.0
  %3141 = vmatprep.subr.mxu0 0.0
  %3142 = vmatpush1.msra.mxu0 0.0
  %3143 = vmatprep.subr.mxu0 0.0
  %3144 = vmatpush1.msra.mxu0 0.0
  %3145 = vmatprep.subr.mxu0 0.0
  %3146 = vmatpush1.msra.mxu0 0.0
  %3147 = vmatprep.subr.mxu0 0.0
  %3148 = vmatpush1.msra.mxu0 0.0
  %3149 = vmatprep.subr.mxu0 0.0
  %3150 = vmatpush1.msra.mxu0 0.0
  %3151 = vmatprep.subr.mxu0 0.0
  %3152 = vmatpush1.msra.mxu0 0.0
  %3153 = vmatprep.subr.mxu0 0.0
  %3154 = vmatpush1.msra.mxu0 0.0
  %3155 = vmatprep.subr.mxu0 0.0
  %3156 = vmatpush1.msra.mxu0 0.0
  %3157 = vmatprep.subr.mxu0 0.0
  %3158 = vmatpush1.msra.mxu0 0.0
  %3159 = vmatprep.subr.mxu0 0.0
  %3160 = vmatpush1.msra.mxu0 0.0
  %3161 = vmatprep.subr.mxu0 0.0
  %3162 = vmatpush1.msra.mxu0 0.0
  %3163 = vmatprep.subr.mxu0 0.0
  %3164 = vmatpush1.msra.mxu0 0.0
  %3165 = vmatprep.subr.mxu0 0.0
  %3166 = vmatpush1.msra.mxu0 0.0
  %3167 = vmatprep.subr.mxu0 0.0
  %3168 = vmatpush1.msra.mxu0 0.0
  %3169 = vmatprep.subr.mxu0 0.0
  %3170 = vmatpush1.msra.mxu0 0.0
  %3171 = vmatprep.subr.mxu0 0.0
  %3172 = vmatpush1.msra.mxu0 0.0
  %3173 = vmatprep.subr.mxu0 0.0
  %3174 = vmatpush1.msra.mxu0 0.0
  %3175 = vmatprep.subr.mxu0 0.0
  %3176 = vmatpush1.msra.mxu0 0.0
  %3177 = vmatprep.subr.mxu0 0.0
  %3178 = vmatpush1.msra.mxu0 0.0
  %3179 = vmatprep.mubr.f32.mxu0 0.0
  %3180 = vmatmul.mubr.f32.gmra.mrb[0].mxu0 %v3110
  %v3181 = vpop.f32.mrb[0].mxu0
  %v3182 = vadd.f32 0.0, %v3181
  %v3183 = vpop.f32.mrb[0].mxu0
  %3184 = vmatprep.mubr.f32.mxu0 0.0
  %3185 = vmatmul.mubr.f32.gmra.mrb[0].mxu0 %v3113
  %v3186 = vpop.f32.mrb[0].mxu0
  %v3187 = vadd.f32 0.0, %v3186
  %v3188 = vpop.f32.mrb[0].mxu0
  %3189 = vdwg.mxu0
  %v3191 = vsel %vm685, %v2519, 0
  %v3194 = vsel %vm685, %v2520, 0
  %3196 = vmatprep.subr.mxu0 0.0
  %3197 = vmatpush1.msra.mxu0 %v45
  %3198 = vmatprep.subr.mxu0 0.0
  %3199 = vmatpush1.msra.mxu0 %v46
  %3200 = vmatprep.subr.mxu0 0.0
  %3201 = vmatpush1.msra.mxu0 0.0
  %3202 = vmatprep.subr.mxu0 0.0
  %3203 = vmatpush1.msra.mxu0 0.0
  %3204 = vmatprep.subr.mxu0 0.0
  %3205 = vmatpush1.msra.mxu0 0.0
  %3206 = vmatprep.subr.mxu0 0.0
  %3207 = vmatpush1.msra.mxu0 0.0
  %3208 = vmatprep.subr.mxu0 0.0
  %3209 = vmatpush1.msra.mxu0 0.0
  %3210 = vmatprep.subr.mxu0 0.0
  %3211 = vmatpush1.msra.mxu0 0.0
  %3212 = vmatprep.subr.mxu0 0.0
  %3213 = vmatpush1.msra.mxu0 0.0
  %3214 = vmatprep.subr.mxu0 0.0
  %3215 = vmatpush1.msra.mxu0 0.0
  %3216 = vmatprep.subr.mxu0 0.0
  %3217 = vmatpush1.msra.mxu0 0.0
  %3218 = vmatprep.subr.mxu0 0.0
  %3219 = vmatpush1.msra.mxu0 0.0
  %3220 = vmatprep.subr.mxu0 0.0
  %3221 = vmatpush1.msra.mxu0 0.0
  %3222 = vmatprep.subr.mxu0 0.0
  %3223 = vmatpush1.msra.mxu0 0.0
  %3224 = vmatprep.subr.mxu0 0.0
  %3225 = vmatpush1.msra.mxu0 0.0
  %3226 = vmatprep.subr.mxu0 0.0
  %3227 = vmatpush1.msra.mxu0 0.0
  %3228 = vmatprep.subr.mxu0 0.0
  %3229 = vmatpush1.msra.mxu0 0.0
  %3230 = vmatprep.subr.mxu0 0.0
  %3231 = vmatpush1.msra.mxu0 0.0
  %3232 = vmatprep.subr.mxu0 0.0
  %3233 = vmatpush1.msra.mxu0 0.0
  %3234 = vmatprep.subr.mxu0 0.0
  %3235 = vmatpush1.msra.mxu0 0.0
  %3236 = vmatprep.subr.mxu0 0.0
  %3237 = vmatpush1.msra.mxu0 0.0
  %3238 = vmatprep.subr.mxu0 0.0
  %3239 = vmatpush1.msra.mxu0 0.0
  %3240 = vmatprep.subr.mxu0 0.0
  %3241 = vmatpush1.msra.mxu0 0.0
  %3242 = vmatprep.subr.mxu0 0.0
  %3243 = vmatpush1.msra.mxu0 0.0
  %3244 = vmatprep.subr.mxu0 0.0
  %3245 = vmatpush1.msra.mxu0 0.0
  %3246 = vmatprep.subr.mxu0 0.0
  %3247 = vmatpush1.msra.mxu0 0.0
  %3248 = vmatprep.subr.mxu0 0.0
  %3249 = vmatpush1.msra.mxu0 0.0
  %3250 = vmatprep.subr.mxu0 0.0
  %3251 = vmatpush1.msra.mxu0 0.0
  %3252 = vmatprep.subr.mxu0 0.0
  %3253 = vmatpush1.msra.mxu0 0.0
  %3254 = vmatprep.subr.mxu0 0.0
  %3255 = vmatpush1.msra.mxu0 0.0
  %3256 = vmatprep.subr.mxu0 0.0
  %3257 = vmatpush1.msra.mxu0 0.0
  %3258 = vmatprep.subr.mxu0 0.0
  %3259 = vmatpush1.msra.mxu0 0.0
  %3260 = vmatprep.mubr.f32.mxu0 0.0
  %3261 = vmatmul.mubr.f32.gmra.mrb[0].mxu0 %v3191
  %v3262 = vpop.f32.mrb[0].mxu0
  %v3263 = vadd.f32 0.0, %v3262
  %v3264 = vpop.f32.mrb[0].mxu0
  %3265 = vmatprep.mubr.f32.mxu0 0.0
  %3266 = vmatmul.mubr.f32.gmra.mrb[0].mxu0 %v3194
  %v3267 = vpop.f32.mrb[0].mxu0
  %v3268 = vadd.f32 0.0, %v3267
  %v3269 = vpop.f32.mrb[0].mxu0
  %3270 = vdwg.mxu0
  %v3272 = vsel %vm685, %v2522, 0
  %v3275 = vsel %vm685, %v2523, 0
  %3277 = vmatprep.subr.mxu0 0.0
  %3278 = vmatpush1.msra.mxu0 %v47
  %3279 = vmatprep.subr.mxu0 0.0
  %3280 = vmatpush1.msra.mxu0 %v48
  %3281 = vmatprep.subr.mxu0 0.0
  %3282 = vmatpush1.msra.mxu0 0.0
  %3283 = vmatprep.subr.mxu0 0.0
  %3284 = vmatpush1.msra.mxu0 0.0
  %3285 = vmatprep.subr.mxu0 0.0
  %3286 = vmatpush1.msra.mxu0 0.0
  %3287 = vmatprep.subr.mxu0 0.0
  %3288 = vmatpush1.msra.mxu0 0.0
  %3289 = vmatprep.subr.mxu0 0.0
  %3290 = vmatpush1.msra.mxu0 0.0
  %3291 = vmatprep.subr.mxu0 0.0
  %3292 = vmatpush1.msra.mxu0 0.0
  %3293 = vmatprep.subr.mxu0 0.0
  %3294 = vmatpush1.msra.mxu0 0.0
  %3295 = vmatprep.subr.mxu0 0.0
  %3296 = vmatpush1.msra.mxu0 0.0
  %3297 = vmatprep.subr.mxu0 0.0
  %3298 = vmatpush1.msra.mxu0 0.0
  %3299 = vmatprep.subr.mxu0 0.0
  %3300 = vmatpush1.msra.mxu0 0.0
  %3301 = vmatprep.subr.mxu0 0.0
  %3302 = vmatpush1.msra.mxu0 0.0
  %3303 = vmatprep.subr.mxu0 0.0
  %3304 = vmatpush1.msra.mxu0 0.0
  %3305 = vmatprep.subr.mxu0 0.0
  %3306 = vmatpush1.msra.mxu0 0.0
  %3307 = vmatprep.subr.mxu0 0.0
  %3308 = vmatpush1.msra.mxu0 0.0
  %3309 = vmatprep.subr.mxu0 0.0
  %3310 = vmatpush1.msra.mxu0 0.0
  %3311 = vmatprep.subr.mxu0 0.0
  %3312 = vmatpush1.msra.mxu0 0.0
  %3313 = vmatprep.subr.mxu0 0.0
  %3314 = vmatpush1.msra.mxu0 0.0
  %3315 = vmatprep.subr.mxu0 0.0
  %3316 = vmatpush1.msra.mxu0 0.0
  %3317 = vmatprep.subr.mxu0 0.0
  %3318 = vmatpush1.msra.mxu0 0.0
  %3319 = vmatprep.subr.mxu0 0.0
  %3320 = vmatpush1.msra.mxu0 0.0
  %3321 = vmatprep.subr.mxu0 0.0
  %3322 = vmatpush1.msra.mxu0 0.0
  %3323 = vmatprep.subr.mxu0 0.0
  %3324 = vmatpush1.msra.mxu0 0.0
  %3325 = vmatprep.subr.mxu0 0.0
  %3326 = vmatpush1.msra.mxu0 0.0
  %3327 = vmatprep.subr.mxu0 0.0
  %3328 = vmatpush1.msra.mxu0 0.0
  %3329 = vmatprep.subr.mxu0 0.0
  %3330 = vmatpush1.msra.mxu0 0.0
  %3331 = vmatprep.subr.mxu0 0.0
  %3332 = vmatpush1.msra.mxu0 0.0
  %3333 = vmatprep.subr.mxu0 0.0
  %3334 = vmatpush1.msra.mxu0 0.0
  %3335 = vmatprep.subr.mxu0 0.0
  %3336 = vmatpush1.msra.mxu0 0.0
  %3337 = vmatprep.subr.mxu0 0.0
  %3338 = vmatpush1.msra.mxu0 0.0
  %3339 = vmatprep.subr.mxu0 0.0
  %3340 = vmatpush1.msra.mxu0 0.0
  %3341 = vmatprep.mubr.f32.mxu0 0.0
  %3342 = vmatmul.mubr.f32.gmra.mrb[0].mxu0 %v3272
  %v3343 = vpop.f32.mrb[0].mxu0
  %v3344 = vadd.f32 0.0, %v3343
  %v3345 = vpop.f32.mrb[0].mxu0
  %3346 = vmatprep.mubr.f32.mxu0 0.0
  %3347 = vmatmul.mubr.f32.gmra.mrb[0].mxu0 %v3275
  %v3348 = vpop.f32.mrb[0].mxu0
  %v3349 = vadd.f32 0.0, %v3348
  %v3350 = vpop.f32.mrb[0].mxu0
  %3351 = vdwg.mxu0
  %v3353 = vsel %vm685, %v2525, 0
  %v3356 = vsel %vm685, %v2526, 0
  %3358 = vmatprep.subr.mxu0 0.0
  %3359 = vmatpush1.msra.mxu0 %v49
  %3360 = vmatprep.subr.mxu0 0.0
  %3361 = vmatpush1.msra.mxu0 %v50
  %3362 = vmatprep.subr.mxu0 0.0
  %3363 = vmatpush1.msra.mxu0 0.0
  %3364 = vmatprep.subr.mxu0 0.0
  %3365 = vmatpush1.msra.mxu0 0.0
  %3366 = vmatprep.subr.mxu0 0.0
  %3367 = vmatpush1.msra.mxu0 0.0
  %3368 = vmatprep.subr.mxu0 0.0
  %3369 = vmatpush1.msra.mxu0 0.0
  %3370 = vmatprep.subr.mxu0 0.0
  %3371 = vmatpush1.msra.mxu0 0.0
  %3372 = vmatprep.subr.mxu0 0.0
  %3373 = vmatpush1.msra.mxu0 0.0
  %3374 = vmatprep.subr.mxu0 0.0
  %3375 = vmatpush1.msra.mxu0 0.0
  %3376 = vmatprep.subr.mxu0 0.0
  %3377 = vmatpush1.msra.mxu0 0.0
  %3378 = vmatprep.subr.mxu0 0.0
  %3379 = vmatpush1.msra.mxu0 0.0
  %3380 = vmatprep.subr.mxu0 0.0
  %3381 = vmatpush1.msra.mxu0 0.0
  %3382 = vmatprep.subr.mxu0 0.0
  %3383 = vmatpush1.msra.mxu0 0.0
  %3384 = vmatprep.subr.mxu0 0.0
  %3385 = vmatpush1.msra.mxu0 0.0
  %3386 = vmatprep.subr.mxu0 0.0
  %3387 = vmatpush1.msra.mxu0 0.0
  %3388 = vmatprep.subr.mxu0 0.0
  %3389 = vmatpush1.msra.mxu0 0.0
  %3390 = vmatprep.subr.mxu0 0.0
  %3391 = vmatpush1.msra.mxu0 0.0
  %3392 = vmatprep.subr.mxu0 0.0
  %3393 = vmatpush1.msra.mxu0 0.0
  %3394 = vmatprep.subr.mxu0 0.0
  %3395 = vmatpush1.msra.mxu0 0.0
  %3396 = vmatprep.subr.mxu0 0.0
  %3397 = vmatpush1.msra.mxu0 0.0
  %3398 = vmatprep.subr.mxu0 0.0
  %3399 = vmatpush1.msra.mxu0 0.0
  %3400 = vmatprep.subr.mxu0 0.0
  %3401 = vmatpush1.msra.mxu0 0.0
  %3402 = vmatprep.subr.mxu0 0.0
  %3403 = vmatpush1.msra.mxu0 0.0
  %3404 = vmatprep.subr.mxu0 0.0
  %3405 = vmatpush1.msra.mxu0 0.0
  %3406 = vmatprep.subr.mxu0 0.0
  %3407 = vmatpush1.msra.mxu0 0.0
  %3408 = vmatprep.subr.mxu0 0.0
  %3409 = vmatpush1.msra.mxu0 0.0
  %3410 = vmatprep.subr.mxu0 0.0
  %3411 = vmatpush1.msra.mxu0 0.0
  %3412 = vmatprep.subr.mxu0 0.0
  %3413 = vmatpush1.msra.mxu0 0.0
  %3414 = vmatprep.subr.mxu0 0.0
  %3415 = vmatpush1.msra.mxu0 0.0
  %3416 = vmatprep.subr.mxu0 0.0
  %3417 = vmatpush1.msra.mxu0 0.0
  %3418 = vmatprep.subr.mxu0 0.0
  %3419 = vmatpush1.msra.mxu0 0.0
  %3420 = vmatprep.subr.mxu0 0.0
  %3421 = vmatpush1.msra.mxu0 0.0
  %3422 = vmatprep.mubr.f32.mxu0 0.0
  %3423 = vmatmul.mubr.f32.gmra.mrb[0].mxu0 %v3353
  %v3424 = vpop.f32.mrb[0].mxu0
  %v3425 = vadd.f32 0.0, %v3424
  %v3426 = vpop.f32.mrb[0].mxu0
  %3427 = vmatprep.mubr.f32.mxu0 0.0
  %3428 = vmatmul.mubr.f32.gmra.mrb[0].mxu0 %v3356
  %v3429 = vpop.f32.mrb[0].mxu0
  %v3430 = vadd.f32 0.0, %v3429
  %v3431 = vpop.f32.mrb[0].mxu0
  %3432 = vdwg.mxu0
  %v3434 = vsel %vm685, %v2528, 0
  %v3437 = vsel %vm685, %v2529, 0
  %3439 = vmatprep.subr.mxu0 0.0
  %3440 = vmatpush1.msra.mxu0 %v51
  %3441 = vmatprep.subr.mxu0 0.0
  %3442 = vmatpush1.msra.mxu0 %v52
  %3443 = vmatprep.subr.mxu0 0.0
  %3444 = vmatpush1.msra.mxu0 0.0
  %3445 = vmatprep.subr.mxu0 0.0
  %3446 = vmatpush1.msra.mxu0 0.0
  %3447 = vmatprep.subr.mxu0 0.0
  %3448 = vmatpush1.msra.mxu0 0.0
  %3449 = vmatprep.subr.mxu0 0.0
  %3450 = vmatpush1.msra.mxu0 0.0
  %3451 = vmatprep.subr.mxu0 0.0
  %3452 = vmatpush1.msra.mxu0 0.0
  %3453 = vmatprep.subr.mxu0 0.0
  %3454 = vmatpush1.msra.mxu0 0.0
  %3455 = vmatprep.subr.mxu0 0.0
  %3456 = vmatpush1.msra.mxu0 0.0
  %3457 = vmatprep.subr.mxu0 0.0
  %3458 = vmatpush1.msra.mxu0 0.0
  %3459 = vmatprep.subr.mxu0 0.0
  %3460 = vmatpush1.msra.mxu0 0.0
  %3461 = vmatprep.subr.mxu0 0.0
  %3462 = vmatpush1.msra.mxu0 0.0
  %3463 = vmatprep.subr.mxu0 0.0
  %3464 = vmatpush1.msra.mxu0 0.0
  %3465 = vmatprep.subr.mxu0 0.0
  %3466 = vmatpush1.msra.mxu0 0.0
  %3467 = vmatprep.subr.mxu0 0.0
  %3468 = vmatpush1.msra.mxu0 0.0
  %3469 = vmatprep.subr.mxu0 0.0
  %3470 = vmatpush1.msra.mxu0 0.0
  %3471 = vmatprep.subr.mxu0 0.0
  %3472 = vmatpush1.msra.mxu0 0.0
  %3473 = vmatprep.subr.mxu0 0.0
  %3474 = vmatpush1.msra.mxu0 0.0
  %3475 = vmatprep.subr.mxu0 0.0
  %3476 = vmatpush1.msra.mxu0 0.0
  %3477 = vmatprep.subr.mxu0 0.0
  %3478 = vmatpush1.msra.mxu0 0.0
  %3479 = vmatprep.subr.mxu0 0.0
  %3480 = vmatpush1.msra.mxu0 0.0
  %3481 = vmatprep.subr.mxu0 0.0
  %3482 = vmatpush1.msra.mxu0 0.0
  %3483 = vmatprep.subr.mxu0 0.0
  %3484 = vmatpush1.msra.mxu0 0.0
  %3485 = vmatprep.subr.mxu0 0.0
  %3486 = vmatpush1.msra.mxu0 0.0
  %3487 = vmatprep.subr.mxu0 0.0
  %3488 = vmatpush1.msra.mxu0 0.0
  %3489 = vmatprep.subr.mxu0 0.0
  %3490 = vmatpush1.msra.mxu0 0.0
  %3491 = vmatprep.subr.mxu0 0.0
  %3492 = vmatpush1.msra.mxu0 0.0
  %3493 = vmatprep.subr.mxu0 0.0
  %3494 = vmatpush1.msra.mxu0 0.0
  %3495 = vmatprep.subr.mxu0 0.0
  %3496 = vmatpush1.msra.mxu0 0.0
  %3497 = vmatprep.subr.mxu0 0.0
  %3498 = vmatpush1.msra.mxu0 0.0
  %3499 = vmatprep.subr.mxu0 0.0
  %3500 = vmatpush1.msra.mxu0 0.0
  %3501 = vmatprep.subr.mxu0 0.0
  %3502 = vmatpush1.msra.mxu0 0.0
  %3503 = vmatprep.mubr.f32.mxu0 0.0
  %3504 = vmatmul.mubr.f32.gmra.mrb[0].mxu0 %v3434
  %v3505 = vpop.f32.mrb[0].mxu0
  %v3506 = vadd.f32 0.0, %v3505
  %v3507 = vpop.f32.mrb[0].mxu0
  %3508 = vmatprep.mubr.f32.mxu0 0.0
  %3509 = vmatmul.mubr.f32.gmra.mrb[0].mxu0 %v3437
  %v3510 = vpop.f32.mrb[0].mxu0
  %v3511 = vadd.f32 0.0, %v3510
  %v3512 = vpop.f32.mrb[0].mxu0
  %3513 = vdwg.mxu0
  %v3515 = vsel %vm685, %v2531, 0
  %v3518 = vsel %vm685, %v2532, 0
  %3520 = vmatprep.subr.mxu0 0.0
  %3521 = vmatpush1.msra.mxu0 %v53
  %3522 = vmatprep.subr.mxu0 0.0
  %3523 = vmatpush1.msra.mxu0 %v54
  %3524 = vmatprep.subr.mxu0 0.0
  %3525 = vmatpush1.msra.mxu0 0.0
  %3526 = vmatprep.subr.mxu0 0.0
  %3527 = vmatpush1.msra.mxu0 0.0
  %3528 = vmatprep.subr.mxu0 0.0
  %3529 = vmatpush1.msra.mxu0 0.0
  %3530 = vmatprep.subr.mxu0 0.0
  %3531 = vmatpush1.msra.mxu0 0.0
  %3532 = vmatprep.subr.mxu0 0.0
  %3533 = vmatpush1.msra.mxu0 0.0
  %3534 = vmatprep.subr.mxu0 0.0
  %3535 = vmatpush1.msra.mxu0 0.0
  %3536 = vmatprep.subr.mxu0 0.0
  %3537 = vmatpush1.msra.mxu0 0.0
  %3538 = vmatprep.subr.mxu0 0.0
  %3539 = vmatpush1.msra.mxu0 0.0
  %3540 = vmatprep.subr.mxu0 0.0
  %3541 = vmatpush1.msra.mxu0 0.0
  %3542 = vmatprep.subr.mxu0 0.0
  %3543 = vmatpush1.msra.mxu0 0.0
  %3544 = vmatprep.subr.mxu0 0.0
  %3545 = vmatpush1.msra.mxu0 0.0
  %3546 = vmatprep.subr.mxu0 0.0
  %3547 = vmatpush1.msra.mxu0 0.0
  %3548 = vmatprep.subr.mxu0 0.0
  %3549 = vmatpush1.msra.mxu0 0.0
  %3550 = vmatprep.subr.mxu0 0.0
  %3551 = vmatpush1.msra.mxu0 0.0
  %3552 = vmatprep.subr.mxu0 0.0
  %3553 = vmatpush1.msra.mxu0 0.0
  %3554 = vmatprep.subr.mxu0 0.0
  %3555 = vmatpush1.msra.mxu0 0.0
  %3556 = vmatprep.subr.mxu0 0.0
  %3557 = vmatpush1.msra.mxu0 0.0
  %3558 = vmatprep.subr.mxu0 0.0
  %3559 = vmatpush1.msra.mxu0 0.0
  %3560 = vmatprep.subr.mxu0 0.0
  %3561 = vmatpush1.msra.mxu0 0.0
  %3562 = vmatprep.subr.mxu0 0.0
  %3563 = vmatpush1.msra.mxu0 0.0
  %3564 = vmatprep.subr.mxu0 0.0
  %3565 = vmatpush1.msra.mxu0 0.0
  %3566 = vmatprep.subr.mxu0 0.0
  %3567 = vmatpush1.msra.mxu0 0.0
  %3568 = vmatprep.subr.mxu0 0.0
  %3569 = vmatpush1.msra.mxu0 0.0
  %3570 = vmatprep.subr.mxu0 0.0
  %3571 = vmatpush1.msra.mxu0 0.0
  %3572 = vmatprep.subr.mxu0 0.0
  %3573 = vmatpush1.msra.mxu0 0.0
  %3574 = vmatprep.subr.mxu0 0.0
  %3575 = vmatpush1.msra.mxu0 0.0
  %3576 = vmatprep.subr.mxu0 0.0
  %3577 = vmatpush1.msra.mxu0 0.0
  %3578 = vmatprep.subr.mxu0 0.0
  %3579 = vmatpush1.msra.mxu0 0.0
  %3580 = vmatprep.subr.mxu0 0.0
  %3581 = vmatpush1.msra.mxu0 0.0
  %3582 = vmatprep.subr.mxu0 0.0
  %3583 = vmatpush1.msra.mxu0 0.0
  %3584 = vmatprep.mubr.f32.mxu0 0.0
  %3585 = vmatmul.mubr.f32.gmra.mrb[0].mxu0 %v3515
  %v3586 = vpop.f32.mrb[0].mxu0
  %v3587 = vadd.f32 0.0, %v3586
  %v3588 = vpop.f32.mrb[0].mxu0
  %3589 = vmatprep.mubr.f32.mxu0 0.0
  %3590 = vmatmul.mubr.f32.gmra.mrb[0].mxu0 %v3518
  %v3591 = vpop.f32.mrb[0].mxu0
  %v3592 = vadd.f32 0.0, %v3591
  %v3593 = vpop.f32.mrb[0].mxu0
  %3594 = vdwg.mxu0
  %v3596 = vsel %vm685, %v2534, 0
  %v3599 = vsel %vm685, %v2535, 0
  %3601 = vmatprep.subr.mxu0 0.0
  %3602 = vmatpush1.msra.mxu0 %v55
  %3603 = vmatprep.subr.mxu0 0.0
  %3604 = vmatpush1.msra.mxu0 %v56
  %3605 = vmatprep.subr.mxu0 0.0
  %3606 = vmatpush1.msra.mxu0 0.0
  %3607 = vmatprep.subr.mxu0 0.0
  %3608 = vmatpush1.msra.mxu0 0.0
  %3609 = vmatprep.subr.mxu0 0.0
  %3610 = vmatpush1.msra.mxu0 0.0
  %3611 = vmatprep.subr.mxu0 0.0
  %3612 = vmatpush1.msra.mxu0 0.0
  %3613 = vmatprep.subr.mxu0 0.0
  %3614 = vmatpush1.msra.mxu0 0.0
  %3615 = vmatprep.subr.mxu0 0.0
  %3616 = vmatpush1.msra.mxu0 0.0
  %3617 = vmatprep.subr.mxu0 0.0
  %3618 = vmatpush1.msra.mxu0 0.0
  %3619 = vmatprep.subr.mxu0 0.0
  %3620 = vmatpush1.msra.mxu0 0.0
  %3621 = vmatprep.subr.mxu0 0.0
  %3622 = vmatpush1.msra.mxu0 0.0
  %3623 = vmatprep.subr.mxu0 0.0
  %3624 = vmatpush1.msra.mxu0 0.0
  %3625 = vmatprep.subr.mxu0 0.0
  %3626 = vmatpush1.msra.mxu0 0.0
  %3627 = vmatprep.subr.mxu0 0.0
  %3628 = vmatpush1.msra.mxu0 0.0
  %3629 = vmatprep.subr.mxu0 0.0
  %3630 = vmatpush1.msra.mxu0 0.0
  %3631 = vmatprep.subr.mxu0 0.0
  %3632 = vmatpush1.msra.mxu0 0.0
  %3633 = vmatprep.subr.mxu0 0.0
  %3634 = vmatpush1.msra.mxu0 0.0
  %3635 = vmatprep.subr.mxu0 0.0
  %3636 = vmatpush1.msra.mxu0 0.0
  %3637 = vmatprep.subr.mxu0 0.0
  %3638 = vmatpush1.msra.mxu0 0.0
  %3639 = vmatprep.subr.mxu0 0.0
  %3640 = vmatpush1.msra.mxu0 0.0
  %3641 = vmatprep.subr.mxu0 0.0
  %3642 = vmatpush1.msra.mxu0 0.0
  %3643 = vmatprep.subr.mxu0 0.0
  %3644 = vmatpush1.msra.mxu0 0.0
  %3645 = vmatprep.subr.mxu0 0.0
  %3646 = vmatpush1.msra.mxu0 0.0
  %3647 = vmatprep.subr.mxu0 0.0
  %3648 = vmatpush1.msra.mxu0 0.0
  %3649 = vmatprep.subr.mxu0 0.0
  %3650 = vmatpush1.msra.mxu0 0.0
  %3651 = vmatprep.subr.mxu0 0.0
  %3652 = vmatpush1.msra.mxu0 0.0
  %3653 = vmatprep.subr.mxu0 0.0
  %3654 = vmatpush1.msra.mxu0 0.0
  %3655 = vmatprep.subr.mxu0 0.0
  %3656 = vmatpush1.msra.mxu0 0.0
  %3657 = vmatprep.subr.mxu0 0.0
  %3658 = vmatpush1.msra.mxu0 0.0
  %3659 = vmatprep.subr.mxu0 0.0
  %3660 = vmatpush1.msra.mxu0 0.0
  %3661 = vmatprep.subr.mxu0 0.0
  %3662 = vmatpush1.msra.mxu0 0.0
  %3663 = vmatprep.subr.mxu0 0.0
  %3664 = vmatpush1.msra.mxu0 0.0
  %3665 = vmatprep.mubr.f32.mxu0 0.0
  %3666 = vmatmul.mubr.f32.gmra.mrb[0].mxu0 %v3596
  %v3667 = vpop.f32.mrb[0].mxu0
  %v3668 = vadd.f32 0.0, %v3667
  %v3669 = vpop.f32.mrb[0].mxu0
  %3670 = vmatprep.mubr.f32.mxu0 0.0
  %3671 = vmatmul.mubr.f32.gmra.mrb[0].mxu0 %v3599
  %v3672 = vpop.f32.mrb[0].mxu0
  %v3673 = vadd.f32 0.0, %v3672
  %v3674 = vpop.f32.mrb[0].mxu0
  %3675 = vdwg.mxu0
  %v3677 = vsel %vm685, %v2537, 0
  %v3680 = vsel %vm685, %v2538, 0
  %3682 = vmatprep.subr.mxu0 0.0
  %3683 = vmatpush1.msra.mxu0 %v57
  %3684 = vmatprep.subr.mxu0 0.0
  %3685 = vmatpush1.msra.mxu0 %v58
  %3686 = vmatprep.subr.mxu0 0.0
  %3687 = vmatpush1.msra.mxu0 0.0
  %3688 = vmatprep.subr.mxu0 0.0
  %3689 = vmatpush1.msra.mxu0 0.0
  %3690 = vmatprep.subr.mxu0 0.0
  %3691 = vmatpush1.msra.mxu0 0.0
  %3692 = vmatprep.subr.mxu0 0.0
  %3693 = vmatpush1.msra.mxu0 0.0
  %3694 = vmatprep.subr.mxu0 0.0
  %3695 = vmatpush1.msra.mxu0 0.0
  %3696 = vmatprep.subr.mxu0 0.0
  %3697 = vmatpush1.msra.mxu0 0.0
  %3698 = vmatprep.subr.mxu0 0.0
  %3699 = vmatpush1.msra.mxu0 0.0
  %3700 = vmatprep.subr.mxu0 0.0
  %3701 = vmatpush1.msra.mxu0 0.0
  %3702 = vmatprep.subr.mxu0 0.0
  %3703 = vmatpush1.msra.mxu0 0.0
  %3704 = vmatprep.subr.mxu0 0.0
  %3705 = vmatpush1.msra.mxu0 0.0
  %3706 = vmatprep.subr.mxu0 0.0
  %3707 = vmatpush1.msra.mxu0 0.0
  %3708 = vmatprep.subr.mxu0 0.0
  %3709 = vmatpush1.msra.mxu0 0.0
  %3710 = vmatprep.subr.mxu0 0.0
  %3711 = vmatpush1.msra.mxu0 0.0
  %3712 = vmatprep.subr.mxu0 0.0
  %3713 = vmatpush1.msra.mxu0 0.0
  %3714 = vmatprep.subr.mxu0 0.0
  %3715 = vmatpush1.msra.mxu0 0.0
  %3716 = vmatprep.subr.mxu0 0.0
  %3717 = vmatpush1.msra.mxu0 0.0
  %3718 = vmatprep.subr.mxu0 0.0
  %3719 = vmatpush1.msra.mxu0 0.0
  %3720 = vmatprep.subr.mxu0 0.0
  %3721 = vmatpush1.msra.mxu0 0.0
  %3722 = vmatprep.subr.mxu0 0.0
  %3723 = vmatpush1.msra.mxu0 0.0
  %3724 = vmatprep.subr.mxu0 0.0
  %3725 = vmatpush1.msra.mxu0 0.0
  %3726 = vmatprep.subr.mxu0 0.0
  %3727 = vmatpush1.msra.mxu0 0.0
  %3728 = vmatprep.subr.mxu0 0.0
  %3729 = vmatpush1.msra.mxu0 0.0
  %3730 = vmatprep.subr.mxu0 0.0
  %3731 = vmatpush1.msra.mxu0 0.0
  %3732 = vmatprep.subr.mxu0 0.0
  %3733 = vmatpush1.msra.mxu0 0.0
  %3734 = vmatprep.subr.mxu0 0.0
  %3735 = vmatpush1.msra.mxu0 0.0
  %3736 = vmatprep.subr.mxu0 0.0
  %3737 = vmatpush1.msra.mxu0 0.0
  %3738 = vmatprep.subr.mxu0 0.0
  %3739 = vmatpush1.msra.mxu0 0.0
  %3740 = vmatprep.subr.mxu0 0.0
  %3741 = vmatpush1.msra.mxu0 0.0
  %3742 = vmatprep.subr.mxu0 0.0
  %3743 = vmatpush1.msra.mxu0 0.0
  %3744 = vmatprep.subr.mxu0 0.0
  %3745 = vmatpush1.msra.mxu0 0.0
  %3746 = vmatprep.mubr.f32.mxu0 0.0
  %3747 = vmatmul.mubr.f32.gmra.mrb[0].mxu0 %v3677
  %v3748 = vpop.f32.mrb[0].mxu0
  %v3749 = vadd.f32 0.0, %v3748
  %v3750 = vpop.f32.mrb[0].mxu0
  %3751 = vmatprep.mubr.f32.mxu0 0.0
  %3752 = vmatmul.mubr.f32.gmra.mrb[0].mxu0 %v3680
  %v3753 = vpop.f32.mrb[0].mxu0
  %v3754 = vadd.f32 0.0, %v3753
  %v3755 = vpop.f32.mrb[0].mxu0
  %3756 = vdwg.mxu0
  %v3758 = vsel %vm685, %v2540, 0
  %v3761 = vsel %vm685, %v2541, 0
  %3763 = vmatprep.subr.mxu0 0.0
  %3764 = vmatpush1.msra.mxu0 %v59
  %3765 = vmatprep.subr.mxu0 0.0
  %3766 = vmatpush1.msra.mxu0 %v60
  %3767 = vmatprep.subr.mxu0 0.0
  %3768 = vmatpush1.msra.mxu0 0.0
  %3769 = vmatprep.subr.mxu0 0.0
  %3770 = vmatpush1.msra.mxu0 0.0
  %3771 = vmatprep.subr.mxu0 0.0
  %3772 = vmatpush1.msra.mxu0 0.0
  %3773 = vmatprep.subr.mxu0 0.0
  %3774 = vmatpush1.msra.mxu0 0.0
  %3775 = vmatprep.subr.mxu0 0.0
  %3776 = vmatpush1.msra.mxu0 0.0
  %3777 = vmatprep.subr.mxu0 0.0
  %3778 = vmatpush1.msra.mxu0 0.0
  %3779 = vmatprep.subr.mxu0 0.0
  %3780 = vmatpush1.msra.mxu0 0.0
  %3781 = vmatprep.subr.mxu0 0.0
  %3782 = vmatpush1.msra.mxu0 0.0
  %3783 = vmatprep.subr.mxu0 0.0
  %3784 = vmatpush1.msra.mxu0 0.0
  %3785 = vmatprep.subr.mxu0 0.0
  %3786 = vmatpush1.msra.mxu0 0.0
  %3787 = vmatprep.subr.mxu0 0.0
  %3788 = vmatpush1.msra.mxu0 0.0
  %3789 = vmatprep.subr.mxu0 0.0
  %3790 = vmatpush1.msra.mxu0 0.0
  %3791 = vmatprep.subr.mxu0 0.0
  %3792 = vmatpush1.msra.mxu0 0.0
  %3793 = vmatprep.subr.mxu0 0.0
  %3794 = vmatpush1.msra.mxu0 0.0
  %3795 = vmatprep.subr.mxu0 0.0
  %3796 = vmatpush1.msra.mxu0 0.0
  %3797 = vmatprep.subr.mxu0 0.0
  %3798 = vmatpush1.msra.mxu0 0.0
  %3799 = vmatprep.subr.mxu0 0.0
  %3800 = vmatpush1.msra.mxu0 0.0
  %3801 = vmatprep.subr.mxu0 0.0
  %3802 = vmatpush1.msra.mxu0 0.0
  %3803 = vmatprep.subr.mxu0 0.0
  %3804 = vmatpush1.msra.mxu0 0.0
  %3805 = vmatprep.subr.mxu0 0.0
  %3806 = vmatpush1.msra.mxu0 0.0
  %3807 = vmatprep.subr.mxu0 0.0
  %3808 = vmatpush1.msra.mxu0 0.0
  %3809 = vmatprep.subr.mxu0 0.0
  %3810 = vmatpush1.msra.mxu0 0.0
  %3811 = vmatprep.subr.mxu0 0.0
  %3812 = vmatpush1.msra.mxu0 0.0
  %3813 = vmatprep.subr.mxu0 0.0
  %3814 = vmatpush1.msra.mxu0 0.0
  %3815 = vmatprep.subr.mxu0 0.0
  %3816 = vmatpush1.msra.mxu0 0.0
  %3817 = vmatprep.subr.mxu0 0.0
  %3818 = vmatpush1.msra.mxu0 0.0
  %3819 = vmatprep.subr.mxu0 0.0
  %3820 = vmatpush1.msra.mxu0 0.0
  %3821 = vmatprep.subr.mxu0 0.0
  %3822 = vmatpush1.msra.mxu0 0.0
  %3823 = vmatprep.subr.mxu0 0.0
  %3824 = vmatpush1.msra.mxu0 0.0
  %3825 = vmatprep.subr.mxu0 0.0
  %3826 = vmatpush1.msra.mxu0 0.0
  %3827 = vmatprep.mubr.f32.mxu0 0.0
  %3828 = vmatmul.mubr.f32.gmra.mrb[0].mxu0 %v3758
  %v3829 = vpop.f32.mrb[0].mxu0
  %v3830 = vadd.f32 0.0, %v3829
  %v3831 = vpop.f32.mrb[0].mxu0
  %3832 = vmatprep.mubr.f32.mxu0 0.0
  %3833 = vmatmul.mubr.f32.gmra.mrb[0].mxu0 %v3761
  %v3834 = vpop.f32.mrb[0].mxu0
  %v3835 = vadd.f32 0.0, %v3834
  %v3836 = vpop.f32.mrb[0].mxu0
  %3837 = vdwg.mxu0
  %v3838 = vld [vmem:[%s5] sm:$0xf]
  %v3839 = vld [vmem:[%s6] sm:$0xf]
  %v3841 = vsel %vm62, %v2615, 0
  %v3844 = vsel %vm62, %v2620, 0
  %v3847 = vsel %vm62, %v2696, 0
  %v3850 = vsel %vm62, %v2701, 0
  %v3853 = vsel %vm62, %v2777, 0
  %v3856 = vsel %vm62, %v2782, 0
  %v3859 = vsel %vm62, %v2858, 0
  %v3862 = vsel %vm62, %v2863, 0
  %v3865 = vsel %vm62, %v2939, 0
  %v3868 = vsel %vm62, %v2944, 0
  %v3871 = vsel %vm62, %v3020, 0
  %v3874 = vsel %vm62, %v3025, 0
  %v3877 = vsel %vm62, %v3101, 0
  %v3880 = vsel %vm62, %v3106, 0
  %v3883 = vsel %vm62, %v3182, 0
  %v3886 = vsel %vm62, %v3187, 0
  %v3889 = vsel %vm62, %v3263, 0
  %v3892 = vsel %vm62, %v3268, 0
  %v3895 = vsel %vm62, %v3344, 0
  %v3898 = vsel %vm62, %v3349, 0
  %v3901 = vsel %vm62, %v3425, 0
  %v3904 = vsel %vm62, %v3430, 0
  %v3907 = vsel %vm62, %v3506, 0
  %v3910 = vsel %vm62, %v3511, 0
  %v3913 = vsel %vm62, %v3587, 0
  %v3916 = vsel %vm62, %v3592, 0
  %v3919 = vsel %vm62, %v3668, 0
  %v3922 = vsel %vm62, %v3673, 0
  %v3925 = vsel %vm62, %v3749, 0
  %v3928 = vsel %vm62, %v3754, 0
  %v3931 = vsel %vm62, %v3830, 0
  %v3934 = vsel %vm62, %v3835, 0
  %v3937 = vsel %vm159, %v3839, 0
  %3939 = vmatprep.subr.mxu0 0.0
  %3940 = vmatpush1.msra.mxu0 %v3937
  %3941 = vmatprep.subr.mxu0 0.0
  %3942 = vmatpush1.msra.mxu0 0.0
  %3943 = vmatprep.subr.mxu0 0.0
  %3944 = vmatpush1.msra.mxu0 0.0
  %3945 = vmatprep.subr.mxu0 0.0
  %3946 = vmatpush1.msra.mxu0 0.0
  %3947 = vmatprep.subr.mxu0 0.0
  %3948 = vmatpush1.msra.mxu0 0.0
  %3949 = vmatprep.subr.mxu0 0.0
  %3950 = vmatpush1.msra.mxu0 0.0
  %3951 = vmatprep.subr.mxu0 0.0
  %3952 = vmatpush1.msra.mxu0 0.0
  %3953 = vmatprep.subr.mxu0 0.0
  %3954 = vmatpush1.msra.mxu0 0.0
  %3955 = vmatprep.subr.mxu0 0.0
  %3956 = vmatpush1.msra.mxu0 0.0
  %3957 = vmatprep.subr.mxu0 0.0
  %3958 = vmatpush1.msra.mxu0 0.0
  %3959 = vmatprep.subr.mxu0 0.0
  %3960 = vmatpush1.msra.mxu0 0.0
  %3961 = vmatprep.subr.mxu0 0.0
  %3962 = vmatpush1.msra.mxu0 0.0
  %3963 = vmatprep.subr.mxu0 0.0
  %3964 = vmatpush1.msra.mxu0 0.0
  %3965 = vmatprep.subr.mxu0 0.0
  %3966 = vmatpush1.msra.mxu0 0.0
  %3967 = vmatprep.subr.mxu0 0.0
  %3968 = vmatpush1.msra.mxu0 0.0
  %3969 = vmatprep.subr.mxu0 0.0
  %3970 = vmatpush1.msra.mxu0 0.0
  %3971 = vmatprep.subr.mxu0 0.0
  %3972 = vmatpush1.msra.mxu0 0.0
  %3973 = vmatprep.subr.mxu0 0.0
  %3974 = vmatpush1.msra.mxu0 0.0
  %3975 = vmatprep.subr.mxu0 0.0
  %3976 = vmatpush1.msra.mxu0 0.0
  %3977 = vmatprep.subr.mxu0 0.0
  %3978 = vmatpush1.msra.mxu0 0.0
  %3979 = vmatprep.subr.mxu0 0.0
  %3980 = vmatpush1.msra.mxu0 0.0
  %3981 = vmatprep.subr.mxu0 0.0
  %3982 = vmatpush1.msra.mxu0 0.0
  %3983 = vmatprep.subr.mxu0 0.0
  %3984 = vmatpush1.msra.mxu0 0.0
  %3985 = vmatprep.subr.mxu0 0.0
  %3986 = vmatpush1.msra.mxu0 0.0
  %3987 = vmatprep.subr.mxu0 0.0
  %3988 = vmatpush1.msra.mxu0 0.0
  %3989 = vmatprep.subr.mxu0 0.0
  %3990 = vmatpush1.msra.mxu0 0.0
  %3991 = vmatprep.subr.mxu0 0.0
  %3992 = vmatpush1.msra.mxu0 0.0
  %3993 = vmatprep.subr.mxu0 0.0
  %3994 = vmatpush1.msra.mxu0 0.0
  %3995 = vmatprep.subr.mxu0 0.0
  %3996 = vmatpush1.msra.mxu0 0.0
  %3997 = vmatprep.subr.mxu0 0.0
  %3998 = vmatpush1.msra.mxu0 0.0
  %3999 = vmatprep.subr.mxu0 0.0
  %4000 = vmatpush1.msra.mxu0 0.0
  %4001 = vmatprep.subr.mxu0 0.0
  %4002 = vmatpush1.msra.mxu0 0.0
  %4003 = vmatprep.mubr.f32.mxu0 0.0
  %4004 = vmatmul.mubr.f32.gmra.mrb[0].mxu0 %v3841
  %v4005 = vpop.f32.mrb[0].mxu0
  %v4006 = vadd.f32 0.0, %v4005
  %v4007 = vpop.f32.mrb[0].mxu0
  %4008 = vmatprep.mubr.f32.mxu0 0.0
  %4009 = vmatmul.mubr.f32.gmra.mrb[0].mxu0 %v3844
  %v4010 = vpop.f32.mrb[0].mxu0
  %v4011 = vadd.f32 0.0, %v4010
  %v4012 = vpop.f32.mrb[0].mxu0
  %4013 = vmatprep.mubr.f32.mxu0 0.0
  %4014 = vmatmul.mubr.f32.gmra.mrb[0].mxu0 %v3847
  %v4015 = vpop.f32.mrb[0].mxu0
  %v4016 = vadd.f32 0.0, %v4015
  %v4017 = vpop.f32.mrb[0].mxu0
  %4018 = vmatprep.mubr.f32.mxu0 0.0
  %4019 = vmatmul.mubr.f32.gmra.mrb[0].mxu0 %v3850
  %v4020 = vpop.f32.mrb[0].mxu0
  %v4021 = vadd.f32 0.0, %v4020
  %v4022 = vpop.f32.mrb[0].mxu0
  %4023 = vmatprep.mubr.f32.mxu0 0.0
  %4024 = vmatmul.mubr.f32.gmra.mrb[0].mxu0 %v3853
  %v4025 = vpop.f32.mrb[0].mxu0
  %v4026 = vadd.f32 0.0, %v4025
  %v4027 = vpop.f32.mrb[0].mxu0
  %4028 = vmatprep.mubr.f32.mxu0 0.0
  %4029 = vmatmul.mubr.f32.gmra.mrb[0].mxu0 %v3856
  %v4030 = vpop.f32.mrb[0].mxu0
  %v4031 = vadd.f32 0.0, %v4030
  %v4032 = vpop.f32.mrb[0].mxu0
  %4033 = vmatprep.mubr.f32.mxu0 0.0
  %4034 = vmatmul.mubr.f32.gmra.mrb[0].mxu0 %v3859
  %v4035 = vpop.f32.mrb[0].mxu0
  %v4036 = vadd.f32 0.0, %v4035
  %v4037 = vpop.f32.mrb[0].mxu0
  %4038 = vmatprep.mubr.f32.mxu0 0.0
  %4039 = vmatmul.mubr.f32.gmra.mrb[0].mxu0 %v3862
  %v4040 = vpop.f32.mrb[0].mxu0
  %v4041 = vadd.f32 0.0, %v4040
  %v4042 = vpop.f32.mrb[0].mxu0
  %4043 = vmatprep.mubr.f32.mxu0 0.0
  %4044 = vmatmul.mubr.f32.gmra.mrb[0].mxu0 %v3865
  %v4045 = vpop.f32.mrb[0].mxu0
  %v4046 = vadd.f32 0.0, %v4045
  %v4047 = vpop.f32.mrb[0].mxu0
  %4048 = vmatprep.mubr.f32.mxu0 0.0
  %4049 = vmatmul.mubr.f32.gmra.mrb[0].mxu0 %v3868
  %v4050 = vpop.f32.mrb[0].mxu0
  %v4051 = vadd.f32 0.0, %v4050
  %v4052 = vpop.f32.mrb[0].mxu0
  %4053 = vmatprep.mubr.f32.mxu0 0.0
  %4054 = vmatmul.mubr.f32.gmra.mrb[0].mxu0 %v3871
  %v4055 = vpop.f32.mrb[0].mxu0
  %v4056 = vadd.f32 0.0, %v4055
  %v4057 = vpop.f32.mrb[0].mxu0
  %4058 = vmatprep.mubr.f32.mxu0 0.0
  %4059 = vmatmul.mubr.f32.gmra.mrb[0].mxu0 %v3874
  %v4060 = vpop.f32.mrb[0].mxu0
  %v4061 = vadd.f32 0.0, %v4060
  %v4062 = vpop.f32.mrb[0].mxu0
  %4063 = vmatprep.mubr.f32.mxu0 0.0
  %4064 = vmatmul.mubr.f32.gmra.mrb[0].mxu0 %v3877
  %v4065 = vpop.f32.mrb[0].mxu0
  %v4066 = vadd.f32 0.0, %v4065
  %v4067 = vpop.f32.mrb[0].mxu0
  %4068 = vmatprep.mubr.f32.mxu0 0.0
  %4069 = vmatmul.mubr.f32.gmra.mrb[0].mxu0 %v3880
  %v4070 = vpop.f32.mrb[0].mxu0
  %v4071 = vadd.f32 0.0, %v4070
  %v4072 = vpop.f32.mrb[0].mxu0
  %4073 = vmatprep.mubr.f32.mxu0 0.0
  %4074 = vmatmul.mubr.f32.gmra.mrb[0].mxu0 %v3883
  %v4075 = vpop.f32.mrb[0].mxu0
  %v4076 = vadd.f32 0.0, %v4075
  %v4077 = vpop.f32.mrb[0].mxu0
  %4078 = vmatprep.mubr.f32.mxu0 0.0
  %4079 = vmatmul.mubr.f32.gmra.mrb[0].mxu0 %v3886
  %v4080 = vpop.f32.mrb[0].mxu0
  %v4081 = vadd.f32 0.0, %v4080
  %v4082 = vpop.f32.mrb[0].mxu0
  %4083 = vmatprep.mubr.f32.mxu0 0.0
  %4084 = vmatmul.mubr.f32.gmra.mrb[0].mxu0 %v3889
  %v4085 = vpop.f32.mrb[0].mxu0
  %v4086 = vadd.f32 0.0, %v4085
  %v4087 = vpop.f32.mrb[0].mxu0
  %4088 = vmatprep.mubr.f32.mxu0 0.0
  %4089 = vmatmul.mubr.f32.gmra.mrb[0].mxu0 %v3892
  %v4090 = vpop.f32.mrb[0].mxu0
  %v4091 = vadd.f32 0.0, %v4090
  %v4092 = vpop.f32.mrb[0].mxu0
  %4093 = vmatprep.mubr.f32.mxu0 0.0
  %4094 = vmatmul.mubr.f32.gmra.mrb[0].mxu0 %v3895
  %v4095 = vpop.f32.mrb[0].mxu0
  %v4096 = vadd.f32 0.0, %v4095
  %v4097 = vpop.f32.mrb[0].mxu0
  %4098 = vmatprep.mubr.f32.mxu0 0.0
  %4099 = vmatmul.mubr.f32.gmra.mrb[0].mxu0 %v3898
  %v4100 = vpop.f32.mrb[0].mxu0
  %v4101 = vadd.f32 0.0, %v4100
  %v4102 = vpop.f32.mrb[0].mxu0
  %4103 = vmatprep.mubr.f32.mxu0 0.0
  %4104 = vmatmul.mubr.f32.gmra.mrb[0].mxu0 %v3901
  %v4105 = vpop.f32.mrb[0].mxu0
  %v4106 = vadd.f32 0.0, %v4105
  %v4107 = vpop.f32.mrb[0].mxu0
  %4108 = vmatprep.mubr.f32.mxu0 0.0
  %4109 = vmatmul.mubr.f32.gmra.mrb[0].mxu0 %v3904
  %v4110 = vpop.f32.mrb[0].mxu0
  %v4111 = vadd.f32 0.0, %v4110
  %v4112 = vpop.f32.mrb[0].mxu0
  %4113 = vmatprep.mubr.f32.mxu0 0.0
  %4114 = vmatmul.mubr.f32.gmra.mrb[0].mxu0 %v3907
  %v4115 = vpop.f32.mrb[0].mxu0
  %v4116 = vadd.f32 0.0, %v4115
  %v4117 = vpop.f32.mrb[0].mxu0
  %4118 = vmatprep.mubr.f32.mxu0 0.0
  %4119 = vmatmul.mubr.f32.gmra.mrb[0].mxu0 %v3910
  %v4120 = vpop.f32.mrb[0].mxu0
  %v4121 = vadd.f32 0.0, %v4120
  %v4122 = vpop.f32.mrb[0].mxu0
  %4123 = vmatprep.mubr.f32.mxu0 0.0
  %4124 = vmatmul.mubr.f32.gmra.mrb[0].mxu0 %v3913
  %v4125 = vpop.f32.mrb[0].mxu0
  %v4126 = vadd.f32 0.0, %v4125
  %v4127 = vpop.f32.mrb[0].mxu0
  %4128 = vmatprep.mubr.f32.mxu0 0.0
  %4129 = vmatmul.mubr.f32.gmra.mrb[0].mxu0 %v3916
  %v4130 = vpop.f32.mrb[0].mxu0
  %v4131 = vadd.f32 0.0, %v4130
  %v4132 = vpop.f32.mrb[0].mxu0
  %4133 = vmatprep.mubr.f32.mxu0 0.0
  %4134 = vmatmul.mubr.f32.gmra.mrb[0].mxu0 %v3919
  %v4135 = vpop.f32.mrb[0].mxu0
  %v4136 = vadd.f32 0.0, %v4135
  %v4137 = vpop.f32.mrb[0].mxu0
  %4138 = vmatprep.mubr.f32.mxu0 0.0
  %4139 = vmatmul.mubr.f32.gmra.mrb[0].mxu0 %v3922
  %v4140 = vpop.f32.mrb[0].mxu0
  %v4141 = vadd.f32 0.0, %v4140
  %v4142 = vpop.f32.mrb[0].mxu0
  %4143 = vmatprep.mubr.f32.mxu0 0.0
  %4144 = vmatmul.mubr.f32.gmra.mrb[0].mxu0 %v3925
  %v4145 = vpop.f32.mrb[0].mxu0
  %v4146 = vadd.f32 0.0, %v4145
  %v4147 = vpop.f32.mrb[0].mxu0
  %4148 = vmatprep.mubr.f32.mxu0 0.0
  %4149 = vmatmul.mubr.f32.gmra.mrb[0].mxu0 %v3928
  %v4150 = vpop.f32.mrb[0].mxu0
  %v4151 = vadd.f32 0.0, %v4150
  %v4152 = vpop.f32.mrb[0].mxu0
  %4153 = vmatprep.mubr.f32.mxu0 0.0
  %4154 = vmatmul.mubr.f32.gmra.mrb[0].mxu0 %v3931
  %v4155 = vpop.f32.mrb[0].mxu0
  %v4156 = vadd.f32 0.0, %v4155
  %v4157 = vpop.f32.mrb[0].mxu0
  %4158 = vmatprep.mubr.f32.mxu0 0.0
  %4159 = vmatmul.mubr.f32.gmra.mrb[0].mxu0 %v3934
  %v4160 = vpop.f32.mrb[0].mxu0
  %v4161 = vadd.f32 0.0, %v4160
  %v4162 = vpop.f32.mrb[0].mxu0
  %4163 = vdwg.mxu0
  %v4165 = vsel %vm159, %v3838, 0
  %4167 = vmatprep.subr.mxu0 0.0
  %4168 = vmatpush1.msra.mxu0 %v4165
  %4169 = vmatprep.subr.mxu0 0.0
  %4170 = vmatpush1.msra.mxu0 0.0
  %4171 = vmatprep.subr.mxu0 0.0
  %4172 = vmatpush1.msra.mxu0 0.0
  %4173 = vmatprep.subr.mxu0 0.0
  %4174 = vmatpush1.msra.mxu0 0.0
  %4175 = vmatprep.subr.mxu0 0.0
  %4176 = vmatpush1.msra.mxu0 0.0
  %4177 = vmatprep.subr.mxu0 0.0
  %4178 = vmatpush1.msra.mxu0 0.0
  %4179 = vmatprep.subr.mxu0 0.0
  %4180 = vmatpush1.msra.mxu0 0.0
  %4181 = vmatprep.subr.mxu0 0.0
  %4182 = vmatpush1.msra.mxu0 0.0
  %4183 = vmatprep.subr.mxu0 0.0
  %4184 = vmatpush1.msra.mxu0 0.0
  %4185 = vmatprep.subr.mxu0 0.0
  %4186 = vmatpush1.msra.mxu0 0.0
  %4187 = vmatprep.subr.mxu0 0.0
  %4188 = vmatpush1.msra.mxu0 0.0
  %4189 = vmatprep.subr.mxu0 0.0
  %4190 = vmatpush1.msra.mxu0 0.0
  %4191 = vmatprep.subr.mxu0 0.0
  %4192 = vmatpush1.msra.mxu0 0.0
  %4193 = vmatprep.subr.mxu0 0.0
  %4194 = vmatpush1.msra.mxu0 0.0
  %4195 = vmatprep.subr.mxu0 0.0
  %4196 = vmatpush1.msra.mxu0 0.0
  %4197 = vmatprep.subr.mxu0 0.0
  %4198 = vmatpush1.msra.mxu0 0.0
  %4199 = vmatprep.subr.mxu0 0.0
  %4200 = vmatpush1.msra.mxu0 0.0
  %4201 = vmatprep.subr.mxu0 0.0
  %4202 = vmatpush1.msra.mxu0 0.0
  %4203 = vmatprep.subr.mxu0 0.0
  %4204 = vmatpush1.msra.mxu0 0.0
  %4205 = vmatprep.subr.mxu0 0.0
  %4206 = vmatpush1.msra.mxu0 0.0
  %4207 = vmatprep.subr.mxu0 0.0
  %4208 = vmatpush1.msra.mxu0 0.0
  %4209 = vmatprep.subr.mxu0 0.0
  %4210 = vmatpush1.msra.mxu0 0.0
  %4211 = vmatprep.subr.mxu0 0.0
  %4212 = vmatpush1.msra.mxu0 0.0
  %4213 = vmatprep.subr.mxu0 0.0
  %4214 = vmatpush1.msra.mxu0 0.0
  %4215 = vmatprep.subr.mxu0 0.0
  %4216 = vmatpush1.msra.mxu0 0.0
  %4217 = vmatprep.subr.mxu0 0.0
  %4218 = vmatpush1.msra.mxu0 0.0
  %4219 = vmatprep.subr.mxu0 0.0
  %4220 = vmatpush1.msra.mxu0 0.0
  %4221 = vmatprep.subr.mxu0 0.0
  %4222 = vmatpush1.msra.mxu0 0.0
  %4223 = vmatprep.subr.mxu0 0.0
  %4224 = vmatpush1.msra.mxu0 0.0
  %4225 = vmatprep.subr.mxu0 0.0
  %4226 = vmatpush1.msra.mxu0 0.0
  %4227 = vmatprep.subr.mxu0 0.0
  %4228 = vmatpush1.msra.mxu0 0.0
  %4229 = vmatprep.subr.mxu0 0.0
  %4230 = vmatpush1.msra.mxu0 0.0
  %4231 = vmatprep.mubr.f32.mxu0 0.0
  %4232 = vmatmul.mubr.f32.gmra.mrb[0].mxu0 %v64
  %v4233 = vpop.f32.mrb[0].mxu0
  %v4234 = vadd.f32 %v4006, %v4233
  %v4235 = vpop.f32.mrb[0].mxu0
  %4236 = vmatprep.mubr.f32.mxu0 0.0
  %4237 = vmatmul.mubr.f32.gmra.mrb[0].mxu0 %v67
  %v4238 = vpop.f32.mrb[0].mxu0
  %v4239 = vadd.f32 %v4011, %v4238
  %v4240 = vpop.f32.mrb[0].mxu0
  %4241 = vmatprep.mubr.f32.mxu0 0.0
  %4242 = vmatmul.mubr.f32.gmra.mrb[0].mxu0 %v70
  %v4243 = vpop.f32.mrb[0].mxu0
  %v4244 = vadd.f32 %v4016, %v4243
  %v4245 = vpop.f32.mrb[0].mxu0
  %4246 = vmatprep.mubr.f32.mxu0 0.0
  %4247 = vmatmul.mubr.f32.gmra.mrb[0].mxu0 %v73
  %v4248 = vpop.f32.mrb[0].mxu0
  %v4249 = vadd.f32 %v4021, %v4248
  %v4250 = vpop.f32.mrb[0].mxu0
  %4251 = vmatprep.mubr.f32.mxu0 0.0
  %4252 = vmatmul.mubr.f32.gmra.mrb[0].mxu0 %v76
  %v4253 = vpop.f32.mrb[0].mxu0
  %v4254 = vadd.f32 %v4026, %v4253
  %v4255 = vpop.f32.mrb[0].mxu0
  %4256 = vmatprep.mubr.f32.mxu0 0.0
  %4257 = vmatmul.mubr.f32.gmra.mrb[0].mxu0 %v79
  %v4258 = vpop.f32.mrb[0].mxu0
  %v4259 = vadd.f32 %v4031, %v4258
  %v4260 = vpop.f32.mrb[0].mxu0
  %4261 = vmatprep.mubr.f32.mxu0 0.0
  %4262 = vmatmul.mubr.f32.gmra.mrb[0].mxu0 %v82
  %v4263 = vpop.f32.mrb[0].mxu0
  %v4264 = vadd.f32 %v4036, %v4263
  %v4265 = vpop.f32.mrb[0].mxu0
  %4266 = vmatprep.mubr.f32.mxu0 0.0
  %4267 = vmatmul.mubr.f32.gmra.mrb[0].mxu0 %v85
  %v4268 = vpop.f32.mrb[0].mxu0
  %v4269 = vadd.f32 %v4041, %v4268
  %v4270 = vpop.f32.mrb[0].mxu0
  %4271 = vmatprep.mubr.f32.mxu0 0.0
  %4272 = vmatmul.mubr.f32.gmra.mrb[0].mxu0 %v88
  %v4273 = vpop.f32.mrb[0].mxu0
  %v4274 = vadd.f32 %v4046, %v4273
  %v4275 = vpop.f32.mrb[0].mxu0
  %4276 = vmatprep.mubr.f32.mxu0 0.0
  %4277 = vmatmul.mubr.f32.gmra.mrb[0].mxu0 %v91
  %v4278 = vpop.f32.mrb[0].mxu0
  %v4279 = vadd.f32 %v4051, %v4278
  %v4280 = vpop.f32.mrb[0].mxu0
  %4281 = vmatprep.mubr.f32.mxu0 0.0
  %4282 = vmatmul.mubr.f32.gmra.mrb[0].mxu0 %v94
  %v4283 = vpop.f32.mrb[0].mxu0
  %v4284 = vadd.f32 %v4056, %v4283
  %v4285 = vpop.f32.mrb[0].mxu0
  %4286 = vmatprep.mubr.f32.mxu0 0.0
  %4287 = vmatmul.mubr.f32.gmra.mrb[0].mxu0 %v97
  %v4288 = vpop.f32.mrb[0].mxu0
  %v4289 = vadd.f32 %v4061, %v4288
  %v4290 = vpop.f32.mrb[0].mxu0
  %4291 = vmatprep.mubr.f32.mxu0 0.0
  %4292 = vmatmul.mubr.f32.gmra.mrb[0].mxu0 %v100
  %v4293 = vpop.f32.mrb[0].mxu0
  %v4294 = vadd.f32 %v4066, %v4293
  %v4295 = vpop.f32.mrb[0].mxu0
  %4296 = vmatprep.mubr.f32.mxu0 0.0
  %4297 = vmatmul.mubr.f32.gmra.mrb[0].mxu0 %v103
  %v4298 = vpop.f32.mrb[0].mxu0
  %v4299 = vadd.f32 %v4071, %v4298
  %v4300 = vpop.f32.mrb[0].mxu0
  %4301 = vmatprep.mubr.f32.mxu0 0.0
  %4302 = vmatmul.mubr.f32.gmra.mrb[0].mxu0 %v106
  %v4303 = vpop.f32.mrb[0].mxu0
  %v4304 = vadd.f32 %v4076, %v4303
  %v4305 = vpop.f32.mrb[0].mxu0
  %4306 = vmatprep.mubr.f32.mxu0 0.0
  %4307 = vmatmul.mubr.f32.gmra.mrb[0].mxu0 %v109
  %v4308 = vpop.f32.mrb[0].mxu0
  %v4309 = vadd.f32 %v4081, %v4308
  %v4310 = vpop.f32.mrb[0].mxu0
  %4311 = vmatprep.mubr.f32.mxu0 0.0
  %4312 = vmatmul.mubr.f32.gmra.mrb[0].mxu0 %v112
  %v4313 = vpop.f32.mrb[0].mxu0
  %v4314 = vadd.f32 %v4086, %v4313
  %v4315 = vpop.f32.mrb[0].mxu0
  %4316 = vmatprep.mubr.f32.mxu0 0.0
  %4317 = vmatmul.mubr.f32.gmra.mrb[0].mxu0 %v115
  %v4318 = vpop.f32.mrb[0].mxu0
  %v4319 = vadd.f32 %v4091, %v4318
  %v4320 = vpop.f32.mrb[0].mxu0
  %4321 = vmatprep.mubr.f32.mxu0 0.0
  %4322 = vmatmul.mubr.f32.gmra.mrb[0].mxu0 %v118
  %v4323 = vpop.f32.mrb[0].mxu0
  %v4324 = vadd.f32 %v4096, %v4323
  %v4325 = vpop.f32.mrb[0].mxu0
  %4326 = vmatprep.mubr.f32.mxu0 0.0
  %4327 = vmatmul.mubr.f32.gmra.mrb[0].mxu0 %v121
  %v4328 = vpop.f32.mrb[0].mxu0
  %v4329 = vadd.f32 %v4101, %v4328
  %v4330 = vpop.f32.mrb[0].mxu0
  %4331 = vmatprep.mubr.f32.mxu0 0.0
  %4332 = vmatmul.mubr.f32.gmra.mrb[0].mxu0 %v124
  %v4333 = vpop.f32.mrb[0].mxu0
  %v4334 = vadd.f32 %v4106, %v4333
  %v4335 = vpop.f32.mrb[0].mxu0
  %4336 = vmatprep.mubr.f32.mxu0 0.0
  %4337 = vmatmul.mubr.f32.gmra.mrb[0].mxu0 %v127
  %v4338 = vpop.f32.mrb[0].mxu0
  %v4339 = vadd.f32 %v4111, %v4338
  %v4340 = vpop.f32.mrb[0].mxu0
  %4341 = vmatprep.mubr.f32.mxu0 0.0
  %4342 = vmatmul.mubr.f32.gmra.mrb[0].mxu0 %v130
  %v4343 = vpop.f32.mrb[0].mxu0
  %v4344 = vadd.f32 %v4116, %v4343
  %v4345 = vpop.f32.mrb[0].mxu0
  %4346 = vmatprep.mubr.f32.mxu0 0.0
  %4347 = vmatmul.mubr.f32.gmra.mrb[0].mxu0 %v133
  %v4348 = vpop.f32.mrb[0].mxu0
  %v4349 = vadd.f32 %v4121, %v4348
  %v4350 = vpop.f32.mrb[0].mxu0
  %4351 = vmatprep.mubr.f32.mxu0 0.0
  %4352 = vmatmul.mubr.f32.gmra.mrb[0].mxu0 %v136
  %v4353 = vpop.f32.mrb[0].mxu0
  %v4354 = vadd.f32 %v4126, %v4353
  %v4355 = vpop.f32.mrb[0].mxu0
  %4356 = vmatprep.mubr.f32.mxu0 0.0
  %4357 = vmatmul.mubr.f32.gmra.mrb[0].mxu0 %v139
  %v4358 = vpop.f32.mrb[0].mxu0
  %v4359 = vadd.f32 %v4131, %v4358
  %v4360 = vpop.f32.mrb[0].mxu0
  %4361 = vmatprep.mubr.f32.mxu0 0.0
  %4362 = vmatmul.mubr.f32.gmra.mrb[0].mxu0 %v142
  %v4363 = vpop.f32.mrb[0].mxu0
  %v4364 = vadd.f32 %v4136, %v4363
  %v4365 = vpop.f32.mrb[0].mxu0
  %4366 = vmatprep.mubr.f32.mxu0 0.0
  %4367 = vmatmul.mubr.f32.gmra.mrb[0].mxu0 %v145
  %v4368 = vpop.f32.mrb[0].mxu0
  %v4369 = vadd.f32 %v4141, %v4368
  %v4370 = vpop.f32.mrb[0].mxu0
  %4371 = vmatprep.mubr.f32.mxu0 0.0
  %4372 = vmatmul.mubr.f32.gmra.mrb[0].mxu0 %v148
  %v4373 = vpop.f32.mrb[0].mxu0
  %v4374 = vadd.f32 %v4146, %v4373
  %v4375 = vpop.f32.mrb[0].mxu0
  %4376 = vmatprep.mubr.f32.mxu0 0.0
  %4377 = vmatmul.mubr.f32.gmra.mrb[0].mxu0 %v151
  %v4378 = vpop.f32.mrb[0].mxu0
  %v4379 = vadd.f32 %v4151, %v4378
  %v4380 = vpop.f32.mrb[0].mxu0
  %4381 = vmatprep.mubr.f32.mxu0 0.0
  %4382 = vmatmul.mubr.f32.gmra.mrb[0].mxu0 %v154
  %v4383 = vpop.f32.mrb[0].mxu0
  %v4384 = vadd.f32 %v4156, %v4383
  %v4385 = vpop.f32.mrb[0].mxu0
  %4386 = vmatprep.mubr.f32.mxu0 0.0
  %4387 = vmatmul.mubr.f32.gmra.mrb[0].mxu0 %v157
  %v4388 = vpop.f32.mrb[0].mxu0
  %v4389 = vadd.f32 %v4161, %v4388
  %v4390 = vpop.f32.mrb[0].mxu0
  %4391 = vdwg.mxu0
  %v4392 = vld [vmem:[%s7] sm:$0x1]
  %v4394 = vlaneseq
  %v4395 = vshrl.u32 %v4394, 7
  %v4396 = vsub.s32 0, %v4395
  %v4397 = vrot.slane %v4392, %v4396
  %v4399 = vadd.f32 %v4234, %v4397
  %v4400 = vadd.f32 %v4239, %v4397
  %v4401 = vadd.f32 %v4244, %v4397
  %v4402 = vadd.f32 %v4249, %v4397
  %v4403 = vadd.f32 %v4254, %v4397
  %v4404 = vadd.f32 %v4259, %v4397
  %v4405 = vadd.f32 %v4264, %v4397
  %v4406 = vadd.f32 %v4269, %v4397
  %v4407 = vadd.f32 %v4274, %v4397
  %v4408 = vadd.f32 %v4279, %v4397
  %v4409 = vadd.f32 %v4284, %v4397
  %v4410 = vadd.f32 %v4289, %v4397
  %v4411 = vadd.f32 %v4294, %v4397
  %v4412 = vadd.f32 %v4299, %v4397
  %v4413 = vadd.f32 %v4304, %v4397
  %v4414 = vadd.f32 %v4309, %v4397
  %v4415 = vadd.f32 %v4314, %v4397
  %v4416 = vadd.f32 %v4319, %v4397
  %v4417 = vadd.f32 %v4324, %v4397
  %v4418 = vadd.f32 %v4329, %v4397
  %v4419 = vadd.f32 %v4334, %v4397
  %v4420 = vadd.f32 %v4339, %v4397
  %v4421 = vadd.f32 %v4344, %v4397
  %v4422 = vadd.f32 %v4349, %v4397
  %v4423 = vadd.f32 %v4354, %v4397
  %v4424 = vadd.f32 %v4359, %v4397
  %v4425 = vadd.f32 %v4364, %v4397
  %v4426 = vadd.f32 %v4369, %v4397
  %v4427 = vadd.f32 %v4374, %v4397
  %v4428 = vadd.f32 %v4379, %v4397
  %v4429 = vadd.f32 %v4384, %v4397
  %v4430 = vadd.f32 %v4389, %v4397
  %vm4431 = vcmask 64512
  %4432 = vst.msk [vmem:[%s8] sm:$0xff] %vm4431, %v4399
  %4433 = vst.msk [vmem:[%s8 + $0x8] sm:$0xff] %vm4431, %v4400
  %4434 = vst.msk [vmem:[%s8 + $0x10] sm:$0xff] %vm4431, %v4401
  %4435 = vst.msk [vmem:[%s8 + $0x18] sm:$0xff] %vm4431, %v4402
  %4436 = vst.msk [vmem:[%s8 + $0x20] sm:$0xff] %vm4431, %v4403
  %4437 = vst.msk [vmem:[%s8 + $0x28] sm:$0xff] %vm4431, %v4404
  %4438 = vst.msk [vmem:[%s8 + $0x30] sm:$0xff] %vm4431, %v4405
  %4439 = vst.msk [vmem:[%s8 + $0x38] sm:$0xff] %vm4431, %v4406
  %4440 = vst.msk [vmem:[%s8 + $0x40] sm:$0xff] %vm4431, %v4407
  %4441 = vst.msk [vmem:[%s8 + $0x48] sm:$0xff] %vm4431, %v4408
  %4442 = vst.msk [vmem:[%s8 + $0x50] sm:$0xff] %vm4431, %v4409
  %4443 = vst.msk [vmem:[%s8 + $0x58] sm:$0xff] %vm4431, %v4410
  %4444 = vst.msk [vmem:[%s8 + $0x60] sm:$0xff] %vm4431, %v4411
  %4445 = vst.msk [vmem:[%s8 + $0x68] sm:$0xff] %vm4431, %v4412
  %4446 = vst.msk [vmem:[%s8 + $0x70] sm:$0xff] %vm4431, %v4413
  %4447 = vst.msk [vmem:[%s8 + $0x78] sm:$0xff] %vm4431, %v4414
  %4448 = vst.msk [vmem:[%s8 + $0x80] sm:$0xff] %vm4431, %v4415
  %4449 = vst.msk [vmem:[%s8 + $0x88] sm:$0xff] %vm4431, %v4416
  %4450 = vst.msk [vmem:[%s8 + $0x90] sm:$0xff] %vm4431, %v4417
  %4451 = vst.msk [vmem:[%s8 + $0x98] sm:$0xff] %vm4431, %v4418
  %4452 = vst.msk [vmem:[%s8 + $0xa0] sm:$0xff] %vm4431, %v4419
  %4453 = vst.msk [vmem:[%s8 + $0xa8] sm:$0xff] %vm4431, %v4420
  %4454 = vst.msk [vmem:[%s8 + $0xb0] sm:$0xff] %vm4431, %v4421
  %4455 = vst.msk [vmem:[%s8 + $0xb8] sm:$0xff] %vm4431, %v4422
  %4456 = vst.msk [vmem:[%s8 + $0xc0] sm:$0xff] %vm4431, %v4423
  %4457 = vst.msk [vmem:[%s8 + $0xc8] sm:$0xff] %vm4431, %v4424
  %4458 = vst.msk [vmem:[%s8 + $0xd0] sm:$0xff] %vm4431, %v4425
  %4459 = vst.msk [vmem:[%s8 + $0xd8] sm:$0xff] %vm4431, %v4426
  %4460 = vst.msk [vmem:[%s8 + $0xe0] sm:$0xff] %vm4431, %v4427
  %4461 = vst.msk [vmem:[%s8 + $0xe8] sm:$0xff] %vm4431, %v4428
  %4462 = vst.msk [vmem:[%s8 + $0xf0] sm:$0xff] %vm4431, %v4429
  %4463 = vst.msk [vmem:[%s8 + $0xf8] sm:$0xff] %vm4431, %v4430
  // Predicated region
  $region34: #{tpu_custom_call.1} parent=0 // pred_check
    _
  $region35: #{tpu_custom_call.1} parent=0 // pred_check_branch
    %4465 = sbr.rel (0) target = $region37
  $region36: #{tpu_custom_call.1} parent=0 // pred_region
    _
  $region37: #{tpu_custom_call.1} parent=0 // pred_fallthru
    _
  // Predicated region
  $region38: #{tpu_custom_call.1} parent=0 // pred_check
    _
  $region39: #{tpu_custom_call.1} parent=0 // pred_check_branch
    %4467 = sbr.rel (0) target = $region41
  $region40: #{tpu_custom_call.1} parent=0 // pred_region
    _
  $region41: #{tpu_custom_call.1} parent=0 // pred_fallthru
    _

</llo_original>
